<compile_context>
chip_gen: v7x
topology: tpu7x:2x2x1
jax: 0.10.0
libtpu: 0.0.40
codegen_flags: <defaults>
</compile_context>

<pallas_src>
import functools

import jax
import jax.numpy as jnp
from jax import lax
from jax.experimental import pallas as pl
from jax.experimental.pallas import tpu as pltpu


OUT_LANE_PAD = 128   # head output padded to a lane-dense width
SUBLANE = 8          # batch tiles are multiples of 8 sublanes


def _round_up(x, m):
    return ((x + m - 1) // m) * m


# ----------------------------------------------------------------------------
# Pallas kernel
# ----------------------------------------------------------------------------
def _gate_math(g, c, H):
    """PyTorch nn.LSTM cell gate math. Gate order: i, f, g, o."""
    sig_if = jax.nn.sigmoid(g[:, 0:2 * H])   # i|f in one contiguous EUP pass
    i = sig_if[:, 0:H]
    f = sig_if[:, H:2 * H]
    gg = jnp.tanh(g[:, 2 * H:3 * H])
    o = jax.nn.sigmoid(g[:, 3 * H:4 * H])
    c_new = f * c + i * gg
    h_new = o * jnp.tanh(c_new)
    return h_new, c_new


def jigsaw_fused_kernel(x_ref,
                        wih1f_ref, wih1b_ref, b1f_ref, b1b_ref,
                        whh1f_ref, whh1b_ref,
                        wih2f_ref, wih2b_ref, b2f_ref, b2b_ref,
                        whh2f_ref, whh2b_ref,
                        w12_ref, b12_ref, wout_ref, bout_ref,
                        out_ref,
                        *scratch,
                        T, Bt, H, D, merge_h1, unroll):
    """Fused BiLSTM x2 + pooling + dense head for one batch tile.

    x_ref        : [T*Bt, E] bf16   time-major (row = t*Bt + b)
    wih1f/b      : [E, 4H]  bf16    per-direction layer-1 input weights
    wih2f/b      : [2H, 4H] bf16    per-direction layer-2 input weights
    whh*         : [H, 4H]  f32     recurrent weights per layer / direction
    b1*/b2*      : [1, 4H]  f32     (b_ih + b_hh) per direction
    w12 [4H,2D], b12 [1,2D]         fused linear1|linear2
    wout [D,128], bout [1,128]      fused linear_out|linear_aux (zero-padded)
    out_ref      : [Bt, 128]
    scratch      : gpf, gpb : [T*Bt, 4H] f32  (reused for layer 1 AND layer 2)
                   h1       : [T*Bt, 2H] f32  (merged)   -- if H % 128 == 0
                   h1f, h1b : [T*Bt, H]  f32  (split)    -- otherwise
    """
    f32 = jnp.float32
    bf16 = jnp.bfloat16
    if merge_h1:
        gpf_ref, gpb_ref, h1_ref = scratch
    else:
        gpf_ref, gpb_ref, h1f_ref, h1b_ref = scratch

    # ---- layer 1: hoisted bf16 input projection, per direction, written
    # directly into the gate-projection buffers (no [T*Bt, 8H] temporary). ---
    x = x_ref[...]                                              # [T*Bt, E]
    gpf_ref[...] = (jnp.dot(x, wih1f_ref[...], preferred_element_type=f32)
                    + b1f_ref[...])
    gpb_ref[...] = (jnp.dot(x, wih1b_ref[...], preferred_element_type=f32)
                    + b1b_ref[...])

    whh1f = whh1f_ref[...]
    whh1b = whh1b_ref[...]
    z = jnp.zeros((Bt, H), f32)

    def step1(t, carry):
        hf, cf, hb, cb = carry
        rf = pl.multiple_of(t * Bt, Bt)
        rb = pl.multiple_of((T - 1 - t) * Bt, Bt)
        gf = gpf_ref[pl.ds(rf, Bt), :] + jnp.dot(
            hf, whh1f, preferred_element_type=f32)
        gb = gpb_ref[pl.ds(rb, Bt), :] + jnp.dot(
            hb, whh1b, preferred_element_type=f32)
        hf, cf = _gate_math(gf, cf, H)
        hb, cb = _gate_math(gb, cb, H)
        if merge_h1:
            h1_ref[pl.ds(rf, Bt), 0:H] = hf
            h1_ref[pl.ds(rb, Bt), H:2 * H] = hb
        else:
            h1f_ref[pl.ds(rf, Bt), :] = hf
            h1b_ref[pl.ds(rb, Bt), :] = hb
        return hf, cf, hb, cb

    lax.fori_loop(0, T, step1, (z, z, z, z), unroll=unroll)

    # ---- layer 2: hoisted bf16 projection over the full h1 sequence, reusing
    # the SAME gp buffers (layer-1 projections are dead at this point). ------
    if merge_h1:
        h1 = h1_ref[...].astype(bf16)                           # [T*Bt, 2H]
        gpf_ref[...] = (jnp.dot(h1, wih2f_ref[...], preferred_element_type=f32)
                        + b2f_ref[...])
        gpb_ref[...] = (jnp.dot(h1, wih2b_ref[...], preferred_element_type=f32)
                        + b2b_ref[...])
    else:
        h1f = h1f_ref[...].astype(bf16)
        h1b = h1b_ref[...].astype(bf16)
        w2f = wih2f_ref[...]
        w2b = wih2b_ref[...]
        gpf_ref[...] = (jnp.dot(h1f, w2f[0:H], preferred_element_type=f32)
                        + jnp.dot(h1b, w2f[H:2 * H], preferred_element_type=f32)
                        + b2f_ref[...])
        gpb_ref[...] = (jnp.dot(h1f, w2b[0:H], preferred_element_type=f32)
                        + jnp.dot(h1b, w2b[H:2 * H], preferred_element_type=f32)
                        + b2b_ref[...])

    whh2f = whh2f_ref[...]
    whh2b = whh2b_ref[...]
    neg_inf = jnp.full((Bt, H), -jnp.inf, f32)

    def step2(t, carry):
        hf, cf, hb, cb, sf, sb, mf, mb = carry
        rf = pl.multiple_of(t * Bt, Bt)
        rb = pl.multiple_of((T - 1 - t) * Bt, Bt)
        gf = gpf_ref[pl.ds(rf, Bt), :] + jnp.dot(
            hf, whh2f, preferred_element_type=f32)
        gb = gpb_ref[pl.ds(rb, Bt), :] + jnp.dot(
            hb, whh2b, preferred_element_type=f32)
        hf, cf = _gate_math(gf, cf, H)
        hb, cb = _gate_math(gb, cb, H)
        # avg/max pooling over time fused into the recurrence (order-free).
        return (hf, cf, hb, cb, sf + hf, sb + hb,
                jnp.maximum(mf, hf), jnp.maximum(mb, hb))

    carry = lax.fori_loop(0, T, step2,
                          (z, z, z, z, z, z, neg_inf, neg_inf), unroll=unroll)
    _, _, _, _, sf, sb, mf, mb = carry

    # ---- pooling + dense head ------------------------------------------------
    inv_t = 1.0 / T
    conc = jnp.concatenate([mf, mb, sf * inv_t, sb * inv_t], axis=1)  # [Bt, 4H]

    l12 = jax.nn.relu(
        jnp.dot(conc, w12_ref[...], preferred_element_type=f32) + b12_ref[...])
    hidden = conc + l12[:, 0:D] + l12[:, D:2 * D]             # requires D == 4H
    out_ref[...] = (jnp.dot(hidden, wout_ref[...], preferred_element_type=f32)
                    + bout_ref[...])                          # [Bt, 128] dense


# ----------------------------------------------------------------------------
# VMEM budgeting / tile selection
# ----------------------------------------------------------------------------
def _tpu_vmem_capacity_bytes():
    try:
        return int(pltpu.get_tpu_info().vmem_capacity_bytes)
    except Exception:
        return 64 * 1024 * 1024            # conservative: v7x per-TC VMEM


def _vmem_limit_bytes():
    # ~80% of physical VMEM: ~100 MiB on v5e/v6e (128 MiB), ~51 MiB on v7x.
    return min(int(_tpu_vmem_capacity_bytes() * 0.8), 100 * 1024 * 1024)


def _choose_b_tile(B, T, E, H, weight_bytes, vmem_budget, min_grid_tiles=1):
    """Largest Bt in {8,16,32,64} whose working set fits the VMEM budget."""
    bp8 = _round_up(max(B, 1), SUBLANE)
    cap = max(SUBLANE, _round_up(bp8 // max(min_grid_tiles, 1), SUBLANE))
    best = SUBLANE
    for bt in (8, 16, 32, 64):
        if bt > min(bp8, cap):
            break
        gp_h1 = T * bt * H * 40            # 2x [T*Bt,4H] f32 gp + [T*Bt,2H] f32 h1
        x_blk = 2 * (T * bt * E * 2)       # double-buffered bf16 input slab
        o_blk = 2 * (bt * OUT_LANE_PAD * 4)
        slack = T * bt * 4 * H * 4 + (4 << 20)   # transient dot slab + misc
        if gp_h1 + x_blk + o_blk + 2 * weight_bytes + slack <= vmem_budget:
            best = bt
    return best


# ----------------------------------------------------------------------------
# Wrappers
# ----------------------------------------------------------------------------
_WEIGHT_KEYS = ("wih1_f", "wih1_b", "b1_f", "b1_b", "whh1_f", "whh1_b",
                "wih2_f", "wih2_b", "b2_f", "b2_b", "whh2_f", "whh2_b",
                "w12", "b12", "wout", "bout")


def _resident_spec(arr):
    nd = arr.ndim
    return pl.BlockSpec(arr.shape, lambda i, _nd=nd: (0,) * _nd)


def jigsaw_pallas(x_flat, kp, *, t_len, b_tile, vmem_limit):
    """x_flat: [nb * T * Bt, E] bf16, row = (tile*T + t)*Bt + b."""
    T, Bt = t_len, b_tile
    E = x_flat.shape[-1]
    nb = x_flat.shape[0] // (T * Bt)
    H = kp["whh1_f"].shape[0]
    D = kp["w12"].shape[0]
    out_w = kp["wout"].shape[1]
    assert D == 4 * H, "head requires dense_hidden_units == 4 * lstm_units"
    merge_h1 = (H % 128 == 0)              # lane-aligned merged-h1 column stores
    unroll = True if T <= 16 else (2 if Bt >= 32 else 4)

    kern = functools.partial(jigsaw_fused_kernel, T=T, Bt=Bt, H=H, D=D,
                             merge_h1=merge_h1, unroll=unroll)

    scratch = [pltpu.VMEM((T * Bt, 4 * H), jnp.float32),   # gpf (layers 1 & 2)
               pltpu.VMEM((T * Bt, 4 * H), jnp.float32)]   # gpb (layers 1 & 2)
    if merge_h1:
        scratch += [pltpu.VMEM((T * Bt, 2 * H), jnp.float32)]
    else:
        scratch += [pltpu.VMEM((T * Bt, H), jnp.float32),
                    pltpu.VMEM((T * Bt, H), jnp.float32)]

    in_specs = [pl.BlockSpec((T * Bt, E), lambda i: (i, 0))]
    in_specs += [_resident_spec(kp[k]) for k in _WEIGHT_KEYS]

    grid_spec = pltpu.PrefetchScalarGridSpec(
        num_scalar_prefetch=0,
        grid=(nb,),
        in_specs=in_specs,
        out_specs=pl.BlockSpec((Bt, out_w), lambda i: (i, 0)),
        scratch_shapes=scratch)

    return pl.pallas_call(
        kern,
        out_shape=jax.ShapeDtypeStruct((nb * Bt, out_w), jnp.float32),
        grid_spec=grid_spec,
        compiler_params=pltpu.CompilerParams(
            dimension_semantics=("parallel",),
            vmem_limit_bytes=int(vmem_limit)),
    )(x_flat, *[kp[k] for k in _WEIGHT_KEYS])


def jigsaw_forward(x_ids, kp, *, n_out, b_tile=None, min_grid_tiles=1):
    B, T = x_ids.shape
    E = kp["wih1_f"].shape[0]
    H = kp["whh1_f"].shape[0]
    vmem_budget = _vmem_limit_bytes()
    if b_tile is None:
        wbytes = sum(int(kp[k].size) * kp[k].dtype.itemsize
                     for k in _WEIGHT_KEYS)
        b_tile = _choose_b_tile(B, T, E, H, wbytes, vmem_budget,
                                min_grid_tiles)
    Bp = _round_up(B, b_tile)
    ids = jnp.pad(x_ids, ((0, Bp - B), (0, 0))) if Bp != B else x_ids

    emb = kp["embedding"][ids]                      # [Bp, T, E] bf16 gather
    # SpatialDropout(0.3): identity in eval mode.
    nb = Bp // b_tile
    # Layout plumbing in bf16: per batch tile, time-major, flat 2D slab.
    x_flat = (emb.reshape(nb, b_tile, T, E)
                 .transpose(0, 2, 1, 3)             # [nb, T, Bt, E]
                 .reshape(nb * T * b_tile, E))

    out = jigsaw_pallas(x_flat, kp, t_len=T, b_tile=b_tile,
                        vmem_limit=vmem_budget)     # [Bp, 128]
    return out[:B, :n_out]


# ----------------------------------------------------------------------------
# Parameter construction / preparation
# ----------------------------------------------------------------------------
def init_params(key, max_features, embed_size, lstm_units,
                dense_hidden_units, num_aux):
    H = lstm_units
    D = dense_hidden_units
    assert D == 4 * H, "model requires dense_hidden_units == 4 * lstm_units"
    keys = jax.random.split(key, 16)

    def nrm(k, shape, scale=0.1):
        return scale * jax.random.normal(k, shape, jnp.float32)

    embedding = nrm(keys[0], (max_features, embed_size), 1.0)

    def lstm_dir(k, din):
        ks = jax.random.split(k, 4)
        wih = nrm(ks[0], (4 * H, din))       # PyTorch weight_ih: [4H, Din]
        whh = nrm(ks[1], (4 * H, H))         # PyTorch weight_hh: [4H, H]
        bih = nrm(ks[2], (4 * H,))
        bhh = nrm(ks[3], (4 * H,))
        return wih.T, whh.T, (bih + bhh).reshape(1, 4 * H)

    def lstm_layer(k, din):
        kf, kb = jax.random.split(k, 2)
        return (*lstm_dir(kf, din), *lstm_dir(kb, din))

    lstm1 = lstm_layer(keys[1], embed_size)
    lstm2 = lstm_layer(keys[2], 2 * H)

    w1 = nrm(keys[3], (D, D)); b1 = nrm(keys[4], (D,))
    w2 = nrm(keys[5], (D, D)); b2 = nrm(keys[6], (D,))
    wo = nrm(keys[7], (1, D)); bo = nrm(keys[8], (1,))
    wa = nrm(keys[9], (num_aux, D)); ba = nrm(keys[10], (num_aux,))
    head = (w1.T, b1.reshape(1, D), w2.T, b2.reshape(1, D),
            wo.T, bo.reshape(1, 1), wa.T, ba.reshape(1, num_aux))

    return dict(embedding=embedding, lstm1=lstm1, lstm2=lstm2, head=head)


def prepare_kernel_params(params):
    """Cast / pad weights into the fused, lane-dense kernel layout."""
    wih1_f, whh1_f, b1_f, wih1_b, whh1_b, b1_b = params["lstm1"]
    wih2_f, whh2_f, b2_f, wih2_b, whh2_b, b2_b = params["lstm2"]
    w1, b1, w2, b2, wo, bo, wa, ba = params["head"]

    H = whh1_f.shape[0]
    D = w1.shape[0]
    assert D == 4 * H, "head requires dense_hidden_units == 4 * lstm_units"
    assert H % SUBLANE == 0, "lstm_units must be a multiple of 8"
    bf16 = jnp.bfloat16

    w12 = jnp.concatenate([w1, w2], axis=1)                   # [D, 2D]
    b12 = jnp.concatenate([b1, b2], axis=1)                   # [1, 2D]

    n_out = wo.shape[1] + wa.shape[1]
    width = max(OUT_LANE_PAD,
                _round_up(n_out, OUT_LANE_PAD))
    wout = jnp.concatenate(
        [wo, wa, jnp.zeros((D, width - n_out), jnp.float32)], axis=1)
    bout = jnp.concatenate(
        [bo, ba, jnp.zeros((1, width - n_out), jnp.float32)], axis=1)

    return dict(
        embedding=params["embedding"].astype(bf16),           # bf16 gather/DMA
        wih1_f=wih1_f.astype(bf16), wih1_b=wih1_b.astype(bf16),
        b1_f=b1_f, b1_b=b1_b,
        whh1_f=whh1_f, whh1_b=whh1_b,
        wih2_f=wih2_f.astype(bf16), wih2_b=wih2_b.astype(bf16),
        b2_f=b2_f, b2_b=b2_b,
        whh2_f=whh2_f, whh2_b=whh2_b,
        w12=w12, b12=b12, wout=wout, bout=bout)


# ----------------------------------------------------------------------------
# Pure-JAX reference (silent correctness check)
# ----------------------------------------------------------------------------
def _ref_bilstm(x_tbd, wih_f, whh_f, b_f, wih_b, whh_b, b_b):
    T, B, _ = x_tbd.shape
    H = whh_f.shape[0]
    hp = lax.Precision.HIGHEST

    def cell(carry, x_t, wih, whh, b):
        h, c = carry
        g = (jnp.dot(x_t, wih, precision=hp)
             + jnp.dot(h, whh, precision=hp) + b)
        i = jax.nn.sigmoid(g[:, 0:H])
        f = jax.nn.sigmoid(g[:, H:2 * H])
        gg = jnp.tanh(g[:, 2 * H:3 * H])
        o = jax.nn.sigmoid(g[:, 3 * H:4 * H])
        c2 = f * c + i * gg
        h2 = o * jnp.tanh(c2)
        return (h2, c2), h2

    z = (jnp.zeros((B, H), jnp.float32), jnp.zeros((B, H), jnp.float32))
    _, hf = lax.scan(lambda c, x: cell(c, x, wih_f, whh_f, b_f), z, x_tbd)
    _, hb = lax.scan(lambda c, x: cell(c, x, wih_b, whh_b, b_b), z,
                     x_tbd[::-1])
    hb = hb[::-1]
    return jnp.concatenate([hf, hb], axis=-1)                 # [T, B, 2H]


def _ref_forward(x_ids, params):
    hp = lax.Precision.HIGHEST
    emb = params["embedding"][x_ids]
    x = jnp.transpose(emb, (1, 0, 2))
    h1 = _ref_bilstm(x, *params["lstm1"])
    h2 = _ref_bilstm(h1, *params["lstm2"])
    avg = jnp.mean(h2, axis=0)
    mx = jnp.max(h2, axis=0)
    conc = jnp.concatenate([mx, avg], axis=1)
    w1, b1, w2, b2, wo, bo, wa, ba = params["head"]
    l1 = jax.nn.relu(jnp.dot(conc, w1, precision=hp) + b1)
    l2 = jax.nn.relu(jnp.dot(conc, w2, precision=hp) + b2)
    hidden = conc + l1 + l2
    res = jnp.dot(hidden, wo, precision=hp) + bo
    aux = jnp.dot(hidden, wa, precision=hp) + ba
    return jnp.concatenate([res, aux], axis=1)


# ----------------------------------------------------------------------------
if __name__ == "__main__":
    B, T = 2, 8
    EMBED = 32
    LSTM_UNITS = 32
    DENSE_HIDDEN = 4 * LSTM_UNITS          # 128, as in the original model
    NUM_AUX = 6
    MAX_FEATURES = 100

    key = jax.random.PRNGKey(0)
    k_param, k_ids = jax.random.split(key)
    params = init_params(k_param, MAX_FEATURES, EMBED, LSTM_UNITS,
                         DENSE_HIDDEN, NUM_AUX)
    x_ids = jax.random.randint(k_ids, (B, T), 0, MAX_FEATURES, jnp.int32)

    kp = prepare_kernel_params(params)
    n_out = 1 + NUM_AUX

    fwd = jax.jit(functools.partial(jigsaw_forward, n_out=n_out))
    out = jax.block_until_ready(fwd(x_ids, kp))

    ref = _ref_forward(x_ids, params)
    assert out.shape == (B, n_out)
    assert bool(jnp.allclose(out, ref, atol=5e-2, rtol=5e-2)), (
        "max abs err = %f" % float(jnp.max(jnp.abs(out - ref))))

    print("KERNEL_OK")
</pallas_src>

<mosaic_0001>
module attributes {stable_mosaic.version = 11 : i64} {
  func.func @jigsaw_fused_kernel(%arg0: i32, %arg1: memref<64x32xbf16, #tpu.memory_space<vmem>>, %arg2: memref<32x128xbf16, #tpu.memory_space<vmem>>, %arg3: memref<32x128xbf16, #tpu.memory_space<vmem>>, %arg4: memref<1x128xf32, #tpu.memory_space<vmem>>, %arg5: memref<1x128xf32, #tpu.memory_space<vmem>>, %arg6: memref<32x128xf32, #tpu.memory_space<vmem>>, %arg7: memref<32x128xf32, #tpu.memory_space<vmem>>, %arg8: memref<64x128xbf16, #tpu.memory_space<vmem>>, %arg9: memref<64x128xbf16, #tpu.memory_space<vmem>>, %arg10: memref<1x128xf32, #tpu.memory_space<vmem>>, %arg11: memref<1x128xf32, #tpu.memory_space<vmem>>, %arg12: memref<32x128xf32, #tpu.memory_space<vmem>>, %arg13: memref<32x128xf32, #tpu.memory_space<vmem>>, %arg14: memref<128x256xf32, #tpu.memory_space<vmem>>, %arg15: memref<1x256xf32, #tpu.memory_space<vmem>>, %arg16: memref<128x128xf32, #tpu.memory_space<vmem>>, %arg17: memref<1x128xf32, #tpu.memory_space<vmem>>, %arg18: memref<8x128xf32, #tpu.memory_space<vmem>>, %arg19: memref<64x128xf32, #tpu.memory_space<vmem>>, %arg20: memref<64x128xf32, #tpu.memory_space<vmem>>, %arg21: memref<64x32xf32, #tpu.memory_space<vmem>>, %arg22: memref<64x32xf32, #tpu.memory_space<vmem>>) attributes {dimension_semantics = [#tpu.dimension_semantics<parallel>], iteration_bounds = array<i64: 1>, scalar_prefetch = 0 : i64, scratch_operands = 4 : i64, tpu.core_type = #tpu.core_type<tc>, window_params = [{transform_indices = @transform_0, window_bounds = array<i64: 64, 32>}, {pipeline_mode = #tpu.pipeline_mode<synchronous>, transform_indices = @transform_1, window_bounds = array<i64: 32, 128>}, {pipeline_mode = #tpu.pipeline_mode<synchronous>, transform_indices = @transform_2, window_bounds = array<i64: 32, 128>}, {pipeline_mode = #tpu.pipeline_mode<synchronous>, transform_indices = @transform_3, window_bounds = array<i64: 1, 128>}, {pipeline_mode = #tpu.pipeline_mode<synchronous>, transform_indices = @transform_4, window_bounds = array<i64: 1, 128>}, {pipeline_mode = #tpu.pipeline_mode<synchronous>, transform_indices = @transform_5, window_bounds = array<i64: 32, 128>}, {pipeline_mode = #tpu.pipeline_mode<synchronous>, transform_indices = @transform_6, window_bounds = array<i64: 32, 128>}, {pipeline_mode = #tpu.pipeline_mode<synchronous>, transform_indices = @transform_7, window_bounds = array<i64: 64, 128>}, {pipeline_mode = #tpu.pipeline_mode<synchronous>, transform_indices = @transform_8, window_bounds = array<i64: 64, 128>}, {pipeline_mode = #tpu.pipeline_mode<synchronous>, transform_indices = @transform_9, window_bounds = array<i64: 1, 128>}, {pipeline_mode = #tpu.pipeline_mode<synchronous>, transform_indices = @transform_10, window_bounds = array<i64: 1, 128>}, {pipeline_mode = #tpu.pipeline_mode<synchronous>, transform_indices = @transform_11, window_bounds = array<i64: 32, 128>}, {pipeline_mode = #tpu.pipeline_mode<synchronous>, transform_indices = @transform_12, window_bounds = array<i64: 32, 128>}, {pipeline_mode = #tpu.pipeline_mode<synchronous>, transform_indices = @transform_13, window_bounds = array<i64: 128, 256>}, {pipeline_mode = #tpu.pipeline_mode<synchronous>, transform_indices = @transform_14, window_bounds = array<i64: 1, 256>}, {pipeline_mode = #tpu.pipeline_mode<synchronous>, transform_indices = @transform_15, window_bounds = array<i64: 128, 128>}, {pipeline_mode = #tpu.pipeline_mode<synchronous>, transform_indices = @transform_16, window_bounds = array<i64: 1, 128>}, {transform_indices = @transform_17, window_bounds = array<i64: 8, 128>}]} {
    %c0 = arith.constant 0 : index
    %c0_0 = arith.constant 0 : index
    %0 = vector.load %arg1[%c0, %c0_0] : memref<64x32xbf16, #tpu.memory_space<vmem>>, vector<64x32xbf16>
    %c0_1 = arith.constant 0 : index
    %c0_2 = arith.constant 0 : index
    %1 = vector.load %arg2[%c0_1, %c0_2] : memref<32x128xbf16, #tpu.memory_space<vmem>>, vector<32x128xbf16>
    %cst = arith.constant dense<0.000000e+00> : vector<64x128xf32>
    %2 = tpu.matmul %0, %1, %cst {dimension_numbers = #tpu.dot_dimension_numbers<[1], [0], [0], [1], [0, 0, 1, 1], [], []>} : vector<64x32xbf16>, vector<32x128xbf16>, vector<64x128xf32> -> vector<64x128xf32>
    %c0_3 = arith.constant 0 : index
    %c0_4 = arith.constant 0 : index
    %3 = vector.load %arg4[%c0_3, %c0_4] : memref<1x128xf32, #tpu.memory_space<vmem>>, vector<1x128xf32>
    %4 = vector.broadcast %3 : vector<1x128xf32> to vector<64x128xf32>
    %5 = arith.addf %2, %4 : vector<64x128xf32>
    %c0_5 = arith.constant 0 : index
    %c0_6 = arith.constant 0 : index
    %6 = vector.load %arg19[%c0_5, %c0_6] : memref<64x128xf32, #tpu.memory_space<vmem>>, vector<64x128xf32>
    tpu.vector_store %arg19[%c0_5, %c0_6], %5 {strides = array<i32>} : memref<64x128xf32, #tpu.memory_space<vmem>>, vector<64x128xf32>,
    %c0_7 = arith.constant 0 : index
    %c0_8 = arith.constant 0 : index
    %7 = vector.load %arg3[%c0_7, %c0_8] : memref<32x128xbf16, #tpu.memory_space<vmem>>, vector<32x128xbf16>
    %cst_9 = arith.constant dense<0.000000e+00> : vector<64x128xf32>
    %8 = tpu.matmul %0, %7, %cst_9 {dimension_numbers = #tpu.dot_dimension_numbers<[1], [0], [0], [1], [0, 0, 1, 1], [], []>} : vector<64x32xbf16>, vector<32x128xbf16>, vector<64x128xf32> -> vector<64x128xf32>
    %c0_10 = arith.constant 0 : index
    %c0_11 = arith.constant 0 : index
    %9 = vector.load %arg5[%c0_10, %c0_11] : memref<1x128xf32, #tpu.memory_space<vmem>>, vector<1x128xf32>
    %10 = vector.broadcast %9 : vector<1x128xf32> to vector<64x128xf32>
    %11 = arith.addf %8, %10 : vector<64x128xf32>
    %c0_12 = arith.constant 0 : index
    %c0_13 = arith.constant 0 : index
    %12 = vector.load %arg20[%c0_12, %c0_13] : memref<64x128xf32, #tpu.memory_space<vmem>>, vector<64x128xf32>
    tpu.vector_store %arg20[%c0_12, %c0_13], %11 {strides = array<i32>} : memref<64x128xf32, #tpu.memory_space<vmem>>, vector<64x128xf32>,
    %c0_14 = arith.constant 0 : index
    %c0_15 = arith.constant 0 : index
    %13 = vector.load %arg6[%c0_14, %c0_15] : memref<32x128xf32, #tpu.memory_space<vmem>>, vector<32x128xf32>
    %c0_16 = arith.constant 0 : index
    %c0_17 = arith.constant 0 : index
    %14 = vector.load %arg7[%c0_16, %c0_17] : memref<32x128xf32, #tpu.memory_space<vmem>>, vector<32x128xf32>
    %cst_18 = arith.constant 0.000000e+00 : f32
    %15 = vector.broadcast %cst_18 : f32 to vector<8x32xf32>
    %c0_i32 = arith.constant 0 : i32
    %c8_i32 = arith.constant 8 : i32
    %16 = arith.muli %c0_i32, %c8_i32 : i32
    %17 = tpu.assume_multiple %16, 8 : i32
    %c7_i32 = arith.constant 7 : i32
    %18 = arith.subi %c7_i32, %c0_i32 : i32
    %c8_i32_19 = arith.constant 8 : i32
    %19 = arith.muli %18, %c8_i32_19 : i32
    %20 = tpu.assume_multiple %19, 8 : i32
    %21 = arith.index_cast %17 : i32 to index
    %c0_20 = arith.constant 0 : index
    %22 = vector.load %arg19[%21, %c0_20] : memref<64x128xf32, #tpu.memory_space<vmem>>, vector<8x128xf32>
    %cst_21 = arith.constant dense<0.000000e+00> : vector<8x128xf32>
    %23 = tpu.matmul %15, %13, %cst_21 {dimension_numbers = #tpu.dot_dimension_numbers<[1], [0], [0], [1], [0, 0, 1, 1], [], []>} : vector<8x32xf32>, vector<32x128xf32>, vector<8x128xf32> -> vector<8x128xf32>
    %24 = arith.addf %22, %23 : vector<8x128xf32>
    %25 = arith.index_cast %20 : i32 to index
    %c0_22 = arith.constant 0 : index
    %26 = vector.load %arg20[%25, %c0_22] : memref<64x128xf32, #tpu.memory_space<vmem>>, vector<8x128xf32>
    %cst_23 = arith.constant dense<0.000000e+00> : vector<8x128xf32>
    %27 = tpu.matmul %15, %14, %cst_23 {dimension_numbers = #tpu.dot_dimension_numbers<[1], [0], [0], [1], [0, 0, 1, 1], [], []>} : vector<8x32xf32>, vector<32x128xf32>, vector<8x128xf32> -> vector<8x128xf32>
    %28 = arith.addf %26, %27 : vector<8x128xf32>
    %29 = vector.extract_strided_slice %24 {offsets = [0, 0], sizes = [8, 64], strides = [1, 1]} : vector<8x128xf32> to vector<8x64xf32>
    %30 = arith.negf %29 : vector<8x64xf32>
    %31 = math.exp %30 : vector<8x64xf32>
    %cst_24 = arith.constant 1.000000e+00 : f32
    %32 = vector.broadcast %cst_24 : f32 to vector<8x64xf32>
    %33 = arith.addf %32, %31 : vector<8x64xf32>
    %34 = arith.divf %32, %33 : vector<8x64xf32>
    %35 = vector.extract_strided_slice %34 {offsets = [0, 0], sizes = [8, 32], strides = [1, 1]} : vector<8x64xf32> to vector<8x32xf32>
    %36 = vector.extract_strided_slice %34 {offsets = [0, 32], sizes = [8, 32], strides = [1, 1]} : vector<8x64xf32> to vector<8x32xf32>
    %37 = vector.extract_strided_slice %24 {offsets = [0, 64], sizes = [8, 32], strides = [1, 1]} : vector<8x128xf32> to vector<8x32xf32>
    %38 = math.tanh %37 : vector<8x32xf32>
    %39 = vector.extract_strided_slice %24 {offsets = [0, 96], sizes = [8, 32], strides = [1, 1]} : vector<8x128xf32> to vector<8x32xf32>
    %40 = arith.negf %39 : vector<8x32xf32>
    %41 = math.exp %40 : vector<8x32xf32>
    %cst_25 = arith.constant 1.000000e+00 : f32
    %42 = vector.broadcast %cst_25 : f32 to vector<8x32xf32>
    %43 = arith.addf %42, %41 : vector<8x32xf32>
    %44 = arith.divf %42, %43 : vector<8x32xf32>
    %45 = arith.mulf %36, %15 : vector<8x32xf32>
    %46 = arith.mulf %35, %38 : vector<8x32xf32>
    %47 = arith.addf %45, %46 : vector<8x32xf32>
    %48 = math.tanh %47 : vector<8x32xf32>
    %49 = arith.mulf %44, %48 : vector<8x32xf32>
    %50 = vector.extract_strided_slice %28 {offsets = [0, 0], sizes = [8, 64], strides = [1, 1]} : vector<8x128xf32> to vector<8x64xf32>
    %51 = arith.negf %50 : vector<8x64xf32>
    %52 = math.exp %51 : vector<8x64xf32>
    %cst_26 = arith.constant 1.000000e+00 : f32
    %53 = vector.broadcast %cst_26 : f32 to vector<8x64xf32>
    %54 = arith.addf %53, %52 : vector<8x64xf32>
    %55 = arith.divf %53, %54 : vector<8x64xf32>
    %56 = vector.extract_strided_slice %55 {offsets = [0, 0], sizes = [8, 32], strides = [1, 1]} : vector<8x64xf32> to vector<8x32xf32>
    %57 = vector.extract_strided_slice %55 {offsets = [0, 32], sizes = [8, 32], strides = [1, 1]} : vector<8x64xf32> to vector<8x32xf32>
    %58 = vector.extract_strided_slice %28 {offsets = [0, 64], sizes = [8, 32], strides = [1, 1]} : vector<8x128xf32> to vector<8x32xf32>
    %59 = math.tanh %58 : vector<8x32xf32>
    %60 = vector.extract_strided_slice %28 {offsets = [0, 96], sizes = [8, 32], strides = [1, 1]} : vector<8x128xf32> to vector<8x32xf32>
    %61 = arith.negf %60 : vector<8x32xf32>
    %62 = math.exp %61 : vector<8x32xf32>
    %cst_27 = arith.constant 1.000000e+00 : f32
    %63 = vector.broadcast %cst_27 : f32 to vector<8x32xf32>
    %64 = arith.addf %63, %62 : vector<8x32xf32>
    %65 = arith.divf %63, %64 : vector<8x32xf32>
    %66 = arith.mulf %57, %15 : vector<8x32xf32>
    %67 = arith.mulf %56, %59 : vector<8x32xf32>
    %68 = arith.addf %66, %67 : vector<8x32xf32>
    %69 = math.tanh %68 : vector<8x32xf32>
    %70 = arith.mulf %65, %69 : vector<8x32xf32>
    %71 = arith.index_cast %17 : i32 to index
    %c0_28 = arith.constant 0 : index
    %72 = vector.load %arg21[%71, %c0_28] : memref<64x32xf32, #tpu.memory_space<vmem>>, vector<8x32xf32>
    tpu.vector_store %arg21[%71, %c0_28], %49 {strides = array<i32>} : memref<64x32xf32, #tpu.memory_space<vmem>>, vector<8x32xf32>,
    %73 = arith.index_cast %20 : i32 to index
    %c0_29 = arith.constant 0 : index
    %74 = vector.load %arg22[%73, %c0_29] : memref<64x32xf32, #tpu.memory_space<vmem>>, vector<8x32xf32>
    tpu.vector_store %arg22[%73, %c0_29], %70 {strides = array<i32>} : memref<64x32xf32, #tpu.memory_space<vmem>>, vector<8x32xf32>,
    %c1_i32 = arith.constant 1 : i32
    %c8_i32_30 = arith.constant 8 : i32
    %75 = arith.muli %c1_i32, %c8_i32_30 : i32
    %76 = tpu.assume_multiple %75, 8 : i32
    %c7_i32_31 = arith.constant 7 : i32
    %77 = arith.subi %c7_i32_31, %c1_i32 : i32
    %c8_i32_32 = arith.constant 8 : i32
    %78 = arith.muli %77, %c8_i32_32 : i32
    %79 = tpu.assume_multiple %78, 8 : i32
    %80 = arith.index_cast %76 : i32 to index
    %c0_33 = arith.constant 0 : index
    %81 = vector.load %arg19[%80, %c0_33] : memref<64x128xf32, #tpu.memory_space<vmem>>, vector<8x128xf32>
    %cst_34 = arith.constant dense<0.000000e+00> : vector<8x128xf32>
    %82 = tpu.matmul %49, %13, %cst_34 {dimension_numbers = #tpu.dot_dimension_numbers<[1], [0], [0], [1], [0, 0, 1, 1], [], []>} : vector<8x32xf32>, vector<32x128xf32>, vector<8x128xf32> -> vector<8x128xf32>
    %83 = arith.addf %81, %82 : vector<8x128xf32>
    %84 = arith.index_cast %79 : i32 to index
    %c0_35 = arith.constant 0 : index
    %85 = vector.load %arg20[%84, %c0_35] : memref<64x128xf32, #tpu.memory_space<vmem>>, vector<8x128xf32>
    %cst_36 = arith.constant dense<0.000000e+00> : vector<8x128xf32>
    %86 = tpu.matmul %70, %14, %cst_36 {dimension_numbers = #tpu.dot_dimension_numbers<[1], [0], [0], [1], [0, 0, 1, 1], [], []>} : vector<8x32xf32>, vector<32x128xf32>, vector<8x128xf32> -> vector<8x128xf32>
    %87 = arith.addf %85, %86 : vector<8x128xf32>
    %88 = vector.extract_strided_slice %83 {offsets = [0, 0], sizes = [8, 64], strides = [1, 1]} : vector<8x128xf32> to vector<8x64xf32>
    %89 = arith.negf %88 : vector<8x64xf32>
    %90 = math.exp %89 : vector<8x64xf32>
    %cst_37 = arith.constant 1.000000e+00 : f32
    %91 = vector.broadcast %cst_37 : f32 to vector<8x64xf32>
    %92 = arith.addf %91, %90 : vector<8x64xf32>
    %93 = arith.divf %91, %92 : vector<8x64xf32>
    %94 = vector.extract_strided_slice %93 {offsets = [0, 0], sizes = [8, 32], strides = [1, 1]} : vector<8x64xf32> to vector<8x32xf32>
    %95 = vector.extract_strided_slice %93 {offsets = [0, 32], sizes = [8, 32], strides = [1, 1]} : vector<8x64xf32> to vector<8x32xf32>
    %96 = vector.extract_strided_slice %83 {offsets = [0, 64], sizes = [8, 32], strides = [1, 1]} : vector<8x128xf32> to vector<8x32xf32>
    %97 = math.tanh %96 : vector<8x32xf32>
    %98 = vector.extract_strided_slice %83 {offsets = [0, 96], sizes = [8, 32], strides = [1, 1]} : vector<8x128xf32> to vector<8x32xf32>
    %99 = arith.negf %98 : vector<8x32xf32>
    %100 = math.exp %99 : vector<8x32xf32>
    %cst_38 = arith.constant 1.000000e+00 : f32
    %101 = vector.broadcast %cst_38 : f32 to vector<8x32xf32>
    %102 = arith.addf %101, %100 : vector<8x32xf32>
    %103 = arith.divf %101, %102 : vector<8x32xf32>
    %104 = arith.mulf %95, %47 : vector<8x32xf32>
    %105 = arith.mulf %94, %97 : vector<8x32xf32>
    %106 = arith.addf %104, %105 : vector<8x32xf32>
    %107 = math.tanh %106 : vector<8x32xf32>
    %108 = arith.mulf %103, %107 : vector<8x32xf32>
    %109 = vector.extract_strided_slice %87 {offsets = [0, 0], sizes = [8, 64], strides = [1, 1]} : vector<8x128xf32> to vector<8x64xf32>
    %110 = arith.negf %109 : vector<8x64xf32>
    %111 = math.exp %110 : vector<8x64xf32>
    %cst_39 = arith.constant 1.000000e+00 : f32
    %112 = vector.broadcast %cst_39 : f32 to vector<8x64xf32>
    %113 = arith.addf %112, %111 : vector<8x64xf32>
    %114 = arith.divf %112, %113 : vector<8x64xf32>
    %115 = vector.extract_strided_slice %114 {offsets = [0, 0], sizes = [8, 32], strides = [1, 1]} : vector<8x64xf32> to vector<8x32xf32>
    %116 = vector.extract_strided_slice %114 {offsets = [0, 32], sizes = [8, 32], strides = [1, 1]} : vector<8x64xf32> to vector<8x32xf32>
    %117 = vector.extract_strided_slice %87 {offsets = [0, 64], sizes = [8, 32], strides = [1, 1]} : vector<8x128xf32> to vector<8x32xf32>
    %118 = math.tanh %117 : vector<8x32xf32>
    %119 = vector.extract_strided_slice %87 {offsets = [0, 96], sizes = [8, 32], strides = [1, 1]} : vector<8x128xf32> to vector<8x32xf32>
    %120 = arith.negf %119 : vector<8x32xf32>
    %121 = math.exp %120 : vector<8x32xf32>
    %cst_40 = arith.constant 1.000000e+00 : f32
    %122 = vector.broadcast %cst_40 : f32 to vector<8x32xf32>
    %123 = arith.addf %122, %121 : vector<8x32xf32>
    %124 = arith.divf %122, %123 : vector<8x32xf32>
    %125 = arith.mulf %116, %68 : vector<8x32xf32>
    %126 = arith.mulf %115, %118 : vector<8x32xf32>
    %127 = arith.addf %125, %126 : vector<8x32xf32>
    %128 = math.tanh %127 : vector<8x32xf32>
    %129 = arith.mulf %124, %128 : vector<8x32xf32>
    %130 = arith.index_cast %76 : i32 to index
    %c0_41 = arith.constant 0 : index
    %131 = vector.load %arg21[%130, %c0_41] : memref<64x32xf32, #tpu.memory_space<vmem>>, vector<8x32xf32>
    tpu.vector_store %arg21[%130, %c0_41], %108 {strides = array<i32>} : memref<64x32xf32, #tpu.memory_space<vmem>>, vector<8x32xf32>,
    %132 = arith.index_cast %79 : i32 to index
    %c0_42 = arith.constant 0 : index
    %133 = vector.load %arg22[%132, %c0_42] : memref<64x32xf32, #tpu.memory_space<vmem>>, vector<8x32xf32>
    tpu.vector_store %arg22[%132, %c0_42], %129 {strides = array<i32>} : memref<64x32xf32, #tpu.memory_space<vmem>>, vector<8x32xf32>,
    %c2_i32 = arith.constant 2 : i32
    %c8_i32_43 = arith.constant 8 : i32
    %134 = arith.muli %c2_i32, %c8_i32_43 : i32
    %135 = tpu.assume_multiple %134, 8 : i32
    %c7_i32_44 = arith.constant 7 : i32
    %136 = arith.subi %c7_i32_44, %c2_i32 : i32
    %c8_i32_45 = arith.constant 8 : i32
    %137 = arith.muli %136, %c8_i32_45 : i32
    %138 = tpu.assume_multiple %137, 8 : i32
    %139 = arith.index_cast %135 : i32 to index
    %c0_46 = arith.constant 0 : index
    %140 = vector.load %arg19[%139, %c0_46] : memref<64x128xf32, #tpu.memory_space<vmem>>, vector<8x128xf32>
    %cst_47 = arith.constant dense<0.000000e+00> : vector<8x128xf32>
    %141 = tpu.matmul %108, %13, %cst_47 {dimension_numbers = #tpu.dot_dimension_numbers<[1], [0], [0], [1], [0, 0, 1, 1], [], []>} : vector<8x32xf32>, vector<32x128xf32>, vector<8x128xf32> -> vector<8x128xf32>
    %142 = arith.addf %140, %141 : vector<8x128xf32>
    %143 = arith.index_cast %138 : i32 to index
    %c0_48 = arith.constant 0 : index
    %144 = vector.load %arg20[%143, %c0_48] : memref<64x128xf32, #tpu.memory_space<vmem>>, vector<8x128xf32>
    %cst_49 = arith.constant dense<0.000000e+00> : vector<8x128xf32>
    %145 = tpu.matmul %129, %14, %cst_49 {dimension_numbers = #tpu.dot_dimension_numbers<[1], [0], [0], [1], [0, 0, 1, 1], [], []>} : vector<8x32xf32>, vector<32x128xf32>, vector<8x128xf32> -> vector<8x128xf32>
    %146 = arith.addf %144, %145 : vector<8x128xf32>
    %147 = vector.extract_strided_slice %142 {offsets = [0, 0], sizes = [8, 64], strides = [1, 1]} : vector<8x128xf32> to vector<8x64xf32>
    %148 = arith.negf %147 : vector<8x64xf32>
    %149 = math.exp %148 : vector<8x64xf32>
    %cst_50 = arith.constant 1.000000e+00 : f32
    %150 = vector.broadcast %cst_50 : f32 to vector<8x64xf32>
    %151 = arith.addf %150, %149 : vector<8x64xf32>
    %152 = arith.divf %150, %151 : vector<8x64xf32>
    %153 = vector.extract_strided_slice %152 {offsets = [0, 0], sizes = [8, 32], strides = [1, 1]} : vector<8x64xf32> to vector<8x32xf32>
    %154 = vector.extract_strided_slice %152 {offsets = [0, 32], sizes = [8, 32], strides = [1, 1]} : vector<8x64xf32> to vector<8x32xf32>
    %155 = vector.extract_strided_slice %142 {offsets = [0, 64], sizes = [8, 32], strides = [1, 1]} : vector<8x128xf32> to vector<8x32xf32>
    %156 = math.tanh %155 : vector<8x32xf32>
    %157 = vector.extract_strided_slice %142 {offsets = [0, 96], sizes = [8, 32], strides = [1, 1]} : vector<8x128xf32> to vector<8x32xf32>
    %158 = arith.negf %157 : vector<8x32xf32>
    %159 = math.exp %158 : vector<8x32xf32>
    %cst_51 = arith.constant 1.000000e+00 : f32
    %160 = vector.broadcast %cst_51 : f32 to vector<8x32xf32>
    %161 = arith.addf %160, %159 : vector<8x32xf32>
    %162 = arith.divf %160, %161 : vector<8x32xf32>
    %163 = arith.mulf %154, %106 : vector<8x32xf32>
    %164 = arith.mulf %153, %156 : vector<8x32xf32>
    %165 = arith.addf %163, %164 : vector<8x32xf32>
    %166 = math.tanh %165 : vector<8x32xf32>
    %167 = arith.mulf %162, %166 : vector<8x32xf32>
    %168 = vector.extract_strided_slice %146 {offsets = [0, 0], sizes = [8, 64], strides = [1, 1]} : vector<8x128xf32> to vector<8x64xf32>
    %169 = arith.negf %168 : vector<8x64xf32>
    %170 = math.exp %169 : vector<8x64xf32>
    %cst_52 = arith.constant 1.000000e+00 : f32
    %171 = vector.broadcast %cst_52 : f32 to vector<8x64xf32>
    %172 = arith.addf %171, %170 : vector<8x64xf32>
    %173 = arith.divf %171, %172 : vector<8x64xf32>
    %174 = vector.extract_strided_slice %173 {offsets = [0, 0], sizes = [8, 32], strides = [1, 1]} : vector<8x64xf32> to vector<8x32xf32>
    %175 = vector.extract_strided_slice %173 {offsets = [0, 32], sizes = [8, 32], strides = [1, 1]} : vector<8x64xf32> to vector<8x32xf32>
    %176 = vector.extract_strided_slice %146 {offsets = [0, 64], sizes = [8, 32], strides = [1, 1]} : vector<8x128xf32> to vector<8x32xf32>
    %177 = math.tanh %176 : vector<8x32xf32>
    %178 = vector.extract_strided_slice %146 {offsets = [0, 96], sizes = [8, 32], strides = [1, 1]} : vector<8x128xf32> to vector<8x32xf32>
    %179 = arith.negf %178 : vector<8x32xf32>
    %180 = math.exp %179 : vector<8x32xf32>
    %cst_53 = arith.constant 1.000000e+00 : f32
    %181 = vector.broadcast %cst_53 : f32 to vector<8x32xf32>
    %182 = arith.addf %181, %180 : vector<8x32xf32>
    %183 = arith.divf %181, %182 : vector<8x32xf32>
    %184 = arith.mulf %175, %127 : vector<8x32xf32>
    %185 = arith.mulf %174, %177 : vector<8x32xf32>
    %186 = arith.addf %184, %185 : vector<8x32xf32>
    %187 = math.tanh %186 : vector<8x32xf32>
    %188 = arith.mulf %183, %187 : vector<8x32xf32>
    %189 = arith.index_cast %135 : i32 to index
    %c0_54 = arith.constant 0 : index
    %190 = vector.load %arg21[%189, %c0_54] : memref<64x32xf32, #tpu.memory_space<vmem>>, vector<8x32xf32>
    tpu.vector_store %arg21[%189, %c0_54], %167 {strides = array<i32>} : memref<64x32xf32, #tpu.memory_space<vmem>>, vector<8x32xf32>,
    %191 = arith.index_cast %138 : i32 to index
    %c0_55 = arith.constant 0 : index
    %192 = vector.load %arg22[%191, %c0_55] : memref<64x32xf32, #tpu.memory_space<vmem>>, vector<8x32xf32>
    tpu.vector_store %arg22[%191, %c0_55], %188 {strides = array<i32>} : memref<64x32xf32, #tpu.memory_space<vmem>>, vector<8x32xf32>,
    %c3_i32 = arith.constant 3 : i32
    %c8_i32_56 = arith.constant 8 : i32
    %193 = arith.muli %c3_i32, %c8_i32_56 : i32
    %194 = tpu.assume_multiple %193, 8 : i32
    %c7_i32_57 = arith.constant 7 : i32
    %195 = arith.subi %c7_i32_57, %c3_i32 : i32
    %c8_i32_58 = arith.constant 8 : i32
    %196 = arith.muli %195, %c8_i32_58 : i32
    %197 = tpu.assume_multiple %196, 8 : i32
    %198 = arith.index_cast %194 : i32 to index
    %c0_59 = arith.constant 0 : index
    %199 = vector.load %arg19[%198, %c0_59] : memref<64x128xf32, #tpu.memory_space<vmem>>, vector<8x128xf32>
    %cst_60 = arith.constant dense<0.000000e+00> : vector<8x128xf32>
    %200 = tpu.matmul %167, %13, %cst_60 {dimension_numbers = #tpu.dot_dimension_numbers<[1], [0], [0], [1], [0, 0, 1, 1], [], []>} : vector<8x32xf32>, vector<32x128xf32>, vector<8x128xf32> -> vector<8x128xf32>
    %201 = arith.addf %199, %200 : vector<8x128xf32>
    %202 = arith.index_cast %197 : i32 to index
    %c0_61 = arith.constant 0 : index
    %203 = vector.load %arg20[%202, %c0_61] : memref<64x128xf32, #tpu.memory_space<vmem>>, vector<8x128xf32>
    %cst_62 = arith.constant dense<0.000000e+00> : vector<8x128xf32>
    %204 = tpu.matmul %188, %14, %cst_62 {dimension_numbers = #tpu.dot_dimension_numbers<[1], [0], [0], [1], [0, 0, 1, 1], [], []>} : vector<8x32xf32>, vector<32x128xf32>, vector<8x128xf32> -> vector<8x128xf32>
    %205 = arith.addf %203, %204 : vector<8x128xf32>
    %206 = vector.extract_strided_slice %201 {offsets = [0, 0], sizes = [8, 64], strides = [1, 1]} : vector<8x128xf32> to vector<8x64xf32>
    %207 = arith.negf %206 : vector<8x64xf32>
    %208 = math.exp %207 : vector<8x64xf32>
    %cst_63 = arith.constant 1.000000e+00 : f32
    %209 = vector.broadcast %cst_63 : f32 to vector<8x64xf32>
    %210 = arith.addf %209, %208 : vector<8x64xf32>
    %211 = arith.divf %209, %210 : vector<8x64xf32>
    %212 = vector.extract_strided_slice %211 {offsets = [0, 0], sizes = [8, 32], strides = [1, 1]} : vector<8x64xf32> to vector<8x32xf32>
    %213 = vector.extract_strided_slice %211 {offsets = [0, 32], sizes = [8, 32], strides = [1, 1]} : vector<8x64xf32> to vector<8x32xf32>
    %214 = vector.extract_strided_slice %201 {offsets = [0, 64], sizes = [8, 32], strides = [1, 1]} : vector<8x128xf32> to vector<8x32xf32>
    %215 = math.tanh %214 : vector<8x32xf32>
    %216 = vector.extract_strided_slice %201 {offsets = [0, 96], sizes = [8, 32], strides = [1, 1]} : vector<8x128xf32> to vector<8x32xf32>
    %217 = arith.negf %216 : vector<8x32xf32>
    %218 = math.exp %217 : vector<8x32xf32>
    %cst_64 = arith.constant 1.000000e+00 : f32
    %219 = vector.broadcast %cst_64 : f32 to vector<8x32xf32>
    %220 = arith.addf %219, %218 : vector<8x32xf32>
    %221 = arith.divf %219, %220 : vector<8x32xf32>
    %222 = arith.mulf %213, %165 : vector<8x32xf32>
    %223 = arith.mulf %212, %215 : vector<8x32xf32>
    %224 = arith.addf %222, %223 : vector<8x32xf32>
    %225 = math.tanh %224 : vector<8x32xf32>
    %226 = arith.mulf %221, %225 : vector<8x32xf32>
    %227 = vector.extract_strided_slice %205 {offsets = [0, 0], sizes = [8, 64], strides = [1, 1]} : vector<8x128xf32> to vector<8x64xf32>
    %228 = arith.negf %227 : vector<8x64xf32>
    %229 = math.exp %228 : vector<8x64xf32>
    %cst_65 = arith.constant 1.000000e+00 : f32
    %230 = vector.broadcast %cst_65 : f32 to vector<8x64xf32>
    %231 = arith.addf %230, %229 : vector<8x64xf32>
    %232 = arith.divf %230, %231 : vector<8x64xf32>
    %233 = vector.extract_strided_slice %232 {offsets = [0, 0], sizes = [8, 32], strides = [1, 1]} : vector<8x64xf32> to vector<8x32xf32>
    %234 = vector.extract_strided_slice %232 {offsets = [0, 32], sizes = [8, 32], strides = [1, 1]} : vector<8x64xf32> to vector<8x32xf32>
    %235 = vector.extract_strided_slice %205 {offsets = [0, 64], sizes = [8, 32], strides = [1, 1]} : vector<8x128xf32> to vector<8x32xf32>
    %236 = math.tanh %235 : vector<8x32xf32>
    %237 = vector.extract_strided_slice %205 {offsets = [0, 96], sizes = [8, 32], strides = [1, 1]} : vector<8x128xf32> to vector<8x32xf32>
    %238 = arith.negf %237 : vector<8x32xf32>
    %239 = math.exp %238 : vector<8x32xf32>
    %cst_66 = arith.constant 1.000000e+00 : f32
    %240 = vector.broadcast %cst_66 : f32 to vector<8x32xf32>
    %241 = arith.addf %240, %239 : vector<8x32xf32>
    %242 = arith.divf %240, %241 : vector<8x32xf32>
    %243 = arith.mulf %234, %186 : vector<8x32xf32>
    %244 = arith.mulf %233, %236 : vector<8x32xf32>
    %245 = arith.addf %243, %244 : vector<8x32xf32>
    %246 = math.tanh %245 : vector<8x32xf32>
    %247 = arith.mulf %242, %246 : vector<8x32xf32>
    %248 = arith.index_cast %194 : i32 to index
    %c0_67 = arith.constant 0 : index
    %249 = vector.load %arg21[%248, %c0_67] : memref<64x32xf32, #tpu.memory_space<vmem>>, vector<8x32xf32>
    tpu.vector_store %arg21[%248, %c0_67], %226 {strides = array<i32>} : memref<64x32xf32, #tpu.memory_space<vmem>>, vector<8x32xf32>,
    %250 = arith.index_cast %197 : i32 to index
    %c0_68 = arith.constant 0 : index
    %251 = vector.load %arg22[%250, %c0_68] : memref<64x32xf32, #tpu.memory_space<vmem>>, vector<8x32xf32>
    tpu.vector_store %arg22[%250, %c0_68], %247 {strides = array<i32>} : memref<64x32xf32, #tpu.memory_space<vmem>>, vector<8x32xf32>,
    %c4_i32 = arith.constant 4 : i32
    %c8_i32_69 = arith.constant 8 : i32
    %252 = arith.muli %c4_i32, %c8_i32_69 : i32
    %253 = tpu.assume_multiple %252, 8 : i32
    %c7_i32_70 = arith.constant 7 : i32
    %254 = arith.subi %c7_i32_70, %c4_i32 : i32
    %c8_i32_71 = arith.constant 8 : i32
    %255 = arith.muli %254, %c8_i32_71 : i32
    %256 = tpu.assume_multiple %255, 8 : i32
    %257 = arith.index_cast %253 : i32 to index
    %c0_72 = arith.constant 0 : index
    %258 = vector.load %arg19[%257, %c0_72] : memref<64x128xf32, #tpu.memory_space<vmem>>, vector<8x128xf32>
    %cst_73 = arith.constant dense<0.000000e+00> : vector<8x128xf32>
    %259 = tpu.matmul %226, %13, %cst_73 {dimension_numbers = #tpu.dot_dimension_numbers<[1], [0], [0], [1], [0, 0, 1, 1], [], []>} : vector<8x32xf32>, vector<32x128xf32>, vector<8x128xf32> -> vector<8x128xf32>
    %260 = arith.addf %258, %259 : vector<8x128xf32>
    %261 = arith.index_cast %256 : i32 to index
    %c0_74 = arith.constant 0 : index
    %262 = vector.load %arg20[%261, %c0_74] : memref<64x128xf32, #tpu.memory_space<vmem>>, vector<8x128xf32>
    %cst_75 = arith.constant dense<0.000000e+00> : vector<8x128xf32>
    %263 = tpu.matmul %247, %14, %cst_75 {dimension_numbers = #tpu.dot_dimension_numbers<[1], [0], [0], [1], [0, 0, 1, 1], [], []>} : vector<8x32xf32>, vector<32x128xf32>, vector<8x128xf32> -> vector<8x128xf32>
    %264 = arith.addf %262, %263 : vector<8x128xf32>
    %265 = vector.extract_strided_slice %260 {offsets = [0, 0], sizes = [8, 64], strides = [1, 1]} : vector<8x128xf32> to vector<8x64xf32>
    %266 = arith.negf %265 : vector<8x64xf32>
    %267 = math.exp %266 : vector<8x64xf32>
    %cst_76 = arith.constant 1.000000e+00 : f32
    %268 = vector.broadcast %cst_76 : f32 to vector<8x64xf32>
    %269 = arith.addf %268, %267 : vector<8x64xf32>
    %270 = arith.divf %268, %269 : vector<8x64xf32>
    %271 = vector.extract_strided_slice %270 {offsets = [0, 0], sizes = [8, 32], strides = [1, 1]} : vector<8x64xf32> to vector<8x32xf32>
    %272 = vector.extract_strided_slice %270 {offsets = [0, 32], sizes = [8, 32], strides = [1, 1]} : vector<8x64xf32> to vector<8x32xf32>
    %273 = vector.extract_strided_slice %260 {offsets = [0, 64], sizes = [8, 32], strides = [1, 1]} : vector<8x128xf32> to vector<8x32xf32>
    %274 = math.tanh %273 : vector<8x32xf32>
    %275 = vector.extract_strided_slice %260 {offsets = [0, 96], sizes = [8, 32], strides = [1, 1]} : vector<8x128xf32> to vector<8x32xf32>
    %276 = arith.negf %275 : vector<8x32xf32>
    %277 = math.exp %276 : vector<8x32xf32>
    %cst_77 = arith.constant 1.000000e+00 : f32
    %278 = vector.broadcast %cst_77 : f32 to vector<8x32xf32>
    %279 = arith.addf %278, %277 : vector<8x32xf32>
    %280 = arith.divf %278, %279 : vector<8x32xf32>
    %281 = arith.mulf %272, %224 : vector<8x32xf32>
    %282 = arith.mulf %271, %274 : vector<8x32xf32>
    %283 = arith.addf %281, %282 : vector<8x32xf32>
    %284 = math.tanh %283 : vector<8x32xf32>
    %285 = arith.mulf %280, %284 : vector<8x32xf32>
    %286 = vector.extract_strided_slice %264 {offsets = [0, 0], sizes = [8, 64], strides = [1, 1]} : vector<8x128xf32> to vector<8x64xf32>
    %287 = arith.negf %286 : vector<8x64xf32>
    %288 = math.exp %287 : vector<8x64xf32>
    %cst_78 = arith.constant 1.000000e+00 : f32
    %289 = vector.broadcast %cst_78 : f32 to vector<8x64xf32>
    %290 = arith.addf %289, %288 : vector<8x64xf32>
    %291 = arith.divf %289, %290 : vector<8x64xf32>
    %292 = vector.extract_strided_slice %291 {offsets = [0, 0], sizes = [8, 32], strides = [1, 1]} : vector<8x64xf32> to vector<8x32xf32>
    %293 = vector.extract_strided_slice %291 {offsets = [0, 32], sizes = [8, 32], strides = [1, 1]} : vector<8x64xf32> to vector<8x32xf32>
    %294 = vector.extract_strided_slice %264 {offsets = [0, 64], sizes = [8, 32], strides = [1, 1]} : vector<8x128xf32> to vector<8x32xf32>
    %295 = math.tanh %294 : vector<8x32xf32>
    %296 = vector.extract_strided_slice %264 {offsets = [0, 96], sizes = [8, 32], strides = [1, 1]} : vector<8x128xf32> to vector<8x32xf32>
    %297 = arith.negf %296 : vector<8x32xf32>
    %298 = math.exp %297 : vector<8x32xf32>
    %cst_79 = arith.constant 1.000000e+00 : f32
    %299 = vector.broadcast %cst_79 : f32 to vector<8x32xf32>
    %300 = arith.addf %299, %298 : vector<8x32xf32>
    %301 = arith.divf %299, %300 : vector<8x32xf32>
    %302 = arith.mulf %293, %245 : vector<8x32xf32>
    %303 = arith.mulf %292, %295 : vector<8x32xf32>
    %304 = arith.addf %302, %303 : vector<8x32xf32>
    %305 = math.tanh %304 : vector<8x32xf32>
    %306 = arith.mulf %301, %305 : vector<8x32xf32>
    %307 = arith.index_cast %253 : i32 to index
    %c0_80 = arith.constant 0 : index
    %308 = vector.load %arg21[%307, %c0_80] : memref<64x32xf32, #tpu.memory_space<vmem>>, vector<8x32xf32>
    tpu.vector_store %arg21[%307, %c0_80], %285 {strides = array<i32>} : memref<64x32xf32, #tpu.memory_space<vmem>>, vector<8x32xf32>,
    %309 = arith.index_cast %256 : i32 to index
    %c0_81 = arith.constant 0 : index
    %310 = vector.load %arg22[%309, %c0_81] : memref<64x32xf32, #tpu.memory_space<vmem>>, vector<8x32xf32>
    tpu.vector_store %arg22[%309, %c0_81], %306 {strides = array<i32>} : memref<64x32xf32, #tpu.memory_space<vmem>>, vector<8x32xf32>,
    %c5_i32 = arith.constant 5 : i32
    %c8_i32_82 = arith.constant 8 : i32
    %311 = arith.muli %c5_i32, %c8_i32_82 : i32
    %312 = tpu.assume_multiple %311, 8 : i32
    %c7_i32_83 = arith.constant 7 : i32
    %313 = arith.subi %c7_i32_83, %c5_i32 : i32
    %c8_i32_84 = arith.constant 8 : i32
    %314 = arith.muli %313, %c8_i32_84 : i32
    %315 = tpu.assume_multiple %314, 8 : i32
    %316 = arith.index_cast %312 : i32 to index
    %c0_85 = arith.constant 0 : index
    %317 = vector.load %arg19[%316, %c0_85] : memref<64x128xf32, #tpu.memory_space<vmem>>, vector<8x128xf32>
    %cst_86 = arith.constant dense<0.000000e+00> : vector<8x128xf32>
    %318 = tpu.matmul %285, %13, %cst_86 {dimension_numbers = #tpu.dot_dimension_numbers<[1], [0], [0], [1], [0, 0, 1, 1], [], []>} : vector<8x32xf32>, vector<32x128xf32>, vector<8x128xf32> -> vector<8x128xf32>
    %319 = arith.addf %317, %318 : vector<8x128xf32>
    %320 = arith.index_cast %315 : i32 to index
    %c0_87 = arith.constant 0 : index
    %321 = vector.load %arg20[%320, %c0_87] : memref<64x128xf32, #tpu.memory_space<vmem>>, vector<8x128xf32>
    %cst_88 = arith.constant dense<0.000000e+00> : vector<8x128xf32>
    %322 = tpu.matmul %306, %14, %cst_88 {dimension_numbers = #tpu.dot_dimension_numbers<[1], [0], [0], [1], [0, 0, 1, 1], [], []>} : vector<8x32xf32>, vector<32x128xf32>, vector<8x128xf32> -> vector<8x128xf32>
    %323 = arith.addf %321, %322 : vector<8x128xf32>
    %324 = vector.extract_strided_slice %319 {offsets = [0, 0], sizes = [8, 64], strides = [1, 1]} : vector<8x128xf32> to vector<8x64xf32>
    %325 = arith.negf %324 : vector<8x64xf32>
    %326 = math.exp %325 : vector<8x64xf32>
    %cst_89 = arith.constant 1.000000e+00 : f32
    %327 = vector.broadcast %cst_89 : f32 to vector<8x64xf32>
    %328 = arith.addf %327, %326 : vector<8x64xf32>
    %329 = arith.divf %327, %328 : vector<8x64xf32>
    %330 = vector.extract_strided_slice %329 {offsets = [0, 0], sizes = [8, 32], strides = [1, 1]} : vector<8x64xf32> to vector<8x32xf32>
    %331 = vector.extract_strided_slice %329 {offsets = [0, 32], sizes = [8, 32], strides = [1, 1]} : vector<8x64xf32> to vector<8x32xf32>
    %332 = vector.extract_strided_slice %319 {offsets = [0, 64], sizes = [8, 32], strides = [1, 1]} : vector<8x128xf32> to vector<8x32xf32>
    %333 = math.tanh %332 : vector<8x32xf32>
    %334 = vector.extract_strided_slice %319 {offsets = [0, 96], sizes = [8, 32], strides = [1, 1]} : vector<8x128xf32> to vector<8x32xf32>
    %335 = arith.negf %334 : vector<8x32xf32>
    %336 = math.exp %335 : vector<8x32xf32>
    %cst_90 = arith.constant 1.000000e+00 : f32
    %337 = vector.broadcast %cst_90 : f32 to vector<8x32xf32>
    %338 = arith.addf %337, %336 : vector<8x32xf32>
    %339 = arith.divf %337, %338 : vector<8x32xf32>
    %340 = arith.mulf %331, %283 : vector<8x32xf32>
    %341 = arith.mulf %330, %333 : vector<8x32xf32>
    %342 = arith.addf %340, %341 : vector<8x32xf32>
    %343 = math.tanh %342 : vector<8x32xf32>
    %344 = arith.mulf %339, %343 : vector<8x32xf32>
    %345 = vector.extract_strided_slice %323 {offsets = [0, 0], sizes = [8, 64], strides = [1, 1]} : vector<8x128xf32> to vector<8x64xf32>
    %346 = arith.negf %345 : vector<8x64xf32>
    %347 = math.exp %346 : vector<8x64xf32>
    %cst_91 = arith.constant 1.000000e+00 : f32
    %348 = vector.broadcast %cst_91 : f32 to vector<8x64xf32>
    %349 = arith.addf %348, %347 : vector<8x64xf32>
    %350 = arith.divf %348, %349 : vector<8x64xf32>
    %351 = vector.extract_strided_slice %350 {offsets = [0, 0], sizes = [8, 32], strides = [1, 1]} : vector<8x64xf32> to vector<8x32xf32>
    %352 = vector.extract_strided_slice %350 {offsets = [0, 32], sizes = [8, 32], strides = [1, 1]} : vector<8x64xf32> to vector<8x32xf32>
    %353 = vector.extract_strided_slice %323 {offsets = [0, 64], sizes = [8, 32], strides = [1, 1]} : vector<8x128xf32> to vector<8x32xf32>
    %354 = math.tanh %353 : vector<8x32xf32>
    %355 = vector.extract_strided_slice %323 {offsets = [0, 96], sizes = [8, 32], strides = [1, 1]} : vector<8x128xf32> to vector<8x32xf32>
    %356 = arith.negf %355 : vector<8x32xf32>
    %357 = math.exp %356 : vector<8x32xf32>
    %cst_92 = arith.constant 1.000000e+00 : f32
    %358 = vector.broadcast %cst_92 : f32 to vector<8x32xf32>
    %359 = arith.addf %358, %357 : vector<8x32xf32>
    %360 = arith.divf %358, %359 : vector<8x32xf32>
    %361 = arith.mulf %352, %304 : vector<8x32xf32>
    %362 = arith.mulf %351, %354 : vector<8x32xf32>
    %363 = arith.addf %361, %362 : vector<8x32xf32>
    %364 = math.tanh %363 : vector<8x32xf32>
    %365 = arith.mulf %360, %364 : vector<8x32xf32>
    %366 = arith.index_cast %312 : i32 to index
    %c0_93 = arith.constant 0 : index
    %367 = vector.load %arg21[%366, %c0_93] : memref<64x32xf32, #tpu.memory_space<vmem>>, vector<8x32xf32>
    tpu.vector_store %arg21[%366, %c0_93], %344 {strides = array<i32>} : memref<64x32xf32, #tpu.memory_space<vmem>>, vector<8x32xf32>,
    %368 = arith.index_cast %315 : i32 to index
    %c0_94 = arith.constant 0 : index
    %369 = vector.load %arg22[%368, %c0_94] : memref<64x32xf32, #tpu.memory_space<vmem>>, vector<8x32xf32>
    tpu.vector_store %arg22[%368, %c0_94], %365 {strides = array<i32>} : memref<64x32xf32, #tpu.memory_space<vmem>>, vector<8x32xf32>,
    %c6_i32 = arith.constant 6 : i32
    %c8_i32_95 = arith.constant 8 : i32
    %370 = arith.muli %c6_i32, %c8_i32_95 : i32
    %371 = tpu.assume_multiple %370, 8 : i32
    %c7_i32_96 = arith.constant 7 : i32
    %372 = arith.subi %c7_i32_96, %c6_i32 : i32
    %c8_i32_97 = arith.constant 8 : i32
    %373 = arith.muli %372, %c8_i32_97 : i32
    %374 = tpu.assume_multiple %373, 8 : i32
    %375 = arith.index_cast %371 : i32 to index
    %c0_98 = arith.constant 0 : index
    %376 = vector.load %arg19[%375, %c0_98] : memref<64x128xf32, #tpu.memory_space<vmem>>, vector<8x128xf32>
    %cst_99 = arith.constant dense<0.000000e+00> : vector<8x128xf32>
    %377 = tpu.matmul %344, %13, %cst_99 {dimension_numbers = #tpu.dot_dimension_numbers<[1], [0], [0], [1], [0, 0, 1, 1], [], []>} : vector<8x32xf32>, vector<32x128xf32>, vector<8x128xf32> -> vector<8x128xf32>
    %378 = arith.addf %376, %377 : vector<8x128xf32>
    %379 = arith.index_cast %374 : i32 to index
    %c0_100 = arith.constant 0 : index
    %380 = vector.load %arg20[%379, %c0_100] : memref<64x128xf32, #tpu.memory_space<vmem>>, vector<8x128xf32>
    %cst_101 = arith.constant dense<0.000000e+00> : vector<8x128xf32>
    %381 = tpu.matmul %365, %14, %cst_101 {dimension_numbers = #tpu.dot_dimension_numbers<[1], [0], [0], [1], [0, 0, 1, 1], [], []>} : vector<8x32xf32>, vector<32x128xf32>, vector<8x128xf32> -> vector<8x128xf32>
    %382 = arith.addf %380, %381 : vector<8x128xf32>
    %383 = vector.extract_strided_slice %378 {offsets = [0, 0], sizes = [8, 64], strides = [1, 1]} : vector<8x128xf32> to vector<8x64xf32>
    %384 = arith.negf %383 : vector<8x64xf32>
    %385 = math.exp %384 : vector<8x64xf32>
    %cst_102 = arith.constant 1.000000e+00 : f32
    %386 = vector.broadcast %cst_102 : f32 to vector<8x64xf32>
    %387 = arith.addf %386, %385 : vector<8x64xf32>
    %388 = arith.divf %386, %387 : vector<8x64xf32>
    %389 = vector.extract_strided_slice %388 {offsets = [0, 0], sizes = [8, 32], strides = [1, 1]} : vector<8x64xf32> to vector<8x32xf32>
    %390 = vector.extract_strided_slice %388 {offsets = [0, 32], sizes = [8, 32], strides = [1, 1]} : vector<8x64xf32> to vector<8x32xf32>
    %391 = vector.extract_strided_slice %378 {offsets = [0, 64], sizes = [8, 32], strides = [1, 1]} : vector<8x128xf32> to vector<8x32xf32>
    %392 = math.tanh %391 : vector<8x32xf32>
    %393 = vector.extract_strided_slice %378 {offsets = [0, 96], sizes = [8, 32], strides = [1, 1]} : vector<8x128xf32> to vector<8x32xf32>
    %394 = arith.negf %393 : vector<8x32xf32>
    %395 = math.exp %394 : vector<8x32xf32>
    %cst_103 = arith.constant 1.000000e+00 : f32
    %396 = vector.broadcast %cst_103 : f32 to vector<8x32xf32>
    %397 = arith.addf %396, %395 : vector<8x32xf32>
    %398 = arith.divf %396, %397 : vector<8x32xf32>
    %399 = arith.mulf %390, %342 : vector<8x32xf32>
    %400 = arith.mulf %389, %392 : vector<8x32xf32>
    %401 = arith.addf %399, %400 : vector<8x32xf32>
    %402 = math.tanh %401 : vector<8x32xf32>
    %403 = arith.mulf %398, %402 : vector<8x32xf32>
    %404 = vector.extract_strided_slice %382 {offsets = [0, 0], sizes = [8, 64], strides = [1, 1]} : vector<8x128xf32> to vector<8x64xf32>
    %405 = arith.negf %404 : vector<8x64xf32>
    %406 = math.exp %405 : vector<8x64xf32>
    %cst_104 = arith.constant 1.000000e+00 : f32
    %407 = vector.broadcast %cst_104 : f32 to vector<8x64xf32>
    %408 = arith.addf %407, %406 : vector<8x64xf32>
    %409 = arith.divf %407, %408 : vector<8x64xf32>
    %410 = vector.extract_strided_slice %409 {offsets = [0, 0], sizes = [8, 32], strides = [1, 1]} : vector<8x64xf32> to vector<8x32xf32>
    %411 = vector.extract_strided_slice %409 {offsets = [0, 32], sizes = [8, 32], strides = [1, 1]} : vector<8x64xf32> to vector<8x32xf32>
    %412 = vector.extract_strided_slice %382 {offsets = [0, 64], sizes = [8, 32], strides = [1, 1]} : vector<8x128xf32> to vector<8x32xf32>
    %413 = math.tanh %412 : vector<8x32xf32>
    %414 = vector.extract_strided_slice %382 {offsets = [0, 96], sizes = [8, 32], strides = [1, 1]} : vector<8x128xf32> to vector<8x32xf32>
    %415 = arith.negf %414 : vector<8x32xf32>
    %416 = math.exp %415 : vector<8x32xf32>
    %cst_105 = arith.constant 1.000000e+00 : f32
    %417 = vector.broadcast %cst_105 : f32 to vector<8x32xf32>
    %418 = arith.addf %417, %416 : vector<8x32xf32>
    %419 = arith.divf %417, %418 : vector<8x32xf32>
    %420 = arith.mulf %411, %363 : vector<8x32xf32>
    %421 = arith.mulf %410, %413 : vector<8x32xf32>
    %422 = arith.addf %420, %421 : vector<8x32xf32>
    %423 = math.tanh %422 : vector<8x32xf32>
    %424 = arith.mulf %419, %423 : vector<8x32xf32>
    %425 = arith.index_cast %371 : i32 to index
    %c0_106 = arith.constant 0 : index
    %426 = vector.load %arg21[%425, %c0_106] : memref<64x32xf32, #tpu.memory_space<vmem>>, vector<8x32xf32>
    tpu.vector_store %arg21[%425, %c0_106], %403 {strides = array<i32>} : memref<64x32xf32, #tpu.memory_space<vmem>>, vector<8x32xf32>,
    %427 = arith.index_cast %374 : i32 to index
    %c0_107 = arith.constant 0 : index
    %428 = vector.load %arg22[%427, %c0_107] : memref<64x32xf32, #tpu.memory_space<vmem>>, vector<8x32xf32>
    tpu.vector_store %arg22[%427, %c0_107], %424 {strides = array<i32>} : memref<64x32xf32, #tpu.memory_space<vmem>>, vector<8x32xf32>,
    %c7_i32_108 = arith.constant 7 : i32
    %c8_i32_109 = arith.constant 8 : i32
    %429 = arith.muli %c7_i32_108, %c8_i32_109 : i32
    %430 = tpu.assume_multiple %429, 8 : i32
    %c7_i32_110 = arith.constant 7 : i32
    %431 = arith.subi %c7_i32_110, %c7_i32_108 : i32
    %c8_i32_111 = arith.constant 8 : i32
    %432 = arith.muli %431, %c8_i32_111 : i32
    %433 = tpu.assume_multiple %432, 8 : i32
    %434 = arith.index_cast %430 : i32 to index
    %c0_112 = arith.constant 0 : index
    %435 = vector.load %arg19[%434, %c0_112] : memref<64x128xf32, #tpu.memory_space<vmem>>, vector<8x128xf32>
    %cst_113 = arith.constant dense<0.000000e+00> : vector<8x128xf32>
    %436 = tpu.matmul %403, %13, %cst_113 {dimension_numbers = #tpu.dot_dimension_numbers<[1], [0], [0], [1], [0, 0, 1, 1], [], []>} : vector<8x32xf32>, vector<32x128xf32>, vector<8x128xf32> -> vector<8x128xf32>
    %437 = arith.addf %435, %436 : vector<8x128xf32>
    %438 = arith.index_cast %433 : i32 to index
    %c0_114 = arith.constant 0 : index
    %439 = vector.load %arg20[%438, %c0_114] : memref<64x128xf32, #tpu.memory_space<vmem>>, vector<8x128xf32>
    %cst_115 = arith.constant dense<0.000000e+00> : vector<8x128xf32>
    %440 = tpu.matmul %424, %14, %cst_115 {dimension_numbers = #tpu.dot_dimension_numbers<[1], [0], [0], [1], [0, 0, 1, 1], [], []>} : vector<8x32xf32>, vector<32x128xf32>, vector<8x128xf32> -> vector<8x128xf32>
    %441 = arith.addf %439, %440 : vector<8x128xf32>
    %442 = vector.extract_strided_slice %437 {offsets = [0, 0], sizes = [8, 64], strides = [1, 1]} : vector<8x128xf32> to vector<8x64xf32>
    %443 = arith.negf %442 : vector<8x64xf32>
    %444 = math.exp %443 : vector<8x64xf32>
    %cst_116 = arith.constant 1.000000e+00 : f32
    %445 = vector.broadcast %cst_116 : f32 to vector<8x64xf32>
    %446 = arith.addf %445, %444 : vector<8x64xf32>
    %447 = arith.divf %445, %446 : vector<8x64xf32>
    %448 = vector.extract_strided_slice %447 {offsets = [0, 0], sizes = [8, 32], strides = [1, 1]} : vector<8x64xf32> to vector<8x32xf32>
    %449 = vector.extract_strided_slice %447 {offsets = [0, 32], sizes = [8, 32], strides = [1, 1]} : vector<8x64xf32> to vector<8x32xf32>
    %450 = vector.extract_strided_slice %437 {offsets = [0, 64], sizes = [8, 32], strides = [1, 1]} : vector<8x128xf32> to vector<8x32xf32>
    %451 = math.tanh %450 : vector<8x32xf32>
    %452 = vector.extract_strided_slice %437 {offsets = [0, 96], sizes = [8, 32], strides = [1, 1]} : vector<8x128xf32> to vector<8x32xf32>
    %453 = arith.negf %452 : vector<8x32xf32>
    %454 = math.exp %453 : vector<8x32xf32>
    %cst_117 = arith.constant 1.000000e+00 : f32
    %455 = vector.broadcast %cst_117 : f32 to vector<8x32xf32>
    %456 = arith.addf %455, %454 : vector<8x32xf32>
    %457 = arith.divf %455, %456 : vector<8x32xf32>
    %458 = arith.mulf %449, %401 : vector<8x32xf32>
    %459 = arith.mulf %448, %451 : vector<8x32xf32>
    %460 = arith.addf %458, %459 : vector<8x32xf32>
    %461 = math.tanh %460 : vector<8x32xf32>
    %462 = arith.mulf %457, %461 : vector<8x32xf32>
    %463 = vector.extract_strided_slice %441 {offsets = [0, 0], sizes = [8, 64], strides = [1, 1]} : vector<8x128xf32> to vector<8x64xf32>
    %464 = arith.negf %463 : vector<8x64xf32>
    %465 = math.exp %464 : vector<8x64xf32>
    %cst_118 = arith.constant 1.000000e+00 : f32
    %466 = vector.broadcast %cst_118 : f32 to vector<8x64xf32>
    %467 = arith.addf %466, %465 : vector<8x64xf32>
    %468 = arith.divf %466, %467 : vector<8x64xf32>
    %469 = vector.extract_strided_slice %468 {offsets = [0, 0], sizes = [8, 32], strides = [1, 1]} : vector<8x64xf32> to vector<8x32xf32>
    %470 = vector.extract_strided_slice %468 {offsets = [0, 32], sizes = [8, 32], strides = [1, 1]} : vector<8x64xf32> to vector<8x32xf32>
    %471 = vector.extract_strided_slice %441 {offsets = [0, 64], sizes = [8, 32], strides = [1, 1]} : vector<8x128xf32> to vector<8x32xf32>
    %472 = math.tanh %471 : vector<8x32xf32>
    %473 = vector.extract_strided_slice %441 {offsets = [0, 96], sizes = [8, 32], strides = [1, 1]} : vector<8x128xf32> to vector<8x32xf32>
    %474 = arith.negf %473 : vector<8x32xf32>
    %475 = math.exp %474 : vector<8x32xf32>
    %cst_119 = arith.constant 1.000000e+00 : f32
    %476 = vector.broadcast %cst_119 : f32 to vector<8x32xf32>
    %477 = arith.addf %476, %475 : vector<8x32xf32>
    %478 = arith.divf %476, %477 : vector<8x32xf32>
    %479 = arith.mulf %470, %422 : vector<8x32xf32>
    %480 = arith.mulf %469, %472 : vector<8x32xf32>
    %481 = arith.addf %479, %480 : vector<8x32xf32>
    %482 = math.tanh %481 : vector<8x32xf32>
    %483 = arith.mulf %478, %482 : vector<8x32xf32>
    %484 = arith.index_cast %430 : i32 to index
    %c0_120 = arith.constant 0 : index
    %485 = vector.load %arg21[%484, %c0_120] : memref<64x32xf32, #tpu.memory_space<vmem>>, vector<8x32xf32>
    tpu.vector_store %arg21[%484, %c0_120], %462 {strides = array<i32>} : memref<64x32xf32, #tpu.memory_space<vmem>>, vector<8x32xf32>,
    %486 = arith.index_cast %433 : i32 to index
    %c0_121 = arith.constant 0 : index
    %487 = vector.load %arg22[%486, %c0_121] : memref<64x32xf32, #tpu.memory_space<vmem>>, vector<8x32xf32>
    tpu.vector_store %arg22[%486, %c0_121], %483 {strides = array<i32>} : memref<64x32xf32, #tpu.memory_space<vmem>>, vector<8x32xf32>,
    %c8_i32_122 = arith.constant 8 : i32
    %c0_123 = arith.constant 0 : index
    %c0_124 = arith.constant 0 : index
    %488 = vector.load %arg21[%c0_123, %c0_124] : memref<64x32xf32, #tpu.memory_space<vmem>>, vector<64x32xf32>
    %489 = arith.truncf %488 : vector<64x32xf32> to vector<64x32xbf16>
    %c0_125 = arith.constant 0 : index
    %c0_126 = arith.constant 0 : index
    %490 = vector.load %arg22[%c0_125, %c0_126] : memref<64x32xf32, #tpu.memory_space<vmem>>, vector<64x32xf32>
    %491 = arith.truncf %490 : vector<64x32xf32> to vector<64x32xbf16>
    %c0_127 = arith.constant 0 : index
    %c0_128 = arith.constant 0 : index
    %492 = vector.load %arg8[%c0_127, %c0_128] : memref<64x128xbf16, #tpu.memory_space<vmem>>, vector<64x128xbf16>
    %c0_129 = arith.constant 0 : index
    %c0_130 = arith.constant 0 : index
    %493 = vector.load %arg9[%c0_129, %c0_130] : memref<64x128xbf16, #tpu.memory_space<vmem>>, vector<64x128xbf16>
    %494 = vector.extract_strided_slice %492 {offsets = [0, 0], sizes = [32, 128], strides = [1, 1]} : vector<64x128xbf16> to vector<32x128xbf16>
    %cst_131 = arith.constant dense<0.000000e+00> : vector<64x128xf32>
    %495 = tpu.matmul %489, %494, %cst_131 {dimension_numbers = #tpu.dot_dimension_numbers<[1], [0], [0], [1], [0, 0, 1, 1], [], []>} : vector<64x32xbf16>, vector<32x128xbf16>, vector<64x128xf32> -> vector<64x128xf32>
    %496 = vector.extract_strided_slice %492 {offsets = [32, 0], sizes = [32, 128], strides = [1, 1]} : vector<64x128xbf16> to vector<32x128xbf16>
    %cst_132 = arith.constant dense<0.000000e+00> : vector<64x128xf32>
    %497 = tpu.matmul %491, %496, %cst_132 {dimension_numbers = #tpu.dot_dimension_numbers<[1], [0], [0], [1], [0, 0, 1, 1], [], []>} : vector<64x32xbf16>, vector<32x128xbf16>, vector<64x128xf32> -> vector<64x128xf32>
    %498 = arith.addf %495, %497 : vector<64x128xf32>
    %c0_133 = arith.constant 0 : index
    %c0_134 = arith.constant 0 : index
    %499 = vector.load %arg10[%c0_133, %c0_134] : memref<1x128xf32, #tpu.memory_space<vmem>>, vector<1x128xf32>
    %500 = vector.broadcast %499 : vector<1x128xf32> to vector<64x128xf32>
    %501 = arith.addf %498, %500 : vector<64x128xf32>
    %c0_135 = arith.constant 0 : index
    %c0_136 = arith.constant 0 : index
    %502 = vector.load %arg19[%c0_135, %c0_136] : memref<64x128xf32, #tpu.memory_space<vmem>>, vector<64x128xf32>
    tpu.vector_store %arg19[%c0_135, %c0_136], %501 {strides = array<i32>} : memref<64x128xf32, #tpu.memory_space<vmem>>, vector<64x128xf32>,
    %503 = vector.extract_strided_slice %493 {offsets = [0, 0], sizes = [32, 128], strides = [1, 1]} : vector<64x128xbf16> to vector<32x128xbf16>
    %cst_137 = arith.constant dense<0.000000e+00> : vector<64x128xf32>
    %504 = tpu.matmul %489, %503, %cst_137 {dimension_numbers = #tpu.dot_dimension_numbers<[1], [0], [0], [1], [0, 0, 1, 1], [], []>} : vector<64x32xbf16>, vector<32x128xbf16>, vector<64x128xf32> -> vector<64x128xf32>
    %505 = vector.extract_strided_slice %493 {offsets = [32, 0], sizes = [32, 128], strides = [1, 1]} : vector<64x128xbf16> to vector<32x128xbf16>
    %cst_138 = arith.constant dense<0.000000e+00> : vector<64x128xf32>
    %506 = tpu.matmul %491, %505, %cst_138 {dimension_numbers = #tpu.dot_dimension_numbers<[1], [0], [0], [1], [0, 0, 1, 1], [], []>} : vector<64x32xbf16>, vector<32x128xbf16>, vector<64x128xf32> -> vector<64x128xf32>
    %507 = arith.addf %504, %506 : vector<64x128xf32>
    %c0_139 = arith.constant 0 : index
    %c0_140 = arith.constant 0 : index
    %508 = vector.load %arg11[%c0_139, %c0_140] : memref<1x128xf32, #tpu.memory_space<vmem>>, vector<1x128xf32>
    %509 = vector.broadcast %508 : vector<1x128xf32> to vector<64x128xf32>
    %510 = arith.addf %507, %509 : vector<64x128xf32>
    %c0_141 = arith.constant 0 : index
    %c0_142 = arith.constant 0 : index
    %511 = vector.load %arg20[%c0_141, %c0_142] : memref<64x128xf32, #tpu.memory_space<vmem>>, vector<64x128xf32>
    tpu.vector_store %arg20[%c0_141, %c0_142], %510 {strides = array<i32>} : memref<64x128xf32, #tpu.memory_space<vmem>>, vector<64x128xf32>,
    %c0_143 = arith.constant 0 : index
    %c0_144 = arith.constant 0 : index
    %512 = vector.load %arg12[%c0_143, %c0_144] : memref<32x128xf32, #tpu.memory_space<vmem>>, vector<32x128xf32>
    %c0_145 = arith.constant 0 : index
    %c0_146 = arith.constant 0 : index
    %513 = vector.load %arg13[%c0_145, %c0_146] : memref<32x128xf32, #tpu.memory_space<vmem>>, vector<32x128xf32>
    %cst_147 = arith.constant 0xFF800000 : f32
    %514 = vector.broadcast %cst_147 : f32 to vector<8x32xf32>
    %c0_i32_148 = arith.constant 0 : i32
    %c8_i32_149 = arith.constant 8 : i32
    %515 = arith.muli %c0_i32_148, %c8_i32_149 : i32
    %516 = tpu.assume_multiple %515, 8 : i32
    %c7_i32_150 = arith.constant 7 : i32
    %517 = arith.subi %c7_i32_150, %c0_i32_148 : i32
    %c8_i32_151 = arith.constant 8 : i32
    %518 = arith.muli %517, %c8_i32_151 : i32
    %519 = tpu.assume_multiple %518, 8 : i32
    %520 = arith.index_cast %516 : i32 to index
    %c0_152 = arith.constant 0 : index
    %521 = vector.load %arg19[%520, %c0_152] : memref<64x128xf32, #tpu.memory_space<vmem>>, vector<8x128xf32>
    %cst_153 = arith.constant dense<0.000000e+00> : vector<8x128xf32>
    %522 = tpu.matmul %15, %512, %cst_153 {dimension_numbers = #tpu.dot_dimension_numbers<[1], [0], [0], [1], [0, 0, 1, 1], [], []>} : vector<8x32xf32>, vector<32x128xf32>, vector<8x128xf32> -> vector<8x128xf32>
    %523 = arith.addf %521, %522 : vector<8x128xf32>
    %524 = arith.index_cast %519 : i32 to index
    %c0_154 = arith.constant 0 : index
    %525 = vector.load %arg20[%524, %c0_154] : memref<64x128xf32, #tpu.memory_space<vmem>>, vector<8x128xf32>
    %cst_155 = arith.constant dense<0.000000e+00> : vector<8x128xf32>
    %526 = tpu.matmul %15, %513, %cst_155 {dimension_numbers = #tpu.dot_dimension_numbers<[1], [0], [0], [1], [0, 0, 1, 1], [], []>} : vector<8x32xf32>, vector<32x128xf32>, vector<8x128xf32> -> vector<8x128xf32>
    %527 = arith.addf %525, %526 : vector<8x128xf32>
    %528 = vector.extract_strided_slice %523 {offsets = [0, 0], sizes = [8, 64], strides = [1, 1]} : vector<8x128xf32> to vector<8x64xf32>
    %529 = arith.negf %528 : vector<8x64xf32>
    %530 = math.exp %529 : vector<8x64xf32>
    %cst_156 = arith.constant 1.000000e+00 : f32
    %531 = vector.broadcast %cst_156 : f32 to vector<8x64xf32>
    %532 = arith.addf %531, %530 : vector<8x64xf32>
    %533 = arith.divf %531, %532 : vector<8x64xf32>
    %534 = vector.extract_strided_slice %533 {offsets = [0, 0], sizes = [8, 32], strides = [1, 1]} : vector<8x64xf32> to vector<8x32xf32>
    %535 = vector.extract_strided_slice %533 {offsets = [0, 32], sizes = [8, 32], strides = [1, 1]} : vector<8x64xf32> to vector<8x32xf32>
    %536 = vector.extract_strided_slice %523 {offsets = [0, 64], sizes = [8, 32], strides = [1, 1]} : vector<8x128xf32> to vector<8x32xf32>
    %537 = math.tanh %536 : vector<8x32xf32>
    %538 = vector.extract_strided_slice %523 {offsets = [0, 96], sizes = [8, 32], strides = [1, 1]} : vector<8x128xf32> to vector<8x32xf32>
    %539 = arith.negf %538 : vector<8x32xf32>
    %540 = math.exp %539 : vector<8x32xf32>
    %cst_157 = arith.constant 1.000000e+00 : f32
    %541 = vector.broadcast %cst_157 : f32 to vector<8x32xf32>
    %542 = arith.addf %541, %540 : vector<8x32xf32>
    %543 = arith.divf %541, %542 : vector<8x32xf32>
    %544 = arith.mulf %535, %15 : vector<8x32xf32>
    %545 = arith.mulf %534, %537 : vector<8x32xf32>
    %546 = arith.addf %544, %545 : vector<8x32xf32>
    %547 = math.tanh %546 : vector<8x32xf32>
    %548 = arith.mulf %543, %547 : vector<8x32xf32>
    %549 = vector.extract_strided_slice %527 {offsets = [0, 0], sizes = [8, 64], strides = [1, 1]} : vector<8x128xf32> to vector<8x64xf32>
    %550 = arith.negf %549 : vector<8x64xf32>
    %551 = math.exp %550 : vector<8x64xf32>
    %cst_158 = arith.constant 1.000000e+00 : f32
    %552 = vector.broadcast %cst_158 : f32 to vector<8x64xf32>
    %553 = arith.addf %552, %551 : vector<8x64xf32>
    %554 = arith.divf %552, %553 : vector<8x64xf32>
    %555 = vector.extract_strided_slice %554 {offsets = [0, 0], sizes = [8, 32], strides = [1, 1]} : vector<8x64xf32> to vector<8x32xf32>
    %556 = vector.extract_strided_slice %554 {offsets = [0, 32], sizes = [8, 32], strides = [1, 1]} : vector<8x64xf32> to vector<8x32xf32>
    %557 = vector.extract_strided_slice %527 {offsets = [0, 64], sizes = [8, 32], strides = [1, 1]} : vector<8x128xf32> to vector<8x32xf32>
    %558 = math.tanh %557 : vector<8x32xf32>
    %559 = vector.extract_strided_slice %527 {offsets = [0, 96], sizes = [8, 32], strides = [1, 1]} : vector<8x128xf32> to vector<8x32xf32>
    %560 = arith.negf %559 : vector<8x32xf32>
    %561 = math.exp %560 : vector<8x32xf32>
    %cst_159 = arith.constant 1.000000e+00 : f32
    %562 = vector.broadcast %cst_159 : f32 to vector<8x32xf32>
    %563 = arith.addf %562, %561 : vector<8x32xf32>
    %564 = arith.divf %562, %563 : vector<8x32xf32>
    %565 = arith.mulf %556, %15 : vector<8x32xf32>
    %566 = arith.mulf %555, %558 : vector<8x32xf32>
    %567 = arith.addf %565, %566 : vector<8x32xf32>
    %568 = math.tanh %567 : vector<8x32xf32>
    %569 = arith.mulf %564, %568 : vector<8x32xf32>
    %570 = arith.addf %15, %548 : vector<8x32xf32>
    %571 = arith.addf %15, %569 : vector<8x32xf32>
    %572 = arith.maximumf %514, %548 : vector<8x32xf32>
    %573 = arith.maximumf %514, %569 : vector<8x32xf32>
    %c1_i32_160 = arith.constant 1 : i32
    %c8_i32_161 = arith.constant 8 : i32
    %574 = arith.muli %c1_i32_160, %c8_i32_161 : i32
    %575 = tpu.assume_multiple %574, 8 : i32
    %c7_i32_162 = arith.constant 7 : i32
    %576 = arith.subi %c7_i32_162, %c1_i32_160 : i32
    %c8_i32_163 = arith.constant 8 : i32
    %577 = arith.muli %576, %c8_i32_163 : i32
    %578 = tpu.assume_multiple %577, 8 : i32
    %579 = arith.index_cast %575 : i32 to index
    %c0_164 = arith.constant 0 : index
    %580 = vector.load %arg19[%579, %c0_164] : memref<64x128xf32, #tpu.memory_space<vmem>>, vector<8x128xf32>
    %cst_165 = arith.constant dense<0.000000e+00> : vector<8x128xf32>
    %581 = tpu.matmul %548, %512, %cst_165 {dimension_numbers = #tpu.dot_dimension_numbers<[1], [0], [0], [1], [0, 0, 1, 1], [], []>} : vector<8x32xf32>, vector<32x128xf32>, vector<8x128xf32> -> vector<8x128xf32>
    %582 = arith.addf %580, %581 : vector<8x128xf32>
    %583 = arith.index_cast %578 : i32 to index
    %c0_166 = arith.constant 0 : index
    %584 = vector.load %arg20[%583, %c0_166] : memref<64x128xf32, #tpu.memory_space<vmem>>, vector<8x128xf32>
    %cst_167 = arith.constant dense<0.000000e+00> : vector<8x128xf32>
    %585 = tpu.matmul %569, %513, %cst_167 {dimension_numbers = #tpu.dot_dimension_numbers<[1], [0], [0], [1], [0, 0, 1, 1], [], []>} : vector<8x32xf32>, vector<32x128xf32>, vector<8x128xf32> -> vector<8x128xf32>
    %586 = arith.addf %584, %585 : vector<8x128xf32>
    %587 = vector.extract_strided_slice %582 {offsets = [0, 0], sizes = [8, 64], strides = [1, 1]} : vector<8x128xf32> to vector<8x64xf32>
    %588 = arith.negf %587 : vector<8x64xf32>
    %589 = math.exp %588 : vector<8x64xf32>
    %cst_168 = arith.constant 1.000000e+00 : f32
    %590 = vector.broadcast %cst_168 : f32 to vector<8x64xf32>
    %591 = arith.addf %590, %589 : vector<8x64xf32>
    %592 = arith.divf %590, %591 : vector<8x64xf32>
    %593 = vector.extract_strided_slice %592 {offsets = [0, 0], sizes = [8, 32], strides = [1, 1]} : vector<8x64xf32> to vector<8x32xf32>
    %594 = vector.extract_strided_slice %592 {offsets = [0, 32], sizes = [8, 32], strides = [1, 1]} : vector<8x64xf32> to vector<8x32xf32>
    %595 = vector.extract_strided_slice %582 {offsets = [0, 64], sizes = [8, 32], strides = [1, 1]} : vector<8x128xf32> to vector<8x32xf32>
    %596 = math.tanh %595 : vector<8x32xf32>
    %597 = vector.extract_strided_slice %582 {offsets = [0, 96], sizes = [8, 32], strides = [1, 1]} : vector<8x128xf32> to vector<8x32xf32>
    %598 = arith.negf %597 : vector<8x32xf32>
    %599 = math.exp %598 : vector<8x32xf32>
    %cst_169 = arith.constant 1.000000e+00 : f32
    %600 = vector.broadcast %cst_169 : f32 to vector<8x32xf32>
    %601 = arith.addf %600, %599 : vector<8x32xf32>
    %602 = arith.divf %600, %601 : vector<8x32xf32>
    %603 = arith.mulf %594, %546 : vector<8x32xf32>
    %604 = arith.mulf %593, %596 : vector<8x32xf32>
    %605 = arith.addf %603, %604 : vector<8x32xf32>
    %606 = math.tanh %605 : vector<8x32xf32>
    %607 = arith.mulf %602, %606 : vector<8x32xf32>
    %608 = vector.extract_strided_slice %586 {offsets = [0, 0], sizes = [8, 64], strides = [1, 1]} : vector<8x128xf32> to vector<8x64xf32>
    %609 = arith.negf %608 : vector<8x64xf32>
    %610 = math.exp %609 : vector<8x64xf32>
    %cst_170 = arith.constant 1.000000e+00 : f32
    %611 = vector.broadcast %cst_170 : f32 to vector<8x64xf32>
    %612 = arith.addf %611, %610 : vector<8x64xf32>
    %613 = arith.divf %611, %612 : vector<8x64xf32>
    %614 = vector.extract_strided_slice %613 {offsets = [0, 0], sizes = [8, 32], strides = [1, 1]} : vector<8x64xf32> to vector<8x32xf32>
    %615 = vector.extract_strided_slice %613 {offsets = [0, 32], sizes = [8, 32], strides = [1, 1]} : vector<8x64xf32> to vector<8x32xf32>
    %616 = vector.extract_strided_slice %586 {offsets = [0, 64], sizes = [8, 32], strides = [1, 1]} : vector<8x128xf32> to vector<8x32xf32>
    %617 = math.tanh %616 : vector<8x32xf32>
    %618 = vector.extract_strided_slice %586 {offsets = [0, 96], sizes = [8, 32], strides = [1, 1]} : vector<8x128xf32> to vector<8x32xf32>
    %619 = arith.negf %618 : vector<8x32xf32>
    %620 = math.exp %619 : vector<8x32xf32>
    %cst_171 = arith.constant 1.000000e+00 : f32
    %621 = vector.broadcast %cst_171 : f32 to vector<8x32xf32>
    %622 = arith.addf %621, %620 : vector<8x32xf32>
    %623 = arith.divf %621, %622 : vector<8x32xf32>
    %624 = arith.mulf %615, %567 : vector<8x32xf32>
    %625 = arith.mulf %614, %617 : vector<8x32xf32>
    %626 = arith.addf %624, %625 : vector<8x32xf32>
    %627 = math.tanh %626 : vector<8x32xf32>
    %628 = arith.mulf %623, %627 : vector<8x32xf32>
    %629 = arith.addf %570, %607 : vector<8x32xf32>
    %630 = arith.addf %571, %628 : vector<8x32xf32>
    %631 = arith.maximumf %572, %607 : vector<8x32xf32>
    %632 = arith.maximumf %573, %628 : vector<8x32xf32>
    %c2_i32_172 = arith.constant 2 : i32
    %c8_i32_173 = arith.constant 8 : i32
    %633 = arith.muli %c2_i32_172, %c8_i32_173 : i32
    %634 = tpu.assume_multiple %633, 8 : i32
    %c7_i32_174 = arith.constant 7 : i32
    %635 = arith.subi %c7_i32_174, %c2_i32_172 : i32
    %c8_i32_175 = arith.constant 8 : i32
    %636 = arith.muli %635, %c8_i32_175 : i32
    %637 = tpu.assume_multiple %636, 8 : i32
    %638 = arith.index_cast %634 : i32 to index
    %c0_176 = arith.constant 0 : index
    %639 = vector.load %arg19[%638, %c0_176] : memref<64x128xf32, #tpu.memory_space<vmem>>, vector<8x128xf32>
    %cst_177 = arith.constant dense<0.000000e+00> : vector<8x128xf32>
    %640 = tpu.matmul %607, %512, %cst_177 {dimension_numbers = #tpu.dot_dimension_numbers<[1], [0], [0], [1], [0, 0, 1, 1], [], []>} : vector<8x32xf32>, vector<32x128xf32>, vector<8x128xf32> -> vector<8x128xf32>
    %641 = arith.addf %639, %640 : vector<8x128xf32>
    %642 = arith.index_cast %637 : i32 to index
    %c0_178 = arith.constant 0 : index
    %643 = vector.load %arg20[%642, %c0_178] : memref<64x128xf32, #tpu.memory_space<vmem>>, vector<8x128xf32>
    %cst_179 = arith.constant dense<0.000000e+00> : vector<8x128xf32>
    %644 = tpu.matmul %628, %513, %cst_179 {dimension_numbers = #tpu.dot_dimension_numbers<[1], [0], [0], [1], [0, 0, 1, 1], [], []>} : vector<8x32xf32>, vector<32x128xf32>, vector<8x128xf32> -> vector<8x128xf32>
    %645 = arith.addf %643, %644 : vector<8x128xf32>
    %646 = vector.extract_strided_slice %641 {offsets = [0, 0], sizes = [8, 64], strides = [1, 1]} : vector<8x128xf32> to vector<8x64xf32>
    %647 = arith.negf %646 : vector<8x64xf32>
    %648 = math.exp %647 : vector<8x64xf32>
    %cst_180 = arith.constant 1.000000e+00 : f32
    %649 = vector.broadcast %cst_180 : f32 to vector<8x64xf32>
    %650 = arith.addf %649, %648 : vector<8x64xf32>
    %651 = arith.divf %649, %650 : vector<8x64xf32>
    %652 = vector.extract_strided_slice %651 {offsets = [0, 0], sizes = [8, 32], strides = [1, 1]} : vector<8x64xf32> to vector<8x32xf32>
    %653 = vector.extract_strided_slice %651 {offsets = [0, 32], sizes = [8, 32], strides = [1, 1]} : vector<8x64xf32> to vector<8x32xf32>
    %654 = vector.extract_strided_slice %641 {offsets = [0, 64], sizes = [8, 32], strides = [1, 1]} : vector<8x128xf32> to vector<8x32xf32>
    %655 = math.tanh %654 : vector<8x32xf32>
    %656 = vector.extract_strided_slice %641 {offsets = [0, 96], sizes = [8, 32], strides = [1, 1]} : vector<8x128xf32> to vector<8x32xf32>
    %657 = arith.negf %656 : vector<8x32xf32>
    %658 = math.exp %657 : vector<8x32xf32>
    %cst_181 = arith.constant 1.000000e+00 : f32
    %659 = vector.broadcast %cst_181 : f32 to vector<8x32xf32>
    %660 = arith.addf %659, %658 : vector<8x32xf32>
    %661 = arith.divf %659, %660 : vector<8x32xf32>
    %662 = arith.mulf %653, %605 : vector<8x32xf32>
    %663 = arith.mulf %652, %655 : vector<8x32xf32>
    %664 = arith.addf %662, %663 : vector<8x32xf32>
    %665 = math.tanh %664 : vector<8x32xf32>
    %666 = arith.mulf %661, %665 : vector<8x32xf32>
    %667 = vector.extract_strided_slice %645 {offsets = [0, 0], sizes = [8, 64], strides = [1, 1]} : vector<8x128xf32> to vector<8x64xf32>
    %668 = arith.negf %667 : vector<8x64xf32>
    %669 = math.exp %668 : vector<8x64xf32>
    %cst_182 = arith.constant 1.000000e+00 : f32
    %670 = vector.broadcast %cst_182 : f32 to vector<8x64xf32>
    %671 = arith.addf %670, %669 : vector<8x64xf32>
    %672 = arith.divf %670, %671 : vector<8x64xf32>
    %673 = vector.extract_strided_slice %672 {offsets = [0, 0], sizes = [8, 32], strides = [1, 1]} : vector<8x64xf32> to vector<8x32xf32>
    %674 = vector.extract_strided_slice %672 {offsets = [0, 32], sizes = [8, 32], strides = [1, 1]} : vector<8x64xf32> to vector<8x32xf32>
    %675 = vector.extract_strided_slice %645 {offsets = [0, 64], sizes = [8, 32], strides = [1, 1]} : vector<8x128xf32> to vector<8x32xf32>
    %676 = math.tanh %675 : vector<8x32xf32>
    %677 = vector.extract_strided_slice %645 {offsets = [0, 96], sizes = [8, 32], strides = [1, 1]} : vector<8x128xf32> to vector<8x32xf32>
    %678 = arith.negf %677 : vector<8x32xf32>
    %679 = math.exp %678 : vector<8x32xf32>
    %cst_183 = arith.constant 1.000000e+00 : f32
    %680 = vector.broadcast %cst_183 : f32 to vector<8x32xf32>
    %681 = arith.addf %680, %679 : vector<8x32xf32>
    %682 = arith.divf %680, %681 : vector<8x32xf32>
    %683 = arith.mulf %674, %626 : vector<8x32xf32>
    %684 = arith.mulf %673, %676 : vector<8x32xf32>
    %685 = arith.addf %683, %684 : vector<8x32xf32>
    %686 = math.tanh %685 : vector<8x32xf32>
    %687 = arith.mulf %682, %686 : vector<8x32xf32>
    %688 = arith.addf %629, %666 : vector<8x32xf32>
    %689 = arith.addf %630, %687 : vector<8x32xf32>
    %690 = arith.maximumf %631, %666 : vector<8x32xf32>
    %691 = arith.maximumf %632, %687 : vector<8x32xf32>
    %c3_i32_184 = arith.constant 3 : i32
    %c8_i32_185 = arith.constant 8 : i32
    %692 = arith.muli %c3_i32_184, %c8_i32_185 : i32
    %693 = tpu.assume_multiple %692, 8 : i32
    %c7_i32_186 = arith.constant 7 : i32
    %694 = arith.subi %c7_i32_186, %c3_i32_184 : i32
    %c8_i32_187 = arith.constant 8 : i32
    %695 = arith.muli %694, %c8_i32_187 : i32
    %696 = tpu.assume_multiple %695, 8 : i32
    %697 = arith.index_cast %693 : i32 to index
    %c0_188 = arith.constant 0 : index
    %698 = vector.load %arg19[%697, %c0_188] : memref<64x128xf32, #tpu.memory_space<vmem>>, vector<8x128xf32>
    %cst_189 = arith.constant dense<0.000000e+00> : vector<8x128xf32>
    %699 = tpu.matmul %666, %512, %cst_189 {dimension_numbers = #tpu.dot_dimension_numbers<[1], [0], [0], [1], [0, 0, 1, 1], [], []>} : vector<8x32xf32>, vector<32x128xf32>, vector<8x128xf32> -> vector<8x128xf32>
    %700 = arith.addf %698, %699 : vector<8x128xf32>
    %701 = arith.index_cast %696 : i32 to index
    %c0_190 = arith.constant 0 : index
    %702 = vector.load %arg20[%701, %c0_190] : memref<64x128xf32, #tpu.memory_space<vmem>>, vector<8x128xf32>
    %cst_191 = arith.constant dense<0.000000e+00> : vector<8x128xf32>
    %703 = tpu.matmul %687, %513, %cst_191 {dimension_numbers = #tpu.dot_dimension_numbers<[1], [0], [0], [1], [0, 0, 1, 1], [], []>} : vector<8x32xf32>, vector<32x128xf32>, vector<8x128xf32> -> vector<8x128xf32>
    %704 = arith.addf %702, %703 : vector<8x128xf32>
    %705 = vector.extract_strided_slice %700 {offsets = [0, 0], sizes = [8, 64], strides = [1, 1]} : vector<8x128xf32> to vector<8x64xf32>
    %706 = arith.negf %705 : vector<8x64xf32>
    %707 = math.exp %706 : vector<8x64xf32>
    %cst_192 = arith.constant 1.000000e+00 : f32
    %708 = vector.broadcast %cst_192 : f32 to vector<8x64xf32>
    %709 = arith.addf %708, %707 : vector<8x64xf32>
    %710 = arith.divf %708, %709 : vector<8x64xf32>
    %711 = vector.extract_strided_slice %710 {offsets = [0, 0], sizes = [8, 32], strides = [1, 1]} : vector<8x64xf32> to vector<8x32xf32>
    %712 = vector.extract_strided_slice %710 {offsets = [0, 32], sizes = [8, 32], strides = [1, 1]} : vector<8x64xf32> to vector<8x32xf32>
    %713 = vector.extract_strided_slice %700 {offsets = [0, 64], sizes = [8, 32], strides = [1, 1]} : vector<8x128xf32> to vector<8x32xf32>
    %714 = math.tanh %713 : vector<8x32xf32>
    %715 = vector.extract_strided_slice %700 {offsets = [0, 96], sizes = [8, 32], strides = [1, 1]} : vector<8x128xf32> to vector<8x32xf32>
    %716 = arith.negf %715 : vector<8x32xf32>
    %717 = math.exp %716 : vector<8x32xf32>
    %cst_193 = arith.constant 1.000000e+00 : f32
    %718 = vector.broadcast %cst_193 : f32 to vector<8x32xf32>
    %719 = arith.addf %718, %717 : vector<8x32xf32>
    %720 = arith.divf %718, %719 : vector<8x32xf32>
    %721 = arith.mulf %712, %664 : vector<8x32xf32>
    %722 = arith.mulf %711, %714 : vector<8x32xf32>
    %723 = arith.addf %721, %722 : vector<8x32xf32>
    %724 = math.tanh %723 : vector<8x32xf32>
    %725 = arith.mulf %720, %724 : vector<8x32xf32>
    %726 = vector.extract_strided_slice %704 {offsets = [0, 0], sizes = [8, 64], strides = [1, 1]} : vector<8x128xf32> to vector<8x64xf32>
    %727 = arith.negf %726 : vector<8x64xf32>
    %728 = math.exp %727 : vector<8x64xf32>
    %cst_194 = arith.constant 1.000000e+00 : f32
    %729 = vector.broadcast %cst_194 : f32 to vector<8x64xf32>
    %730 = arith.addf %729, %728 : vector<8x64xf32>
    %731 = arith.divf %729, %730 : vector<8x64xf32>
    %732 = vector.extract_strided_slice %731 {offsets = [0, 0], sizes = [8, 32], strides = [1, 1]} : vector<8x64xf32> to vector<8x32xf32>
    %733 = vector.extract_strided_slice %731 {offsets = [0, 32], sizes = [8, 32], strides = [1, 1]} : vector<8x64xf32> to vector<8x32xf32>
    %734 = vector.extract_strided_slice %704 {offsets = [0, 64], sizes = [8, 32], strides = [1, 1]} : vector<8x128xf32> to vector<8x32xf32>
    %735 = math.tanh %734 : vector<8x32xf32>
    %736 = vector.extract_strided_slice %704 {offsets = [0, 96], sizes = [8, 32], strides = [1, 1]} : vector<8x128xf32> to vector<8x32xf32>
    %737 = arith.negf %736 : vector<8x32xf32>
    %738 = math.exp %737 : vector<8x32xf32>
    %cst_195 = arith.constant 1.000000e+00 : f32
    %739 = vector.broadcast %cst_195 : f32 to vector<8x32xf32>
    %740 = arith.addf %739, %738 : vector<8x32xf32>
    %741 = arith.divf %739, %740 : vector<8x32xf32>
    %742 = arith.mulf %733, %685 : vector<8x32xf32>
    %743 = arith.mulf %732, %735 : vector<8x32xf32>
    %744 = arith.addf %742, %743 : vector<8x32xf32>
    %745 = math.tanh %744 : vector<8x32xf32>
    %746 = arith.mulf %741, %745 : vector<8x32xf32>
    %747 = arith.addf %688, %725 : vector<8x32xf32>
    %748 = arith.addf %689, %746 : vector<8x32xf32>
    %749 = arith.maximumf %690, %725 : vector<8x32xf32>
    %750 = arith.maximumf %691, %746 : vector<8x32xf32>
    %c4_i32_196 = arith.constant 4 : i32
    %c8_i32_197 = arith.constant 8 : i32
    %751 = arith.muli %c4_i32_196, %c8_i32_197 : i32
    %752 = tpu.assume_multiple %751, 8 : i32
    %c7_i32_198 = arith.constant 7 : i32
    %753 = arith.subi %c7_i32_198, %c4_i32_196 : i32
    %c8_i32_199 = arith.constant 8 : i32
    %754 = arith.muli %753, %c8_i32_199 : i32
    %755 = tpu.assume_multiple %754, 8 : i32
    %756 = arith.index_cast %752 : i32 to index
    %c0_200 = arith.constant 0 : index
    %757 = vector.load %arg19[%756, %c0_200] : memref<64x128xf32, #tpu.memory_space<vmem>>, vector<8x128xf32>
    %cst_201 = arith.constant dense<0.000000e+00> : vector<8x128xf32>
    %758 = tpu.matmul %725, %512, %cst_201 {dimension_numbers = #tpu.dot_dimension_numbers<[1], [0], [0], [1], [0, 0, 1, 1], [], []>} : vector<8x32xf32>, vector<32x128xf32>, vector<8x128xf32> -> vector<8x128xf32>
    %759 = arith.addf %757, %758 : vector<8x128xf32>
    %760 = arith.index_cast %755 : i32 to index
    %c0_202 = arith.constant 0 : index
    %761 = vector.load %arg20[%760, %c0_202] : memref<64x128xf32, #tpu.memory_space<vmem>>, vector<8x128xf32>
    %cst_203 = arith.constant dense<0.000000e+00> : vector<8x128xf32>
    %762 = tpu.matmul %746, %513, %cst_203 {dimension_numbers = #tpu.dot_dimension_numbers<[1], [0], [0], [1], [0, 0, 1, 1], [], []>} : vector<8x32xf32>, vector<32x128xf32>, vector<8x128xf32> -> vector<8x128xf32>
    %763 = arith.addf %761, %762 : vector<8x128xf32>
    %764 = vector.extract_strided_slice %759 {offsets = [0, 0], sizes = [8, 64], strides = [1, 1]} : vector<8x128xf32> to vector<8x64xf32>
    %765 = arith.negf %764 : vector<8x64xf32>
    %766 = math.exp %765 : vector<8x64xf32>
    %cst_204 = arith.constant 1.000000e+00 : f32
    %767 = vector.broadcast %cst_204 : f32 to vector<8x64xf32>
    %768 = arith.addf %767, %766 : vector<8x64xf32>
    %769 = arith.divf %767, %768 : vector<8x64xf32>
    %770 = vector.extract_strided_slice %769 {offsets = [0, 0], sizes = [8, 32], strides = [1, 1]} : vector<8x64xf32> to vector<8x32xf32>
    %771 = vector.extract_strided_slice %769 {offsets = [0, 32], sizes = [8, 32], strides = [1, 1]} : vector<8x64xf32> to vector<8x32xf32>
    %772 = vector.extract_strided_slice %759 {offsets = [0, 64], sizes = [8, 32], strides = [1, 1]} : vector<8x128xf32> to vector<8x32xf32>
    %773 = math.tanh %772 : vector<8x32xf32>
    %774 = vector.extract_strided_slice %759 {offsets = [0, 96], sizes = [8, 32], strides = [1, 1]} : vector<8x128xf32> to vector<8x32xf32>
    %775 = arith.negf %774 : vector<8x32xf32>
    %776 = math.exp %775 : vector<8x32xf32>
    %cst_205 = arith.constant 1.000000e+00 : f32
    %777 = vector.broadcast %cst_205 : f32 to vector<8x32xf32>
    %778 = arith.addf %777, %776 : vector<8x32xf32>
    %779 = arith.divf %777, %778 : vector<8x32xf32>
    %780 = arith.mulf %771, %723 : vector<8x32xf32>
    %781 = arith.mulf %770, %773 : vector<8x32xf32>
    %782 = arith.addf %780, %781 : vector<8x32xf32>
    %783 = math.tanh %782 : vector<8x32xf32>
    %784 = arith.mulf %779, %783 : vector<8x32xf32>
    %785 = vector.extract_strided_slice %763 {offsets = [0, 0], sizes = [8, 64], strides = [1, 1]} : vector<8x128xf32> to vector<8x64xf32>
    %786 = arith.negf %785 : vector<8x64xf32>
    %787 = math.exp %786 : vector<8x64xf32>
    %cst_206 = arith.constant 1.000000e+00 : f32
    %788 = vector.broadcast %cst_206 : f32 to vector<8x64xf32>
    %789 = arith.addf %788, %787 : vector<8x64xf32>
    %790 = arith.divf %788, %789 : vector<8x64xf32>
    %791 = vector.extract_strided_slice %790 {offsets = [0, 0], sizes = [8, 32], strides = [1, 1]} : vector<8x64xf32> to vector<8x32xf32>
    %792 = vector.extract_strided_slice %790 {offsets = [0, 32], sizes = [8, 32], strides = [1, 1]} : vector<8x64xf32> to vector<8x32xf32>
    %793 = vector.extract_strided_slice %763 {offsets = [0, 64], sizes = [8, 32], strides = [1, 1]} : vector<8x128xf32> to vector<8x32xf32>
    %794 = math.tanh %793 : vector<8x32xf32>
    %795 = vector.extract_strided_slice %763 {offsets = [0, 96], sizes = [8, 32], strides = [1, 1]} : vector<8x128xf32> to vector<8x32xf32>
    %796 = arith.negf %795 : vector<8x32xf32>
    %797 = math.exp %796 : vector<8x32xf32>
    %cst_207 = arith.constant 1.000000e+00 : f32
    %798 = vector.broadcast %cst_207 : f32 to vector<8x32xf32>
    %799 = arith.addf %798, %797 : vector<8x32xf32>
    %800 = arith.divf %798, %799 : vector<8x32xf32>
    %801 = arith.mulf %792, %744 : vector<8x32xf32>
    %802 = arith.mulf %791, %794 : vector<8x32xf32>
    %803 = arith.addf %801, %802 : vector<8x32xf32>
    %804 = math.tanh %803 : vector<8x32xf32>
    %805 = arith.mulf %800, %804 : vector<8x32xf32>
    %806 = arith.addf %747, %784 : vector<8x32xf32>
    %807 = arith.addf %748, %805 : vector<8x32xf32>
    %808 = arith.maximumf %749, %784 : vector<8x32xf32>
    %809 = arith.maximumf %750, %805 : vector<8x32xf32>
    %c5_i32_208 = arith.constant 5 : i32
    %c8_i32_209 = arith.constant 8 : i32
    %810 = arith.muli %c5_i32_208, %c8_i32_209 : i32
    %811 = tpu.assume_multiple %810, 8 : i32
    %c7_i32_210 = arith.constant 7 : i32
    %812 = arith.subi %c7_i32_210, %c5_i32_208 : i32
    %c8_i32_211 = arith.constant 8 : i32
    %813 = arith.muli %812, %c8_i32_211 : i32
    %814 = tpu.assume_multiple %813, 8 : i32
    %815 = arith.index_cast %811 : i32 to index
    %c0_212 = arith.constant 0 : index
    %816 = vector.load %arg19[%815, %c0_212] : memref<64x128xf32, #tpu.memory_space<vmem>>, vector<8x128xf32>
    %cst_213 = arith.constant dense<0.000000e+00> : vector<8x128xf32>
    %817 = tpu.matmul %784, %512, %cst_213 {dimension_numbers = #tpu.dot_dimension_numbers<[1], [0], [0], [1], [0, 0, 1, 1], [], []>} : vector<8x32xf32>, vector<32x128xf32>, vector<8x128xf32> -> vector<8x128xf32>
    %818 = arith.addf %816, %817 : vector<8x128xf32>
    %819 = arith.index_cast %814 : i32 to index
    %c0_214 = arith.constant 0 : index
    %820 = vector.load %arg20[%819, %c0_214] : memref<64x128xf32, #tpu.memory_space<vmem>>, vector<8x128xf32>
    %cst_215 = arith.constant dense<0.000000e+00> : vector<8x128xf32>
    %821 = tpu.matmul %805, %513, %cst_215 {dimension_numbers = #tpu.dot_dimension_numbers<[1], [0], [0], [1], [0, 0, 1, 1], [], []>} : vector<8x32xf32>, vector<32x128xf32>, vector<8x128xf32> -> vector<8x128xf32>
    %822 = arith.addf %820, %821 : vector<8x128xf32>
    %823 = vector.extract_strided_slice %818 {offsets = [0, 0], sizes = [8, 64], strides = [1, 1]} : vector<8x128xf32> to vector<8x64xf32>
    %824 = arith.negf %823 : vector<8x64xf32>
    %825 = math.exp %824 : vector<8x64xf32>
    %cst_216 = arith.constant 1.000000e+00 : f32
    %826 = vector.broadcast %cst_216 : f32 to vector<8x64xf32>
    %827 = arith.addf %826, %825 : vector<8x64xf32>
    %828 = arith.divf %826, %827 : vector<8x64xf32>
    %829 = vector.extract_strided_slice %828 {offsets = [0, 0], sizes = [8, 32], strides = [1, 1]} : vector<8x64xf32> to vector<8x32xf32>
    %830 = vector.extract_strided_slice %828 {offsets = [0, 32], sizes = [8, 32], strides = [1, 1]} : vector<8x64xf32> to vector<8x32xf32>
    %831 = vector.extract_strided_slice %818 {offsets = [0, 64], sizes = [8, 32], strides = [1, 1]} : vector<8x128xf32> to vector<8x32xf32>
    %832 = math.tanh %831 : vector<8x32xf32>
    %833 = vector.extract_strided_slice %818 {offsets = [0, 96], sizes = [8, 32], strides = [1, 1]} : vector<8x128xf32> to vector<8x32xf32>
    %834 = arith.negf %833 : vector<8x32xf32>
    %835 = math.exp %834 : vector<8x32xf32>
    %cst_217 = arith.constant 1.000000e+00 : f32
    %836 = vector.broadcast %cst_217 : f32 to vector<8x32xf32>
    %837 = arith.addf %836, %835 : vector<8x32xf32>
    %838 = arith.divf %836, %837 : vector<8x32xf32>
    %839 = arith.mulf %830, %782 : vector<8x32xf32>
    %840 = arith.mulf %829, %832 : vector<8x32xf32>
    %841 = arith.addf %839, %840 : vector<8x32xf32>
    %842 = math.tanh %841 : vector<8x32xf32>
    %843 = arith.mulf %838, %842 : vector<8x32xf32>
    %844 = vector.extract_strided_slice %822 {offsets = [0, 0], sizes = [8, 64], strides = [1, 1]} : vector<8x128xf32> to vector<8x64xf32>
    %845 = arith.negf %844 : vector<8x64xf32>
    %846 = math.exp %845 : vector<8x64xf32>
    %cst_218 = arith.constant 1.000000e+00 : f32
    %847 = vector.broadcast %cst_218 : f32 to vector<8x64xf32>
    %848 = arith.addf %847, %846 : vector<8x64xf32>
    %849 = arith.divf %847, %848 : vector<8x64xf32>
    %850 = vector.extract_strided_slice %849 {offsets = [0, 0], sizes = [8, 32], strides = [1, 1]} : vector<8x64xf32> to vector<8x32xf32>
    %851 = vector.extract_strided_slice %849 {offsets = [0, 32], sizes = [8, 32], strides = [1, 1]} : vector<8x64xf32> to vector<8x32xf32>
    %852 = vector.extract_strided_slice %822 {offsets = [0, 64], sizes = [8, 32], strides = [1, 1]} : vector<8x128xf32> to vector<8x32xf32>
    %853 = math.tanh %852 : vector<8x32xf32>
    %854 = vector.extract_strided_slice %822 {offsets = [0, 96], sizes = [8, 32], strides = [1, 1]} : vector<8x128xf32> to vector<8x32xf32>
    %855 = arith.negf %854 : vector<8x32xf32>
    %856 = math.exp %855 : vector<8x32xf32>
    %cst_219 = arith.constant 1.000000e+00 : f32
    %857 = vector.broadcast %cst_219 : f32 to vector<8x32xf32>
    %858 = arith.addf %857, %856 : vector<8x32xf32>
    %859 = arith.divf %857, %858 : vector<8x32xf32>
    %860 = arith.mulf %851, %803 : vector<8x32xf32>
    %861 = arith.mulf %850, %853 : vector<8x32xf32>
    %862 = arith.addf %860, %861 : vector<8x32xf32>
    %863 = math.tanh %862 : vector<8x32xf32>
    %864 = arith.mulf %859, %863 : vector<8x32xf32>
    %865 = arith.addf %806, %843 : vector<8x32xf32>
    %866 = arith.addf %807, %864 : vector<8x32xf32>
    %867 = arith.maximumf %808, %843 : vector<8x32xf32>
    %868 = arith.maximumf %809, %864 : vector<8x32xf32>
    %c6_i32_220 = arith.constant 6 : i32
    %c8_i32_221 = arith.constant 8 : i32
    %869 = arith.muli %c6_i32_220, %c8_i32_221 : i32
    %870 = tpu.assume_multiple %869, 8 : i32
    %c7_i32_222 = arith.constant 7 : i32
    %871 = arith.subi %c7_i32_222, %c6_i32_220 : i32
    %c8_i32_223 = arith.constant 8 : i32
    %872 = arith.muli %871, %c8_i32_223 : i32
    %873 = tpu.assume_multiple %872, 8 : i32
    %874 = arith.index_cast %870 : i32 to index
    %c0_224 = arith.constant 0 : index
    %875 = vector.load %arg19[%874, %c0_224] : memref<64x128xf32, #tpu.memory_space<vmem>>, vector<8x128xf32>
    %cst_225 = arith.constant dense<0.000000e+00> : vector<8x128xf32>
    %876 = tpu.matmul %843, %512, %cst_225 {dimension_numbers = #tpu.dot_dimension_numbers<[1], [0], [0], [1], [0, 0, 1, 1], [], []>} : vector<8x32xf32>, vector<32x128xf32>, vector<8x128xf32> -> vector<8x128xf32>
    %877 = arith.addf %875, %876 : vector<8x128xf32>
    %878 = arith.index_cast %873 : i32 to index
    %c0_226 = arith.constant 0 : index
    %879 = vector.load %arg20[%878, %c0_226] : memref<64x128xf32, #tpu.memory_space<vmem>>, vector<8x128xf32>
    %cst_227 = arith.constant dense<0.000000e+00> : vector<8x128xf32>
    %880 = tpu.matmul %864, %513, %cst_227 {dimension_numbers = #tpu.dot_dimension_numbers<[1], [0], [0], [1], [0, 0, 1, 1], [], []>} : vector<8x32xf32>, vector<32x128xf32>, vector<8x128xf32> -> vector<8x128xf32>
    %881 = arith.addf %879, %880 : vector<8x128xf32>
    %882 = vector.extract_strided_slice %877 {offsets = [0, 0], sizes = [8, 64], strides = [1, 1]} : vector<8x128xf32> to vector<8x64xf32>
    %883 = arith.negf %882 : vector<8x64xf32>
    %884 = math.exp %883 : vector<8x64xf32>
    %cst_228 = arith.constant 1.000000e+00 : f32
    %885 = vector.broadcast %cst_228 : f32 to vector<8x64xf32>
    %886 = arith.addf %885, %884 : vector<8x64xf32>
    %887 = arith.divf %885, %886 : vector<8x64xf32>
    %888 = vector.extract_strided_slice %887 {offsets = [0, 0], sizes = [8, 32], strides = [1, 1]} : vector<8x64xf32> to vector<8x32xf32>
    %889 = vector.extract_strided_slice %887 {offsets = [0, 32], sizes = [8, 32], strides = [1, 1]} : vector<8x64xf32> to vector<8x32xf32>
    %890 = vector.extract_strided_slice %877 {offsets = [0, 64], sizes = [8, 32], strides = [1, 1]} : vector<8x128xf32> to vector<8x32xf32>
    %891 = math.tanh %890 : vector<8x32xf32>
    %892 = vector.extract_strided_slice %877 {offsets = [0, 96], sizes = [8, 32], strides = [1, 1]} : vector<8x128xf32> to vector<8x32xf32>
    %893 = arith.negf %892 : vector<8x32xf32>
    %894 = math.exp %893 : vector<8x32xf32>
    %cst_229 = arith.constant 1.000000e+00 : f32
    %895 = vector.broadcast %cst_229 : f32 to vector<8x32xf32>
    %896 = arith.addf %895, %894 : vector<8x32xf32>
    %897 = arith.divf %895, %896 : vector<8x32xf32>
    %898 = arith.mulf %889, %841 : vector<8x32xf32>
    %899 = arith.mulf %888, %891 : vector<8x32xf32>
    %900 = arith.addf %898, %899 : vector<8x32xf32>
    %901 = math.tanh %900 : vector<8x32xf32>
    %902 = arith.mulf %897, %901 : vector<8x32xf32>
    %903 = vector.extract_strided_slice %881 {offsets = [0, 0], sizes = [8, 64], strides = [1, 1]} : vector<8x128xf32> to vector<8x64xf32>
    %904 = arith.negf %903 : vector<8x64xf32>
    %905 = math.exp %904 : vector<8x64xf32>
    %cst_230 = arith.constant 1.000000e+00 : f32
    %906 = vector.broadcast %cst_230 : f32 to vector<8x64xf32>
    %907 = arith.addf %906, %905 : vector<8x64xf32>
    %908 = arith.divf %906, %907 : vector<8x64xf32>
    %909 = vector.extract_strided_slice %908 {offsets = [0, 0], sizes = [8, 32], strides = [1, 1]} : vector<8x64xf32> to vector<8x32xf32>
    %910 = vector.extract_strided_slice %908 {offsets = [0, 32], sizes = [8, 32], strides = [1, 1]} : vector<8x64xf32> to vector<8x32xf32>
    %911 = vector.extract_strided_slice %881 {offsets = [0, 64], sizes = [8, 32], strides = [1, 1]} : vector<8x128xf32> to vector<8x32xf32>
    %912 = math.tanh %911 : vector<8x32xf32>
    %913 = vector.extract_strided_slice %881 {offsets = [0, 96], sizes = [8, 32], strides = [1, 1]} : vector<8x128xf32> to vector<8x32xf32>
    %914 = arith.negf %913 : vector<8x32xf32>
    %915 = math.exp %914 : vector<8x32xf32>
    %cst_231 = arith.constant 1.000000e+00 : f32
    %916 = vector.broadcast %cst_231 : f32 to vector<8x32xf32>
    %917 = arith.addf %916, %915 : vector<8x32xf32>
    %918 = arith.divf %916, %917 : vector<8x32xf32>
    %919 = arith.mulf %910, %862 : vector<8x32xf32>
    %920 = arith.mulf %909, %912 : vector<8x32xf32>
    %921 = arith.addf %919, %920 : vector<8x32xf32>
    %922 = math.tanh %921 : vector<8x32xf32>
    %923 = arith.mulf %918, %922 : vector<8x32xf32>
    %924 = arith.addf %865, %902 : vector<8x32xf32>
    %925 = arith.addf %866, %923 : vector<8x32xf32>
    %926 = arith.maximumf %867, %902 : vector<8x32xf32>
    %927 = arith.maximumf %868, %923 : vector<8x32xf32>
    %c7_i32_232 = arith.constant 7 : i32
    %c8_i32_233 = arith.constant 8 : i32
    %928 = arith.muli %c7_i32_232, %c8_i32_233 : i32
    %929 = tpu.assume_multiple %928, 8 : i32
    %c7_i32_234 = arith.constant 7 : i32
    %930 = arith.subi %c7_i32_234, %c7_i32_232 : i32
    %c8_i32_235 = arith.constant 8 : i32
    %931 = arith.muli %930, %c8_i32_235 : i32
    %932 = tpu.assume_multiple %931, 8 : i32
    %933 = arith.index_cast %929 : i32 to index
    %c0_236 = arith.constant 0 : index
    %934 = vector.load %arg19[%933, %c0_236] : memref<64x128xf32, #tpu.memory_space<vmem>>, vector<8x128xf32>
    %cst_237 = arith.constant dense<0.000000e+00> : vector<8x128xf32>
    %935 = tpu.matmul %902, %512, %cst_237 {dimension_numbers = #tpu.dot_dimension_numbers<[1], [0], [0], [1], [0, 0, 1, 1], [], []>} : vector<8x32xf32>, vector<32x128xf32>, vector<8x128xf32> -> vector<8x128xf32>
    %936 = arith.addf %934, %935 : vector<8x128xf32>
    %937 = arith.index_cast %932 : i32 to index
    %c0_238 = arith.constant 0 : index
    %938 = vector.load %arg20[%937, %c0_238] : memref<64x128xf32, #tpu.memory_space<vmem>>, vector<8x128xf32>
    %cst_239 = arith.constant dense<0.000000e+00> : vector<8x128xf32>
    %939 = tpu.matmul %923, %513, %cst_239 {dimension_numbers = #tpu.dot_dimension_numbers<[1], [0], [0], [1], [0, 0, 1, 1], [], []>} : vector<8x32xf32>, vector<32x128xf32>, vector<8x128xf32> -> vector<8x128xf32>
    %940 = arith.addf %938, %939 : vector<8x128xf32>
    %941 = vector.extract_strided_slice %936 {offsets = [0, 0], sizes = [8, 64], strides = [1, 1]} : vector<8x128xf32> to vector<8x64xf32>
    %942 = arith.negf %941 : vector<8x64xf32>
    %943 = math.exp %942 : vector<8x64xf32>
    %cst_240 = arith.constant 1.000000e+00 : f32
    %944 = vector.broadcast %cst_240 : f32 to vector<8x64xf32>
    %945 = arith.addf %944, %943 : vector<8x64xf32>
    %946 = arith.divf %944, %945 : vector<8x64xf32>
    %947 = vector.extract_strided_slice %946 {offsets = [0, 0], sizes = [8, 32], strides = [1, 1]} : vector<8x64xf32> to vector<8x32xf32>
    %948 = vector.extract_strided_slice %946 {offsets = [0, 32], sizes = [8, 32], strides = [1, 1]} : vector<8x64xf32> to vector<8x32xf32>
    %949 = vector.extract_strided_slice %936 {offsets = [0, 64], sizes = [8, 32], strides = [1, 1]} : vector<8x128xf32> to vector<8x32xf32>
    %950 = math.tanh %949 : vector<8x32xf32>
    %951 = vector.extract_strided_slice %936 {offsets = [0, 96], sizes = [8, 32], strides = [1, 1]} : vector<8x128xf32> to vector<8x32xf32>
    %952 = arith.negf %951 : vector<8x32xf32>
    %953 = math.exp %952 : vector<8x32xf32>
    %cst_241 = arith.constant 1.000000e+00 : f32
    %954 = vector.broadcast %cst_241 : f32 to vector<8x32xf32>
    %955 = arith.addf %954, %953 : vector<8x32xf32>
    %956 = arith.divf %954, %955 : vector<8x32xf32>
    %957 = arith.mulf %948, %900 : vector<8x32xf32>
    %958 = arith.mulf %947, %950 : vector<8x32xf32>
    %959 = arith.addf %957, %958 : vector<8x32xf32>
    %960 = math.tanh %959 : vector<8x32xf32>
    %961 = arith.mulf %956, %960 : vector<8x32xf32>
    %962 = vector.extract_strided_slice %940 {offsets = [0, 0], sizes = [8, 64], strides = [1, 1]} : vector<8x128xf32> to vector<8x64xf32>
    %963 = arith.negf %962 : vector<8x64xf32>
    %964 = math.exp %963 : vector<8x64xf32>
    %cst_242 = arith.constant 1.000000e+00 : f32
    %965 = vector.broadcast %cst_242 : f32 to vector<8x64xf32>
    %966 = arith.addf %965, %964 : vector<8x64xf32>
    %967 = arith.divf %965, %966 : vector<8x64xf32>
    %968 = vector.extract_strided_slice %967 {offsets = [0, 0], sizes = [8, 32], strides = [1, 1]} : vector<8x64xf32> to vector<8x32xf32>
    %969 = vector.extract_strided_slice %967 {offsets = [0, 32], sizes = [8, 32], strides = [1, 1]} : vector<8x64xf32> to vector<8x32xf32>
    %970 = vector.extract_strided_slice %940 {offsets = [0, 64], sizes = [8, 32], strides = [1, 1]} : vector<8x128xf32> to vector<8x32xf32>
    %971 = math.tanh %970 : vector<8x32xf32>
    %972 = vector.extract_strided_slice %940 {offsets = [0, 96], sizes = [8, 32], strides = [1, 1]} : vector<8x128xf32> to vector<8x32xf32>
    %973 = arith.negf %972 : vector<8x32xf32>
    %974 = math.exp %973 : vector<8x32xf32>
    %cst_243 = arith.constant 1.000000e+00 : f32
    %975 = vector.broadcast %cst_243 : f32 to vector<8x32xf32>
    %976 = arith.addf %975, %974 : vector<8x32xf32>
    %977 = arith.divf %975, %976 : vector<8x32xf32>
    %978 = arith.mulf %969, %921 : vector<8x32xf32>
    %979 = arith.mulf %968, %971 : vector<8x32xf32>
    %980 = arith.addf %978, %979 : vector<8x32xf32>
    %981 = math.tanh %980 : vector<8x32xf32>
    %982 = arith.mulf %977, %981 : vector<8x32xf32>
    %983 = arith.addf %924, %961 : vector<8x32xf32>
    %984 = arith.addf %925, %982 : vector<8x32xf32>
    %985 = arith.maximumf %926, %961 : vector<8x32xf32>
    %986 = arith.maximumf %927, %982 : vector<8x32xf32>
    %c8_i32_244 = arith.constant 8 : i32
    %cst_245 = arith.constant 1.250000e-01 : f32
    %987 = vector.broadcast %cst_245 : f32 to vector<8x32xf32>
    %988 = arith.mulf %983, %987 : vector<8x32xf32>
    %cst_246 = arith.constant 1.250000e-01 : f32
    %989 = vector.broadcast %cst_246 : f32 to vector<8x32xf32>
    %990 = arith.mulf %984, %989 : vector<8x32xf32>
    %991 = tpu.concatenate %985, %986, %988, %990 in 1 : vector<8x32xf32>, vector<8x32xf32>, vector<8x32xf32>, vector<8x32xf32> -> vector<8x128xf32>
    %c0_247 = arith.constant 0 : index
    %c0_248 = arith.constant 0 : index
    %992 = vector.load %arg14[%c0_247, %c0_248] : memref<128x256xf32, #tpu.memory_space<vmem>>, vector<128x256xf32>
    %cst_249 = arith.constant dense<0.000000e+00> : vector<8x256xf32>
    %993 = tpu.matmul %991, %992, %cst_249 {dimension_numbers = #tpu.dot_dimension_numbers<[1], [0], [0], [1], [0, 0, 1, 1], [], []>} : vector<8x128xf32>, vector<128x256xf32>, vector<8x256xf32> -> vector<8x256xf32>
    %c0_250 = arith.constant 0 : index
    %c0_251 = arith.constant 0 : index
    %994 = vector.load %arg15[%c0_250, %c0_251] : memref<1x256xf32, #tpu.memory_space<vmem>>, vector<1x256xf32>
    %995 = vector.broadcast %994 : vector<1x256xf32> to vector<8x256xf32>
    %996 = arith.addf %993, %995 : vector<8x256xf32>
    %cst_252 = arith.constant 0.000000e+00 : f32
    %997 = vector.broadcast %cst_252 : f32 to vector<8x256xf32>
    %998 = arith.maximumf %996, %997 : vector<8x256xf32>
    %999 = vector.extract_strided_slice %998 {offsets = [0, 0], sizes = [8, 128], strides = [1, 1]} : vector<8x256xf32> to vector<8x128xf32>
    %1000 = arith.addf %991, %999 : vector<8x128xf32>
    %1001 = vector.extract_strided_slice %998 {offsets = [0, 128], sizes = [8, 128], strides = [1, 1]} : vector<8x256xf32> to vector<8x128xf32>
    %1002 = arith.addf %1000, %1001 : vector<8x128xf32>
    %c0_253 = arith.constant 0 : index
    %c0_254 = arith.constant 0 : index
    %1003 = vector.load %arg16[%c0_253, %c0_254] : memref<128x128xf32, #tpu.memory_space<vmem>>, vector<128x128xf32>
    %cst_255 = arith.constant dense<0.000000e+00> : vector<8x128xf32>
    %1004 = tpu.matmul %1002, %1003, %cst_255 {dimension_numbers = #tpu.dot_dimension_numbers<[1], [0], [0], [1], [0, 0, 1, 1], [], []>} : vector<8x128xf32>, vector<128x128xf32>, vector<8x128xf32> -> vector<8x128xf32>
    %c0_256 = arith.constant 0 : index
    %c0_257 = arith.constant 0 : index
    %1005 = vector.load %arg17[%c0_256, %c0_257] : memref<1x128xf32, #tpu.memory_space<vmem>>, vector<1x128xf32>
    %1006 = vector.broadcast %1005 : vector<1x128xf32> to vector<8x128xf32>
    %1007 = arith.addf %1004, %1006 : vector<8x128xf32>
    %c0_258 = arith.constant 0 : index
    %c0_259 = arith.constant 0 : index
    %1008 = vector.load %arg18[%c0_258, %c0_259] : memref<8x128xf32, #tpu.memory_space<vmem>>, vector<8x128xf32>
    tpu.vector_store %arg18[%c0_258, %c0_259], %1007 {strides = array<i32>} : memref<8x128xf32, #tpu.memory_space<vmem>>, vector<8x128xf32>,
    return
  }
  func.func @transform_0(%arg0: i32) -> (i32, i32) {
    %c0_i32 = arith.constant 0 : i32
    %c0_i32_0 = arith.constant 0 : i32
    return %arg0, %c0_i32 : i32, i32
  }
  func.func @transform_1(%arg0: i32) -> (i32, i32) {
    %c0_i32 = arith.constant 0 : i32
    %c0_i32_0 = arith.constant 0 : i32
    %c0_i32_1 = arith.constant 0 : i32
    return %c0_i32, %c0_i32_0 : i32, i32
  }
  func.func @transform_2(%arg0: i32) -> (i32, i32) {
    %c0_i32 = arith.constant 0 : i32
    %c0_i32_0 = arith.constant 0 : i32
    %c0_i32_1 = arith.constant 0 : i32
    return %c0_i32, %c0_i32_0 : i32, i32
  }
  func.func @transform_3(%arg0: i32) -> (i32, i32) {
    %c0_i32 = arith.constant 0 : i32
    %c0_i32_0 = arith.constant 0 : i32
    %c0_i32_1 = arith.constant 0 : i32
    return %c0_i32, %c0_i32_0 : i32, i32
  }
  func.func @transform_4(%arg0: i32) -> (i32, i32) {
    %c0_i32 = arith.constant 0 : i32
    %c0_i32_0 = arith.constant 0 : i32
    %c0_i32_1 = arith.constant 0 : i32
    return %c0_i32, %c0_i32_0 : i32, i32
  }
  func.func @transform_5(%arg0: i32) -> (i32, i32) {
    %c0_i32 = arith.constant 0 : i32
    %c0_i32_0 = arith.constant 0 : i32
    %c0_i32_1 = arith.constant 0 : i32
    return %c0_i32, %c0_i32_0 : i32, i32
  }
  func.func @transform_6(%arg0: i32) -> (i32, i32) {
    %c0_i32 = arith.constant 0 : i32
    %c0_i32_0 = arith.constant 0 : i32
    %c0_i32_1 = arith.constant 0 : i32
    return %c0_i32, %c0_i32_0 : i32, i32
  }
  func.func @transform_7(%arg0: i32) -> (i32, i32) {
    %c0_i32 = arith.constant 0 : i32
    %c0_i32_0 = arith.constant 0 : i32
    %c0_i32_1 = arith.constant 0 : i32
    return %c0_i32, %c0_i32_0 : i32, i32
  }
  func.func @transform_8(%arg0: i32) -> (i32, i32) {
    %c0_i32 = arith.constant 0 : i32
    %c0_i32_0 = arith.constant 0 : i32
    %c0_i32_1 = arith.constant 0 : i32
    return %c0_i32, %c0_i32_0 : i32, i32
  }
  func.func @transform_9(%arg0: i32) -> (i32, i32) {
    %c0_i32 = arith.constant 0 : i32
    %c0_i32_0 = arith.constant 0 : i32
    %c0_i32_1 = arith.constant 0 : i32
    return %c0_i32, %c0_i32_0 : i32, i32
  }
  func.func @transform_10(%arg0: i32) -> (i32, i32) {
    %c0_i32 = arith.constant 0 : i32
    %c0_i32_0 = arith.constant 0 : i32
    %c0_i32_1 = arith.constant 0 : i32
    return %c0_i32, %c0_i32_0 : i32, i32
  }
  func.func @transform_11(%arg0: i32) -> (i32, i32) {
    %c0_i32 = arith.constant 0 : i32
    %c0_i32_0 = arith.constant 0 : i32
    %c0_i32_1 = arith.constant 0 : i32
    return %c0_i32, %c0_i32_0 : i32, i32
  }
  func.func @transform_12(%arg0: i32) -> (i32, i32) {
    %c0_i32 = arith.constant 0 : i32
    %c0_i32_0 = arith.constant 0 : i32
    %c0_i32_1 = arith.constant 0 : i32
    return %c0_i32, %c0_i32_0 : i32, i32
  }
  func.func @transform_13(%arg0: i32) -> (i32, i32) {
    %c0_i32 = arith.constant 0 : i32
    %c0_i32_0 = arith.constant 0 : i32
    %c0_i32_1 = arith.constant 0 : i32
    return %c0_i32, %c0_i32_0 : i32, i32
  }
  func.func @transform_14(%arg0: i32) -> (i32, i32) {
    %c0_i32 = arith.constant 0 : i32
    %c0_i32_0 = arith.constant 0 : i32
    %c0_i32_1 = arith.constant 0 : i32
    return %c0_i32, %c0_i32_0 : i32, i32
  }
  func.func @transform_15(%arg0: i32) -> (i32, i32) {
    %c0_i32 = arith.constant 0 : i32
    %c0_i32_0 = arith.constant 0 : i32
    %c0_i32_1 = arith.constant 0 : i32
    return %c0_i32, %c0_i32_0 : i32, i32
  }
  func.func @transform_16(%arg0: i32) -> (i32, i32) {
    %c0_i32 = arith.constant 0 : i32
    %c0_i32_0 = arith.constant 0 : i32
    %c0_i32_1 = arith.constant 0 : i32
    return %c0_i32, %c0_i32_0 : i32, i32
  }
  func.func @transform_17(%arg0: i32) -> (i32, i32) {
    %c0_i32 = arith.constant 0 : i32
    %c0_i32_0 = arith.constant 0 : i32
    return %arg0, %c0_i32 : i32, i32
  }
}

</mosaic_0001>

<llo_original>
// kernel: jigsaw_forward.1
$region0: #{jigsaw_forward.1}
  #allocation0 [shape = 'u32[]', space=smem, size = 0x4, offset = 0x4, fixed_abs, tag = 'smem constant byte address 0x4 - core index']
  #allocation1 [shape = 'u32[144,128]{1,0:T(1,128)}', space=vmem, size = 0x12000, scoped, tag = 'internal scratch']
  #allocation2 [shape = 'f32[64,128]{1,0:T(8,128)}', space=vmem, size = 0x8000, scoped, tag = 'scratch operand']
  #allocation3 [shape = 'f32[64,128]{1,0:T(8,128)}', space=vmem, size = 0x8000, scoped, tag = 'scratch operand']
  #allocation4 [shape = 'f32[64,32]{1,0:T(8,128)}', space=vmem, size = 0x8000, scoped, tag = 'scratch operand']
  #allocation5 [shape = 'f32[64,32]{1,0:T(8,128)}', space=vmem, size = 0x8000, scoped, tag = 'scratch operand']
  %s0 = inlined_call_operand.vmem [shape: bf16[64,32], index: 0, kind: input, shape index: {}]
  %s1 = inlined_call_operand.hbm [shape: bf16[32,128], index: 1, kind: input, shape index: {}]
  %s2 = inlined_call_operand.hbm [shape: bf16[32,128], index: 2, kind: input, shape index: {}]
  %s3 = inlined_call_operand.hbm [shape: f32[1,128], index: 3, kind: input, shape index: {}]
  %s4 = inlined_call_operand.hbm [shape: f32[1,128], index: 4, kind: input, shape index: {}]
  %s5 = inlined_call_operand.vmem [shape: f32[32,128], index: 5, kind: input, shape index: {}]
  %s6 = inlined_call_operand.vmem [shape: f32[32,128], index: 6, kind: input, shape index: {}]
  %s7 = inlined_call_operand.vmem [shape: bf16[64,128], index: 7, kind: input, shape index: {}]
  %s8 = inlined_call_operand.vmem [shape: bf16[64,128], index: 8, kind: input, shape index: {}]
  %s9 = inlined_call_operand.hbm [shape: f32[1,128], index: 9, kind: input, shape index: {}]
  %s10 = inlined_call_operand.hbm [shape: f32[1,128], index: 10, kind: input, shape index: {}]
  %s11 = inlined_call_operand.hbm [shape: f32[32,128], index: 11, kind: input, shape index: {}]
  %s12 = inlined_call_operand.hbm [shape: f32[32,128], index: 12, kind: input, shape index: {}]
  %s13 = inlined_call_operand.vmem [shape: f32[128,256], index: 13, kind: input, shape index: {}]
  %s14 = inlined_call_operand.hbm [shape: f32[1,256], index: 14, kind: input, shape index: {}]
  %s15 = inlined_call_operand.vmem [shape: f32[128,128], index: 15, kind: input, shape index: {}]
  %s16 = inlined_call_operand.hbm [shape: f32[1,128], index: 16, kind: input, shape index: {}]
  %s17 = inlined_call_operand.vmem [shape: f32[8,128], index: 17, kind: output, shape index: {}]
  %s18 = sld [smem:[#allocation0]]
  $region118: #{jigsaw_forward.1} parent=0
    _
  %s20 = ssub.s32 1, %s18
  %s21 = scalar_select 0, %s20, %s18
  $region1: #{jigsaw_forward.1} parent=0
    #allocation6 [shape = 'u8[8192]{0}', space=vmem, size = 0x2000, scoped, tag = 'input window, operand 1, single buffered']
    #allocation7 [shape = 's32[1]{0}', space=sflag, size = 0x4, scoped, tag = 'scoped memory for jigsaw_forward.1']
    #allocation8 [shape = 'u8[8192]{0}', space=vmem, size = 0x2000, scoped, tag = 'input window, operand 2, single buffered']
    #allocation9 [shape = 's32[1]{0}', space=sflag, size = 0x4, scoped, tag = 'scoped memory for jigsaw_forward.1']
    #allocation10 [shape = 'u8[512]{0}', space=vmem, size = 0x400, scoped, tag = 'input window, operand 3, single buffered']
    #allocation11 [shape = 'u8[512]{0}', space=vmem, size = 0x400, scoped, tag = 'input window, operand 4, single buffered']
    #allocation12 [shape = 's32[1]{0}', space=sflag, size = 0x4, scoped, tag = 'scoped memory for jigsaw_forward.1']
    #allocation13 [shape = 'u8[512]{0}', space=vmem, size = 0x400, scoped, tag = 'input window, operand 9, single buffered']
    #allocation14 [shape = 'u8[512]{0}', space=vmem, size = 0x400, scoped, tag = 'input window, operand 10, single buffered']
    #allocation15 [shape = 's32[1]{0}', space=sflag, size = 0x4, scoped, tag = 'scoped memory for jigsaw_forward.1']
    #allocation16 [shape = 'u8[16384]{0}', space=vmem, size = 0x4000, scoped, tag = 'input window, operand 11, single buffered']
    #allocation17 [shape = 'u8[16384]{0}', space=vmem, size = 0x4000, scoped, tag = 'input window, operand 12, single buffered']
    #allocation18 [shape = 's32[1]{0}', space=sflag, size = 0x4, scoped, tag = 'scoped memory for jigsaw_forward.1']
    #allocation19 [shape = 'u8[1024]{0}', space=vmem, size = 0x400, scoped, tag = 'input window, operand 14, single buffered']
    #allocation20 [shape = 'u8[512]{0}', space=vmem, size = 0x400, scoped, tag = 'input window, operand 16, single buffered']
    #allocation21 [shape = 's32[1]{0}', space=sflag, size = 0x4, scoped, tag = 'scoped memory for jigsaw_forward.1']
    %22 = vsyncpa [#allocation7], 0
    %23 = vsyncpa [#allocation9], 0
    %24 = vsyncpa [#allocation12], 0
    %25 = vsyncpa [#allocation15], 0
    %26 = vsyncpa [#allocation18], 0
    %27 = vsyncpa [#allocation21], 0
    // Predicated region
    $region2: #{jigsaw_forward.1} parent=1 // pred_check
      _
    $region3: #{jigsaw_forward.1} parent=1 // pred_check_branch
      %29 = sbr.rel (0) target = $region5
    $region4: #{jigsaw_forward.1} parent=1 // pred_region
      _
    $region5: #{jigsaw_forward.1} parent=1 // pred_fallthru
      _
    // Predicated region
    $region6: #{jigsaw_forward.1} parent=1 // pred_check
      _
    $region7: #{jigsaw_forward.1} parent=1 // pred_check_branch
      %31 = sbr.rel (0) target = $region9
    $region8: #{jigsaw_forward.1} parent=1 // pred_region
      %s33 = ssub.s32 256, 256
      %34 = vsyncadd [#allocation7], %s33
      %s35 = sshll.u32 [#allocation6], 4
      %s36 = int_to_ptr.vmem [resolvable:$true] %s35
      %41 = dma.hbm_to_vmem [thread:$0]  %s1, 256, %s36, [#allocation7], 64, 64, 4
    $region9: #{jigsaw_forward.1} parent=1 // pred_fallthru
      _
    // Predicated region
    $region10: #{jigsaw_forward.1} parent=1 // pred_check
      _
    $region11: #{jigsaw_forward.1} parent=1 // pred_check_branch
      %43 = sbr.rel (0) target = $region13
    $region12: #{jigsaw_forward.1} parent=1 // pred_region
      %s45 = ssub.s32 256, 256
      %46 = vsyncadd [#allocation9], %s45
      %s47 = sshll.u32 [#allocation8], 4
      %s48 = int_to_ptr.vmem [resolvable:$true] %s47
      %53 = dma.hbm_to_vmem [thread:$0]  %s2, 256, %s48, [#allocation9], 64, 64, 4
    $region13: #{jigsaw_forward.1} parent=1 // pred_fallthru
      _
    // Predicated region
    $region14: #{jigsaw_forward.1} parent=1 // pred_check
      _
    $region15: #{jigsaw_forward.1} parent=1 // pred_check_branch
      %55 = sbr.rel (0) target = $region17
    $region16: #{jigsaw_forward.1} parent=1 // pred_region
      %s57 = ssub.s32 16, 16
      %58 = vsyncadd [#allocation9], %s57
      %s60 = sshll.u32 [#allocation10], 4
      %s61 = int_to_ptr.vmem [resolvable:$true] %s60
      %63 = dma.hbm_to_vmem [thread:$0]  %s3, 16, %s61, [#allocation9]
    $region17: #{jigsaw_forward.1} parent=1 // pred_fallthru
      _
    // Predicated region
    $region18: #{jigsaw_forward.1} parent=1 // pred_check
      _
    $region19: #{jigsaw_forward.1} parent=1 // pred_check_branch
      %65 = sbr.rel (0) target = $region21
    $region20: #{jigsaw_forward.1} parent=1 // pred_region
      %s67 = ssub.s32 16, 16
      %68 = vsyncadd [#allocation12], %s67
      %s70 = sshll.u32 [#allocation11], 4
      %s71 = int_to_ptr.vmem [resolvable:$true] %s70
      %73 = dma.hbm_to_vmem [thread:$0]  %s4, 16, %s71, [#allocation12]
    $region21: #{jigsaw_forward.1} parent=1 // pred_fallthru
      _
    // Predicated region
    $region22: #{jigsaw_forward.1} parent=1 // pred_check
      _
    $region23: #{jigsaw_forward.1} parent=1 // pred_check_branch
      %75 = sbr.rel (0) target = $region25
    $region24: #{jigsaw_forward.1} parent=1 // pred_region
      _
    $region25: #{jigsaw_forward.1} parent=1 // pred_fallthru
      _
    // Predicated region
    $region26: #{jigsaw_forward.1} parent=1 // pred_check
      _
    $region27: #{jigsaw_forward.1} parent=1 // pred_check_branch
      %77 = sbr.rel (0) target = $region29
    $region28: #{jigsaw_forward.1} parent=1 // pred_region
      _
    $region29: #{jigsaw_forward.1} parent=1 // pred_fallthru
      _
    // Predicated region
    $region30: #{jigsaw_forward.1} parent=1 // pred_check
      _
    $region31: #{jigsaw_forward.1} parent=1 // pred_check_branch
      %79 = sbr.rel (0) target = $region33
    $region32: #{jigsaw_forward.1} parent=1 // pred_region
      _
    $region33: #{jigsaw_forward.1} parent=1 // pred_fallthru
      _
    // Predicated region
    $region34: #{jigsaw_forward.1} parent=1 // pred_check
      _
    $region35: #{jigsaw_forward.1} parent=1 // pred_check_branch
      %81 = sbr.rel (0) target = $region37
    $region36: #{jigsaw_forward.1} parent=1 // pred_region
      _
    $region37: #{jigsaw_forward.1} parent=1 // pred_fallthru
      _
    // Predicated region
    $region38: #{jigsaw_forward.1} parent=1 // pred_check
      _
    $region39: #{jigsaw_forward.1} parent=1 // pred_check_branch
      %83 = sbr.rel (0) target = $region41
    $region40: #{jigsaw_forward.1} parent=1 // pred_region
      %s85 = ssub.s32 16, 16
      %86 = vsyncadd [#allocation12], %s85
      %s88 = sshll.u32 [#allocation13], 4
      %s89 = int_to_ptr.vmem [resolvable:$true] %s88
      %91 = dma.hbm_to_vmem [thread:$0]  %s9, 16, %s89, [#allocation12]
    $region41: #{jigsaw_forward.1} parent=1 // pred_fallthru
      _
    // Predicated region
    $region42: #{jigsaw_forward.1} parent=1 // pred_check
      _
    $region43: #{jigsaw_forward.1} parent=1 // pred_check_branch
      %93 = sbr.rel (0) target = $region45
    $region44: #{jigsaw_forward.1} parent=1 // pred_region
      %s95 = ssub.s32 16, 16
      %96 = vsyncadd [#allocation15], %s95
      %s98 = sshll.u32 [#allocation14], 4
      %s99 = int_to_ptr.vmem [resolvable:$true] %s98
      %101 = dma.hbm_to_vmem [thread:$0]  %s10, 16, %s99, [#allocation15]
    $region45: #{jigsaw_forward.1} parent=1 // pred_fallthru
      _
    // Predicated region
    $region46: #{jigsaw_forward.1} parent=1 // pred_check
      _
    $region47: #{jigsaw_forward.1} parent=1 // pred_check_branch
      %103 = sbr.rel (0) target = $region49
    $region48: #{jigsaw_forward.1} parent=1 // pred_region
      %s105 = ssub.s32 512, 512
      %106 = vsyncadd [#allocation15], %s105
      %s107 = sshll.u32 [#allocation16], 4
      %s108 = int_to_ptr.vmem [resolvable:$true] %s107
      %113 = dma.hbm_to_vmem [thread:$0]  %s11, 512, %s108, [#allocation15], 128, 128, 8
    $region49: #{jigsaw_forward.1} parent=1 // pred_fallthru
      _
    // Predicated region
    $region50: #{jigsaw_forward.1} parent=1 // pred_check
      _
    $region51: #{jigsaw_forward.1} parent=1 // pred_check_branch
      %115 = sbr.rel (0) target = $region53
    $region52: #{jigsaw_forward.1} parent=1 // pred_region
      %s117 = ssub.s32 512, 512
      %118 = vsyncadd [#allocation18], %s117
      %s119 = sshll.u32 [#allocation17], 4
      %s120 = int_to_ptr.vmem [resolvable:$true] %s119
      %125 = dma.hbm_to_vmem [thread:$0]  %s12, 512, %s120, [#allocation18], 128, 128, 8
    $region53: #{jigsaw_forward.1} parent=1 // pred_fallthru
      _
    // Predicated region
    $region54: #{jigsaw_forward.1} parent=1 // pred_check
      _
    $region55: #{jigsaw_forward.1} parent=1 // pred_check_branch
      %127 = sbr.rel (0) target = $region57
    $region56: #{jigsaw_forward.1} parent=1 // pred_region
      _
    $region57: #{jigsaw_forward.1} parent=1 // pred_fallthru
      _
    // Predicated region
    $region58: #{jigsaw_forward.1} parent=1 // pred_check
      _
    $region59: #{jigsaw_forward.1} parent=1 // pred_check_branch
      %129 = sbr.rel (0) target = $region61
    $region60: #{jigsaw_forward.1} parent=1 // pred_region
      %s131 = ssub.s32 32, 32
      %132 = vsyncadd [#allocation18], %s131
      %s134 = sshll.u32 [#allocation19], 4
      %s135 = int_to_ptr.vmem [resolvable:$true] %s134
      %137 = dma.hbm_to_vmem [thread:$0]  %s14, 32, %s135, [#allocation18]
    $region61: #{jigsaw_forward.1} parent=1 // pred_fallthru
      _
    // Predicated region
    $region62: #{jigsaw_forward.1} parent=1 // pred_check
      _
    $region63: #{jigsaw_forward.1} parent=1 // pred_check_branch
      %139 = sbr.rel (0) target = $region65
    $region64: #{jigsaw_forward.1} parent=1 // pred_region
      _
    $region65: #{jigsaw_forward.1} parent=1 // pred_fallthru
      _
    // Predicated region
    $region66: #{jigsaw_forward.1} parent=1 // pred_check
      _
    $region67: #{jigsaw_forward.1} parent=1 // pred_check_branch
      %141 = sbr.rel (0) target = $region69
    $region68: #{jigsaw_forward.1} parent=1 // pred_region
      %s143 = ssub.s32 16, 16
      %144 = vsyncadd [#allocation21], %s143
      %s146 = sshll.u32 [#allocation20], 4
      %s147 = int_to_ptr.vmem [resolvable:$true] %s146
      %149 = dma.hbm_to_vmem [thread:$0]  %s16, 16, %s147, [#allocation21]
    $region69: #{jigsaw_forward.1} parent=1 // pred_fallthru
      _
    // Predicated region
    $region70: #{jigsaw_forward.1} parent=1 // pred_check
      _
    $region71: #{jigsaw_forward.1} parent=1 // pred_check_branch
      %151 = sbr.rel (0) target = $region73
    $region72: #{jigsaw_forward.1} parent=1 // pred_region
      %152 = dma.done [#allocation7], 256
    $region73: #{jigsaw_forward.1} parent=1 // pred_fallthru
      _
    // Predicated region
    $region74: #{jigsaw_forward.1} parent=1 // pred_check
      _
    $region75: #{jigsaw_forward.1} parent=1 // pred_check_branch
      %154 = sbr.rel (0) target = $region77
    $region76: #{jigsaw_forward.1} parent=1 // pred_region
      %155 = dma.done [#allocation9], 256
    $region77: #{jigsaw_forward.1} parent=1 // pred_fallthru
      _
    // Predicated region
    $region78: #{jigsaw_forward.1} parent=1 // pred_check
      _
    $region79: #{jigsaw_forward.1} parent=1 // pred_check_branch
      %157 = sbr.rel (0) target = $region81
    $region80: #{jigsaw_forward.1} parent=1 // pred_region
      %158 = dma.done [#allocation9], 16
    $region81: #{jigsaw_forward.1} parent=1 // pred_fallthru
      _
    // Predicated region
    $region82: #{jigsaw_forward.1} parent=1 // pred_check
      _
    $region83: #{jigsaw_forward.1} parent=1 // pred_check_branch
      %160 = sbr.rel (0) target = $region85
    $region84: #{jigsaw_forward.1} parent=1 // pred_region
      %161 = dma.done [#allocation12], 16
    $region85: #{jigsaw_forward.1} parent=1 // pred_fallthru
      _
    // Predicated region
    $region86: #{jigsaw_forward.1} parent=1 // pred_check
      _
    $region87: #{jigsaw_forward.1} parent=1 // pred_check_branch
      %163 = sbr.rel (0) target = $region89
    $region88: #{jigsaw_forward.1} parent=1 // pred_region
      %164 = dma.done [#allocation12], 16
    $region89: #{jigsaw_forward.1} parent=1 // pred_fallthru
      _
    // Predicated region
    $region90: #{jigsaw_forward.1} parent=1 // pred_check
      _
    $region91: #{jigsaw_forward.1} parent=1 // pred_check_branch
      %166 = sbr.rel (0) target = $region93
    $region92: #{jigsaw_forward.1} parent=1 // pred_region
      %167 = dma.done [#allocation15], 16
    $region93: #{jigsaw_forward.1} parent=1 // pred_fallthru
      _
    // Predicated region
    $region94: #{jigsaw_forward.1} parent=1 // pred_check
      _
    $region95: #{jigsaw_forward.1} parent=1 // pred_check_branch
      %169 = sbr.rel (0) target = $region97
    $region96: #{jigsaw_forward.1} parent=1 // pred_region
      %170 = dma.done [#allocation15], 512
    $region97: #{jigsaw_forward.1} parent=1 // pred_fallthru
      _
    // Predicated region
    $region98: #{jigsaw_forward.1} parent=1 // pred_check
      _
    $region99: #{jigsaw_forward.1} parent=1 // pred_check_branch
      %172 = sbr.rel (0) target = $region101
    $region100: #{jigsaw_forward.1} parent=1 // pred_region
      %173 = dma.done [#allocation18], 512
    $region101: #{jigsaw_forward.1} parent=1 // pred_fallthru
      _
    // Predicated region
    $region102: #{jigsaw_forward.1} parent=1 // pred_check
      _
    $region103: #{jigsaw_forward.1} parent=1 // pred_check_branch
      %175 = sbr.rel (0) target = $region105
    $region104: #{jigsaw_forward.1} parent=1 // pred_region
      %176 = dma.done [#allocation18], 32
    $region105: #{jigsaw_forward.1} parent=1 // pred_fallthru
      _
    // Predicated region
    $region106: #{jigsaw_forward.1} parent=1 // pred_check
      _
    $region107: #{jigsaw_forward.1} parent=1 // pred_check_branch
      %178 = sbr.rel (0) target = $region109
    $region108: #{jigsaw_forward.1} parent=1 // pred_region
      %179 = dma.done [#allocation21], 16
    $region109: #{jigsaw_forward.1} parent=1 // pred_fallthru
      _
    %v181 = vld [vmem:[%s0] sm:$0xf]
    %v182 = vld [vmem:[%s0 + $0x4] sm:$0xf]
    %v183 = vld [vmem:[%s0 + $0x8] sm:$0xf]
    %v184 = vld [vmem:[%s0 + $0xc] sm:$0xf]
    %v185 = vld [vmem:[%s0 + $0x10] sm:$0xf]
    %v186 = vld [vmem:[%s0 + $0x14] sm:$0xf]
    %v187 = vld [vmem:[%s0 + $0x18] sm:$0xf]
    %v188 = vld [vmem:[%s0 + $0x1c] sm:$0xf]
    %v189 = vld [vmem:[#allocation6] sm:$0xf]
    %v190 = vld [vmem:[#allocation6 + $0x4] sm:$0xf]
    %v191 = vld [vmem:[#allocation6 + $0x8] sm:$0xf]
    %v192 = vld [vmem:[#allocation6 + $0xc] sm:$0xf]
    %v193 = vld [vmem:[#allocation10] sm:$0x1]
    %v195 = vlaneseq
    %v196 = vshrl.u32 %v195, 7
    %v197 = vsub.s32 0, %v196
    %v198 = vrot.slane %v193, %v197
    %v208 = vunpack.c.l.b16 %v181
    %v209 = vunpack.c.l.b16 %v182
    %v210 = vunpack.c.l.b16 %v183
    %v211 = vunpack.c.l.b16 %v184
    %v212 = vunpack.c.l.b16 %v185
    %v213 = vunpack.c.l.b16 %v186
    %v214 = vunpack.c.l.b16 %v187
    %v215 = vunpack.c.l.b16 %v188
    %v216 = vpack.c.b16 %v209, %v208
    %v217 = vpack.c.b16 %v211, %v210
    %v218 = vpack.c.b16 %v213, %v212
    %v219 = vpack.c.b16 %v215, %v214
    %v224 = vunpack.c.l.b16 %v189
    %v225 = vunpack.c.l.b16 %v190
    %v226 = vunpack.c.l.b16 %v191
    %v227 = vunpack.c.l.b16 %v192
    %v228 = vpack.c.b16 %v225, %v224
    %v229 = vpack.c.b16 %v227, %v226
    %vm232 = vcmask 261120
    %v234 = vsel %vm232, %v216, 0
    %v237 = vsel %vm232, %v217, 0
    %v240 = vsel %vm232, %v218, 0
    %v243 = vsel %vm232, %v219, 0
    %245 = vmatprep.subr.bf16.mxu0 0
    %246 = vmatpush1.bf16.msra.mxu0 %v228
    %247 = vmatprep.subr.bf16.mxu0 0
    %248 = vmatpush1.bf16.msra.mxu0 %v229
    %249 = vmatprep.subr.bf16.mxu0 0
    %250 = vmatpush1.bf16.msra.mxu0 0
    %251 = vmatprep.subr.bf16.mxu0 0
    %252 = vmatpush1.bf16.msra.mxu0 0
    %253 = vmatprep.subr.bf16.mxu0 0
    %254 = vmatpush1.bf16.msra.mxu0 0
    %255 = vmatprep.subr.bf16.mxu0 0
    %256 = vmatpush1.bf16.msra.mxu0 0
    %257 = vmatprep.subr.bf16.mxu0 0
    %258 = vmatpush1.bf16.msra.mxu0 0
    %259 = vmatprep.subr.bf16.mxu0 0
    %260 = vmatpush1.bf16.msra.mxu0 0
    %261 = vmatprep.subr.bf16.mxu0 0
    %262 = vmatpush1.bf16.msra.mxu0 0
    %263 = vmatprep.subr.bf16.mxu0 0
    %264 = vmatpush1.bf16.msra.mxu0 0
    %265 = vmatprep.subr.bf16.mxu0 0
    %266 = vmatpush1.bf16.msra.mxu0 0
    %267 = vmatprep.subr.bf16.mxu0 0
    %268 = vmatpush1.bf16.msra.mxu0 0
    %269 = vmatprep.subr.bf16.mxu0 0
    %270 = vmatpush1.bf16.msra.mxu0 0
    %271 = vmatprep.subr.bf16.mxu0 0
    %272 = vmatpush1.bf16.msra.mxu0 0
    %273 = vmatprep.subr.bf16.mxu0 0
    %274 = vmatpush1.bf16.msra.mxu0 0
    %275 = vmatprep.subr.bf16.mxu0 0
    %276 = vmatpush1.bf16.msra.mxu0 0
    %277 = vmatprep.mubr.bf16.mxu0 0
    %278 = vmatmul.mubr.bf16.gmra.mrb[0].mxu0 %v234
    %v279 = vpop.f32.mrb[0].mxu0
    %v280 = vadd.f32 %v198, %v279
    %v281 = vpop.f32.mrb[0].mxu0
    %v282 = vpop.f32.mrb[0].mxu0
    %v283 = vadd.f32 %v198, %v282
    %v284 = vpop.f32.mrb[0].mxu0
    %285 = vmatprep.mubr.bf16.mxu0 0
    %286 = vmatmul.mubr.bf16.gmra.mrb[0].mxu0 %v237
    %v287 = vpop.f32.mrb[0].mxu0
    %v288 = vadd.f32 %v198, %v287
    %v289 = vpop.f32.mrb[0].mxu0
    %v290 = vpop.f32.mrb[0].mxu0
    %v291 = vadd.f32 %v198, %v290
    %v292 = vpop.f32.mrb[0].mxu0
    %293 = vmatprep.mubr.bf16.mxu0 0
    %294 = vmatmul.mubr.bf16.gmra.mrb[0].mxu0 %v240
    %v295 = vpop.f32.mrb[0].mxu0
    %v296 = vadd.f32 %v198, %v295
    %v297 = vpop.f32.mrb[0].mxu0
    %v298 = vpop.f32.mrb[0].mxu0
    %v299 = vadd.f32 %v198, %v298
    %v300 = vpop.f32.mrb[0].mxu0
    %301 = vmatprep.mubr.bf16.mxu0 0
    %302 = vmatmul.mubr.bf16.gmra.mrb[0].mxu0 %v243
    %v303 = vpop.f32.mrb[0].mxu0
    %v304 = vadd.f32 %v198, %v303
    %v305 = vpop.f32.mrb[0].mxu0
    %v306 = vpop.f32.mrb[0].mxu0
    %v307 = vadd.f32 %v198, %v306
    %v308 = vpop.f32.mrb[0].mxu0
    %309 = vdwg.mxu0
    %310 = vst [vmem:[#allocation2] sm:$0xff] %v280
    %311 = vst [vmem:[#allocation2 + $0x8] sm:$0xff] %v283
    %312 = vst [vmem:[#allocation2 + $0x10] sm:$0xff] %v288
    %313 = vst [vmem:[#allocation2 + $0x18] sm:$0xff] %v291
    %314 = vst [vmem:[#allocation2 + $0x20] sm:$0xff] %v296
    %315 = vst [vmem:[#allocation2 + $0x28] sm:$0xff] %v299
    %316 = vst [vmem:[#allocation2 + $0x30] sm:$0xff] %v304
    %317 = vst [vmem:[#allocation2 + $0x38] sm:$0xff] %v307
    %v318 = vld [vmem:[#allocation8] sm:$0xf]
    %v319 = vld [vmem:[#allocation8 + $0x4] sm:$0xf]
    %v320 = vld [vmem:[#allocation8 + $0x8] sm:$0xf]
    %v321 = vld [vmem:[#allocation8 + $0xc] sm:$0xf]
    %v322 = vld [vmem:[#allocation11] sm:$0x1]
    %v324 = vlaneseq
    %v325 = vshrl.u32 %v324, 7
    %v326 = vsub.s32 0, %v325
    %v327 = vrot.slane %v322, %v326
    %v333 = vunpack.c.l.b16 %v318
    %v334 = vunpack.c.l.b16 %v319
    %v335 = vunpack.c.l.b16 %v320
    %v336 = vunpack.c.l.b16 %v321
    %v337 = vpack.c.b16 %v334, %v333
    %v338 = vpack.c.b16 %v336, %v335
    %341 = vmatprep.subr.bf16.mxu0 0
    %342 = vmatpush1.bf16.msra.mxu0 %v337
    %343 = vmatprep.subr.bf16.mxu0 0
    %344 = vmatpush1.bf16.msra.mxu0 %v338
    %345 = vmatprep.subr.bf16.mxu0 0
    %346 = vmatpush1.bf16.msra.mxu0 0
    %347 = vmatprep.subr.bf16.mxu0 0
    %348 = vmatpush1.bf16.msra.mxu0 0
    %349 = vmatprep.subr.bf16.mxu0 0
    %350 = vmatpush1.bf16.msra.mxu0 0
    %351 = vmatprep.subr.bf16.mxu0 0
    %352 = vmatpush1.bf16.msra.mxu0 0
    %353 = vmatprep.subr.bf16.mxu0 0
    %354 = vmatpush1.bf16.msra.mxu0 0
    %355 = vmatprep.subr.bf16.mxu0 0
    %356 = vmatpush1.bf16.msra.mxu0 0
    %357 = vmatprep.subr.bf16.mxu0 0
    %358 = vmatpush1.bf16.msra.mxu0 0
    %359 = vmatprep.subr.bf16.mxu0 0
    %360 = vmatpush1.bf16.msra.mxu0 0
    %361 = vmatprep.subr.bf16.mxu0 0
    %362 = vmatpush1.bf16.msra.mxu0 0
    %363 = vmatprep.subr.bf16.mxu0 0
    %364 = vmatpush1.bf16.msra.mxu0 0
    %365 = vmatprep.subr.bf16.mxu0 0
    %366 = vmatpush1.bf16.msra.mxu0 0
    %367 = vmatprep.subr.bf16.mxu0 0
    %368 = vmatpush1.bf16.msra.mxu0 0
    %369 = vmatprep.subr.bf16.mxu0 0
    %370 = vmatpush1.bf16.msra.mxu0 0
    %371 = vmatprep.subr.bf16.mxu0 0
    %372 = vmatpush1.bf16.msra.mxu0 0
    %373 = vmatprep.mubr.bf16.mxu0 0
    %374 = vmatmul.mubr.bf16.gmra.mrb[0].mxu0 %v234
    %v375 = vpop.f32.mrb[0].mxu0
    %v376 = vadd.f32 %v327, %v375
    %v377 = vpop.f32.mrb[0].mxu0
    %v378 = vpop.f32.mrb[0].mxu0
    %v379 = vadd.f32 %v327, %v378
    %v380 = vpop.f32.mrb[0].mxu0
    %381 = vmatprep.mubr.bf16.mxu0 0
    %382 = vmatmul.mubr.bf16.gmra.mrb[0].mxu0 %v237
    %v383 = vpop.f32.mrb[0].mxu0
    %v384 = vadd.f32 %v327, %v383
    %v385 = vpop.f32.mrb[0].mxu0
    %v386 = vpop.f32.mrb[0].mxu0
    %v387 = vadd.f32 %v327, %v386
    %v388 = vpop.f32.mrb[0].mxu0
    %389 = vmatprep.mubr.bf16.mxu0 0
    %390 = vmatmul.mubr.bf16.gmra.mrb[0].mxu0 %v240
    %v391 = vpop.f32.mrb[0].mxu0
    %v392 = vadd.f32 %v327, %v391
    %v393 = vpop.f32.mrb[0].mxu0
    %v394 = vpop.f32.mrb[0].mxu0
    %v395 = vadd.f32 %v327, %v394
    %v396 = vpop.f32.mrb[0].mxu0
    %397 = vmatprep.mubr.bf16.mxu0 0
    %398 = vmatmul.mubr.bf16.gmra.mrb[0].mxu0 %v243
    %v399 = vpop.f32.mrb[0].mxu0
    %v400 = vadd.f32 %v327, %v399
    %v401 = vpop.f32.mrb[0].mxu0
    %v402 = vpop.f32.mrb[0].mxu0
    %v403 = vadd.f32 %v327, %v402
    %v404 = vpop.f32.mrb[0].mxu0
    %405 = vdwg.mxu0
    %406 = vst [vmem:[#allocation3] sm:$0xff] %v376
    %407 = vst [vmem:[#allocation3 + $0x8] sm:$0xff] %v379
    %408 = vst [vmem:[#allocation3 + $0x10] sm:$0xff] %v384
    %409 = vst [vmem:[#allocation3 + $0x18] sm:$0xff] %v387
    %410 = vst [vmem:[#allocation3 + $0x20] sm:$0xff] %v392
    %411 = vst [vmem:[#allocation3 + $0x28] sm:$0xff] %v395
    %412 = vst [vmem:[#allocation3 + $0x30] sm:$0xff] %v400
    %413 = vst [vmem:[#allocation3 + $0x38] sm:$0xff] %v403
    %v414 = vld [vmem:[%s5] sm:$0xff]
    %v415 = vld [vmem:[%s5 + $0x8] sm:$0xff]
    %v416 = vld [vmem:[%s5 + $0x10] sm:$0xff]
    %v417 = vld [vmem:[%s5 + $0x18] sm:$0xff]
    %v418 = vld [vmem:[%s6] sm:$0xff]
    %v419 = vld [vmem:[%s6 + $0x8] sm:$0xff]
    %v420 = vld [vmem:[%s6 + $0x10] sm:$0xff]
    %v421 = vld [vmem:[%s6 + $0x18] sm:$0xff]
    %v422 = vld [vmem:[#allocation2] sm:$0xff]
    %v424 = vsel %vm232, 0.0, 0
    %426 = vmatprep.subr.mxu0 0.0
    %427 = vmatpush1.msra.mxu0 %v414
    %428 = vmatprep.subr.mxu0 0.0
    %429 = vmatpush1.msra.mxu0 %v415
    %430 = vmatprep.subr.mxu0 0.0
    %431 = vmatpush1.msra.mxu0 %v416
    %432 = vmatprep.subr.mxu0 0.0
    %433 = vmatpush1.msra.mxu0 %v417
    %434 = vmatprep.subr.mxu0 0.0
    %435 = vmatpush1.msra.mxu0 0.0
    %436 = vmatprep.subr.mxu0 0.0
    %437 = vmatpush1.msra.mxu0 0.0
    %438 = vmatprep.subr.mxu0 0.0
    %439 = vmatpush1.msra.mxu0 0.0
    %440 = vmatprep.subr.mxu0 0.0
    %441 = vmatpush1.msra.mxu0 0.0
    %442 = vmatprep.subr.mxu0 0.0
    %443 = vmatpush1.msra.mxu0 0.0
    %444 = vmatprep.subr.mxu0 0.0
    %445 = vmatpush1.msra.mxu0 0.0
    %446 = vmatprep.subr.mxu0 0.0
    %447 = vmatpush1.msra.mxu0 0.0
    %448 = vmatprep.subr.mxu0 0.0
    %449 = vmatpush1.msra.mxu0 0.0
    %450 = vmatprep.subr.mxu0 0.0
    %451 = vmatpush1.msra.mxu0 0.0
    %452 = vmatprep.subr.mxu0 0.0
    %453 = vmatpush1.msra.mxu0 0.0
    %454 = vmatprep.subr.mxu0 0.0
    %455 = vmatpush1.msra.mxu0 0.0
    %456 = vmatprep.subr.mxu0 0.0
    %457 = vmatpush1.msra.mxu0 0.0
    %458 = vmatprep.subr.mxu0 0.0
    %459 = vmatpush1.msra.mxu0 0.0
    %460 = vmatprep.subr.mxu0 0.0
    %461 = vmatpush1.msra.mxu0 0.0
    %462 = vmatprep.subr.mxu0 0.0
    %463 = vmatpush1.msra.mxu0 0.0
    %464 = vmatprep.subr.mxu0 0.0
    %465 = vmatpush1.msra.mxu0 0.0
    %466 = vmatprep.subr.mxu0 0.0
    %467 = vmatpush1.msra.mxu0 0.0
    %468 = vmatprep.subr.mxu0 0.0
    %469 = vmatpush1.msra.mxu0 0.0
    %470 = vmatprep.subr.mxu0 0.0
    %471 = vmatpush1.msra.mxu0 0.0
    %472 = vmatprep.subr.mxu0 0.0
    %473 = vmatpush1.msra.mxu0 0.0
    %474 = vmatprep.subr.mxu0 0.0
    %475 = vmatpush1.msra.mxu0 0.0
    %476 = vmatprep.subr.mxu0 0.0
    %477 = vmatpush1.msra.mxu0 0.0
    %478 = vmatprep.subr.mxu0 0.0
    %479 = vmatpush1.msra.mxu0 0.0
    %480 = vmatprep.subr.mxu0 0.0
    %481 = vmatpush1.msra.mxu0 0.0
    %482 = vmatprep.subr.mxu0 0.0
    %483 = vmatpush1.msra.mxu0 0.0
    %484 = vmatprep.subr.mxu0 0.0
    %485 = vmatpush1.msra.mxu0 0.0
    %486 = vmatprep.subr.mxu0 0.0
    %487 = vmatpush1.msra.mxu0 0.0
    %488 = vmatprep.subr.mxu0 0.0
    %489 = vmatpush1.msra.mxu0 0.0
    %490 = vmatprep.mubr.f32.mxu0 0.0
    %491 = vmatmul.mubr.f32.gmra.mrb[0].mxu0 %v424
    %v492 = vpop.f32.mrb[0].mxu0
    %v493 = vadd.f32 0.0, %v492
    %v494 = vpop.f32.mrb[0].mxu0
    %495 = vdwg.mxu0
    %v496 = vadd.f32 %v422, %v493
    %s497 = scalar_lea.vmem [#allocation3], 56
    %v498 = vld [vmem:[%s497] sm:$0xff]
    %499 = vmatprep.subr.mxu0 0.0
    %500 = vmatpush1.msra.mxu0 %v418
    %501 = vmatprep.subr.mxu0 0.0
    %502 = vmatpush1.msra.mxu0 %v419
    %503 = vmatprep.subr.mxu0 0.0
    %504 = vmatpush1.msra.mxu0 %v420
    %505 = vmatprep.subr.mxu0 0.0
    %506 = vmatpush1.msra.mxu0 %v421
    %507 = vmatprep.subr.mxu0 0.0
    %508 = vmatpush1.msra.mxu0 0.0
    %509 = vmatprep.subr.mxu0 0.0
    %510 = vmatpush1.msra.mxu0 0.0
    %511 = vmatprep.subr.mxu0 0.0
    %512 = vmatpush1.msra.mxu0 0.0
    %513 = vmatprep.subr.mxu0 0.0
    %514 = vmatpush1.msra.mxu0 0.0
    %515 = vmatprep.subr.mxu0 0.0
    %516 = vmatpush1.msra.mxu0 0.0
    %517 = vmatprep.subr.mxu0 0.0
    %518 = vmatpush1.msra.mxu0 0.0
    %519 = vmatprep.subr.mxu0 0.0
    %520 = vmatpush1.msra.mxu0 0.0
    %521 = vmatprep.subr.mxu0 0.0
    %522 = vmatpush1.msra.mxu0 0.0
    %523 = vmatprep.subr.mxu0 0.0
    %524 = vmatpush1.msra.mxu0 0.0
    %525 = vmatprep.subr.mxu0 0.0
    %526 = vmatpush1.msra.mxu0 0.0
    %527 = vmatprep.subr.mxu0 0.0
    %528 = vmatpush1.msra.mxu0 0.0
    %529 = vmatprep.subr.mxu0 0.0
    %530 = vmatpush1.msra.mxu0 0.0
    %531 = vmatprep.subr.mxu0 0.0
    %532 = vmatpush1.msra.mxu0 0.0
    %533 = vmatprep.subr.mxu0 0.0
    %534 = vmatpush1.msra.mxu0 0.0
    %535 = vmatprep.subr.mxu0 0.0
    %536 = vmatpush1.msra.mxu0 0.0
    %537 = vmatprep.subr.mxu0 0.0
    %538 = vmatpush1.msra.mxu0 0.0
    %539 = vmatprep.subr.mxu0 0.0
    %540 = vmatpush1.msra.mxu0 0.0
    %541 = vmatprep.subr.mxu0 0.0
    %542 = vmatpush1.msra.mxu0 0.0
    %543 = vmatprep.subr.mxu0 0.0
    %544 = vmatpush1.msra.mxu0 0.0
    %545 = vmatprep.subr.mxu0 0.0
    %546 = vmatpush1.msra.mxu0 0.0
    %547 = vmatprep.subr.mxu0 0.0
    %548 = vmatpush1.msra.mxu0 0.0
    %549 = vmatprep.subr.mxu0 0.0
    %550 = vmatpush1.msra.mxu0 0.0
    %551 = vmatprep.subr.mxu0 0.0
    %552 = vmatpush1.msra.mxu0 0.0
    %553 = vmatprep.subr.mxu0 0.0
    %554 = vmatpush1.msra.mxu0 0.0
    %555 = vmatprep.subr.mxu0 0.0
    %556 = vmatpush1.msra.mxu0 0.0
    %557 = vmatprep.subr.mxu0 0.0
    %558 = vmatpush1.msra.mxu0 0.0
    %559 = vmatprep.subr.mxu0 0.0
    %560 = vmatpush1.msra.mxu0 0.0
    %561 = vmatprep.subr.mxu0 0.0
    %562 = vmatpush1.msra.mxu0 0.0
    %563 = vmatprep.mubr.f32.mxu0 0.0
    %564 = vmatmul.mubr.f32.gmra.mrb[0].mxu0 %v424
    %v565 = vpop.f32.mrb[0].mxu0
    %v566 = vadd.f32 0.0, %v565
    %v567 = vpop.f32.mrb[0].mxu0
    %568 = vdwg.mxu0
    %v569 = vadd.f32 %v498, %v566
    %v570 = vxor.u32 %v496, 2147483648
    %v571 = vmul.f32 %v570, 1.442695
    %v572 = vpow.pop %v571
    %v573 = vadd.f32 %v572, 1.0
    %v574 = vrcp.pop %v573
    %v575 = vmul.f32 1.0, %v574
    %v576 = vtanh.pop %v496
    %v577 = vmul.f32 %v575, 0.0
    %579 = vrot.lane.b32.xlu0 %v576, 64
    %v580 = vpop.permute.xlu0 %579
    %v582 = vmul.f32 %v575, %v580
    %584 = vrot.lane.b32.xlu0 %v582, 32
    %v585 = vpop.permute.xlu0 %584
    %v587 = vadd.f32 %v577, %v585
    %v588 = vtanh.pop %v587
    %590 = vrot.lane.b32.xlu0 %v588, 64
    %v591 = vpop.permute.xlu0 %590
    %v593 = vmul.f32 %v575, %v591
    %v594 = vxor.u32 %v569, 2147483648
    %v595 = vmul.f32 %v594, 1.442695
    %v596 = vpow.pop %v595
    %v597 = vadd.f32 %v596, 1.0
    %v598 = vrcp.pop %v597
    %v599 = vmul.f32 1.0, %v598
    %v600 = vtanh.pop %v569
    %v601 = vmul.f32 %v599, 0.0
    %603 = vrot.lane.b32.xlu0 %v600, 64
    %v604 = vpop.permute.xlu0 %603
    %v606 = vmul.f32 %v599, %v604
    %608 = vrot.lane.b32.xlu0 %v606, 32
    %v609 = vpop.permute.xlu0 %608
    %v611 = vadd.f32 %v601, %v609
    %v612 = vtanh.pop %v611
    %614 = vrot.lane.b32.xlu0 %v612, 64
    %v615 = vpop.permute.xlu0 %614
    %v617 = vmul.f32 %v599, %v615
    %619 = vrot.lane.b32.xlu0 %v593, 32
    %v620 = vpop.permute.xlu0 %619
    %622 = vst.msk [vmem:[#allocation4] sm:$0xff] %vm232, %v620
    %624 = vrot.lane.b32.xlu0 %v617, 32
    %v625 = vpop.permute.xlu0 %624
    %s627 = scalar_lea.vmem [#allocation5], 56
    %628 = vst.msk [vmem:[%s627] sm:$0xff] %vm232, %v625
    %s629 = scalar_lea.vmem [#allocation2], 8
    %v630 = vld [vmem:[%s629] sm:$0xff]
    %v631 = vsel %vm232, %v620, 0
    %633 = vmatprep.subr.mxu0 0.0
    %634 = vmatpush1.msra.mxu0 %v414
    %635 = vmatprep.subr.mxu0 0.0
    %636 = vmatpush1.msra.mxu0 %v415
    %637 = vmatprep.subr.mxu0 0.0
    %638 = vmatpush1.msra.mxu0 %v416
    %639 = vmatprep.subr.mxu0 0.0
    %640 = vmatpush1.msra.mxu0 %v417
    %641 = vmatprep.subr.mxu0 0.0
    %642 = vmatpush1.msra.mxu0 0.0
    %643 = vmatprep.subr.mxu0 0.0
    %644 = vmatpush1.msra.mxu0 0.0
    %645 = vmatprep.subr.mxu0 0.0
    %646 = vmatpush1.msra.mxu0 0.0
    %647 = vmatprep.subr.mxu0 0.0
    %648 = vmatpush1.msra.mxu0 0.0
    %649 = vmatprep.subr.mxu0 0.0
    %650 = vmatpush1.msra.mxu0 0.0
    %651 = vmatprep.subr.mxu0 0.0
    %652 = vmatpush1.msra.mxu0 0.0
    %653 = vmatprep.subr.mxu0 0.0
    %654 = vmatpush1.msra.mxu0 0.0
    %655 = vmatprep.subr.mxu0 0.0
    %656 = vmatpush1.msra.mxu0 0.0
    %657 = vmatprep.subr.mxu0 0.0
    %658 = vmatpush1.msra.mxu0 0.0
    %659 = vmatprep.subr.mxu0 0.0
    %660 = vmatpush1.msra.mxu0 0.0
    %661 = vmatprep.subr.mxu0 0.0
    %662 = vmatpush1.msra.mxu0 0.0
    %663 = vmatprep.subr.mxu0 0.0
    %664 = vmatpush1.msra.mxu0 0.0
    %665 = vmatprep.subr.mxu0 0.0
    %666 = vmatpush1.msra.mxu0 0.0
    %667 = vmatprep.subr.mxu0 0.0
    %668 = vmatpush1.msra.mxu0 0.0
    %669 = vmatprep.subr.mxu0 0.0
    %670 = vmatpush1.msra.mxu0 0.0
    %671 = vmatprep.subr.mxu0 0.0
    %672 = vmatpush1.msra.mxu0 0.0
    %673 = vmatprep.subr.mxu0 0.0
    %674 = vmatpush1.msra.mxu0 0.0
    %675 = vmatprep.subr.mxu0 0.0
    %676 = vmatpush1.msra.mxu0 0.0
    %677 = vmatprep.subr.mxu0 0.0
    %678 = vmatpush1.msra.mxu0 0.0
    %679 = vmatprep.subr.mxu0 0.0
    %680 = vmatpush1.msra.mxu0 0.0
    %681 = vmatprep.subr.mxu0 0.0
    %682 = vmatpush1.msra.mxu0 0.0
    %683 = vmatprep.subr.mxu0 0.0
    %684 = vmatpush1.msra.mxu0 0.0
    %685 = vmatprep.subr.mxu0 0.0
    %686 = vmatpush1.msra.mxu0 0.0
    %687 = vmatprep.subr.mxu0 0.0
    %688 = vmatpush1.msra.mxu0 0.0
    %689 = vmatprep.subr.mxu0 0.0
    %690 = vmatpush1.msra.mxu0 0.0
    %691 = vmatprep.subr.mxu0 0.0
    %692 = vmatpush1.msra.mxu0 0.0
    %693 = vmatprep.subr.mxu0 0.0
    %694 = vmatpush1.msra.mxu0 0.0
    %695 = vmatprep.subr.mxu0 0.0
    %696 = vmatpush1.msra.mxu0 0.0
    %697 = vmatprep.mubr.f32.mxu0 0.0
    %698 = vmatmul.mubr.f32.gmra.mrb[0].mxu0 %v631
    %v699 = vpop.f32.mrb[0].mxu0
    %v700 = vadd.f32 0.0, %v699
    %v701 = vpop.f32.mrb[0].mxu0
    %702 = vdwg.mxu0
    %v703 = vadd.f32 %v630, %v700
    %s704 = scalar_lea.vmem [#allocation3], 48
    %v705 = vld [vmem:[%s704] sm:$0xff]
    %v706 = vsel %vm232, %v625, 0
    %708 = vmatprep.subr.mxu0 0.0
    %709 = vmatpush1.msra.mxu0 %v418
    %710 = vmatprep.subr.mxu0 0.0
    %711 = vmatpush1.msra.mxu0 %v419
    %712 = vmatprep.subr.mxu0 0.0
    %713 = vmatpush1.msra.mxu0 %v420
    %714 = vmatprep.subr.mxu0 0.0
    %715 = vmatpush1.msra.mxu0 %v421
    %716 = vmatprep.subr.mxu0 0.0
    %717 = vmatpush1.msra.mxu0 0.0
    %718 = vmatprep.subr.mxu0 0.0
    %719 = vmatpush1.msra.mxu0 0.0
    %720 = vmatprep.subr.mxu0 0.0
    %721 = vmatpush1.msra.mxu0 0.0
    %722 = vmatprep.subr.mxu0 0.0
    %723 = vmatpush1.msra.mxu0 0.0
    %724 = vmatprep.subr.mxu0 0.0
    %725 = vmatpush1.msra.mxu0 0.0
    %726 = vmatprep.subr.mxu0 0.0
    %727 = vmatpush1.msra.mxu0 0.0
    %728 = vmatprep.subr.mxu0 0.0
    %729 = vmatpush1.msra.mxu0 0.0
    %730 = vmatprep.subr.mxu0 0.0
    %731 = vmatpush1.msra.mxu0 0.0
    %732 = vmatprep.subr.mxu0 0.0
    %733 = vmatpush1.msra.mxu0 0.0
    %734 = vmatprep.subr.mxu0 0.0
    %735 = vmatpush1.msra.mxu0 0.0
    %736 = vmatprep.subr.mxu0 0.0
    %737 = vmatpush1.msra.mxu0 0.0
    %738 = vmatprep.subr.mxu0 0.0
    %739 = vmatpush1.msra.mxu0 0.0
    %740 = vmatprep.subr.mxu0 0.0
    %741 = vmatpush1.msra.mxu0 0.0
    %742 = vmatprep.subr.mxu0 0.0
    %743 = vmatpush1.msra.mxu0 0.0
    %744 = vmatprep.subr.mxu0 0.0
    %745 = vmatpush1.msra.mxu0 0.0
    %746 = vmatprep.subr.mxu0 0.0
    %747 = vmatpush1.msra.mxu0 0.0
    %748 = vmatprep.subr.mxu0 0.0
    %749 = vmatpush1.msra.mxu0 0.0
    %750 = vmatprep.subr.mxu0 0.0
    %751 = vmatpush1.msra.mxu0 0.0
    %752 = vmatprep.subr.mxu0 0.0
    %753 = vmatpush1.msra.mxu0 0.0
    %754 = vmatprep.subr.mxu0 0.0
    %755 = vmatpush1.msra.mxu0 0.0
    %756 = vmatprep.subr.mxu0 0.0
    %757 = vmatpush1.msra.mxu0 0.0
    %758 = vmatprep.subr.mxu0 0.0
    %759 = vmatpush1.msra.mxu0 0.0
    %760 = vmatprep.subr.mxu0 0.0
    %761 = vmatpush1.msra.mxu0 0.0
    %762 = vmatprep.subr.mxu0 0.0
    %763 = vmatpush1.msra.mxu0 0.0
    %764 = vmatprep.subr.mxu0 0.0
    %765 = vmatpush1.msra.mxu0 0.0
    %766 = vmatprep.subr.mxu0 0.0
    %767 = vmatpush1.msra.mxu0 0.0
    %768 = vmatprep.subr.mxu0 0.0
    %769 = vmatpush1.msra.mxu0 0.0
    %770 = vmatprep.subr.mxu0 0.0
    %771 = vmatpush1.msra.mxu0 0.0
    %772 = vmatprep.mubr.f32.mxu0 0.0
    %773 = vmatmul.mubr.f32.gmra.mrb[0].mxu0 %v706
    %v774 = vpop.f32.mrb[0].mxu0
    %v775 = vadd.f32 0.0, %v774
    %v776 = vpop.f32.mrb[0].mxu0
    %777 = vdwg.mxu0
    %v778 = vadd.f32 %v705, %v775
    %v779 = vxor.u32 %v703, 2147483648
    %v780 = vmul.f32 %v779, 1.442695
    %v781 = vpow.pop %v780
    %v782 = vadd.f32 %v781, 1.0
    %v783 = vrcp.pop %v782
    %v784 = vmul.f32 1.0, %v783
    %v785 = vtanh.pop %v703
    %v786 = vmul.f32 %v784, %v587
    %788 = vrot.lane.b32.xlu0 %v785, 64
    %v789 = vpop.permute.xlu0 %788
    %v791 = vmul.f32 %v784, %v789
    %793 = vrot.lane.b32.xlu0 %v791, 32
    %v794 = vpop.permute.xlu0 %793
    %v796 = vadd.f32 %v786, %v794
    %v797 = vtanh.pop %v796
    %799 = vrot.lane.b32.xlu0 %v797, 64
    %v800 = vpop.permute.xlu0 %799
    %v802 = vmul.f32 %v784, %v800
    %v803 = vxor.u32 %v778, 2147483648
    %v804 = vmul.f32 %v803, 1.442695
    %v805 = vpow.pop %v804
    %v806 = vadd.f32 %v805, 1.0
    %v807 = vrcp.pop %v806
    %v808 = vmul.f32 1.0, %v807
    %v809 = vtanh.pop %v778
    %v810 = vmul.f32 %v808, %v611
    %812 = vrot.lane.b32.xlu0 %v809, 64
    %v813 = vpop.permute.xlu0 %812
    %v815 = vmul.f32 %v808, %v813
    %817 = vrot.lane.b32.xlu0 %v815, 32
    %v818 = vpop.permute.xlu0 %817
    %v820 = vadd.f32 %v810, %v818
    %v821 = vtanh.pop %v820
    %823 = vrot.lane.b32.xlu0 %v821, 64
    %v824 = vpop.permute.xlu0 %823
    %v826 = vmul.f32 %v808, %v824
    %828 = vrot.lane.b32.xlu0 %v802, 32
    %v829 = vpop.permute.xlu0 %828
    %s831 = scalar_lea.vmem [#allocation4], 8
    %832 = vst.msk [vmem:[%s831] sm:$0xff] %vm232, %v829
    %834 = vrot.lane.b32.xlu0 %v826, 32
    %v835 = vpop.permute.xlu0 %834
    %s837 = scalar_lea.vmem [#allocation5], 48
    %838 = vst.msk [vmem:[%s837] sm:$0xff] %vm232, %v835
    %s839 = scalar_lea.vmem [#allocation2], 16
    %v840 = vld [vmem:[%s839] sm:$0xff]
    %v841 = vsel %vm232, %v829, 0
    %843 = vmatprep.subr.mxu0 0.0
    %844 = vmatpush1.msra.mxu0 %v414
    %845 = vmatprep.subr.mxu0 0.0
    %846 = vmatpush1.msra.mxu0 %v415
    %847 = vmatprep.subr.mxu0 0.0
    %848 = vmatpush1.msra.mxu0 %v416
    %849 = vmatprep.subr.mxu0 0.0
    %850 = vmatpush1.msra.mxu0 %v417
    %851 = vmatprep.subr.mxu0 0.0
    %852 = vmatpush1.msra.mxu0 0.0
    %853 = vmatprep.subr.mxu0 0.0
    %854 = vmatpush1.msra.mxu0 0.0
    %855 = vmatprep.subr.mxu0 0.0
    %856 = vmatpush1.msra.mxu0 0.0
    %857 = vmatprep.subr.mxu0 0.0
    %858 = vmatpush1.msra.mxu0 0.0
    %859 = vmatprep.subr.mxu0 0.0
    %860 = vmatpush1.msra.mxu0 0.0
    %861 = vmatprep.subr.mxu0 0.0
    %862 = vmatpush1.msra.mxu0 0.0
    %863 = vmatprep.subr.mxu0 0.0
    %864 = vmatpush1.msra.mxu0 0.0
    %865 = vmatprep.subr.mxu0 0.0
    %866 = vmatpush1.msra.mxu0 0.0
    %867 = vmatprep.subr.mxu0 0.0
    %868 = vmatpush1.msra.mxu0 0.0
    %869 = vmatprep.subr.mxu0 0.0
    %870 = vmatpush1.msra.mxu0 0.0
    %871 = vmatprep.subr.mxu0 0.0
    %872 = vmatpush1.msra.mxu0 0.0
    %873 = vmatprep.subr.mxu0 0.0
    %874 = vmatpush1.msra.mxu0 0.0
    %875 = vmatprep.subr.mxu0 0.0
    %876 = vmatpush1.msra.mxu0 0.0
    %877 = vmatprep.subr.mxu0 0.0
    %878 = vmatpush1.msra.mxu0 0.0
    %879 = vmatprep.subr.mxu0 0.0
    %880 = vmatpush1.msra.mxu0 0.0
    %881 = vmatprep.subr.mxu0 0.0
    %882 = vmatpush1.msra.mxu0 0.0
    %883 = vmatprep.subr.mxu0 0.0
    %884 = vmatpush1.msra.mxu0 0.0
    %885 = vmatprep.subr.mxu0 0.0
    %886 = vmatpush1.msra.mxu0 0.0
    %887 = vmatprep.subr.mxu0 0.0
    %888 = vmatpush1.msra.mxu0 0.0
    %889 = vmatprep.subr.mxu0 0.0
    %890 = vmatpush1.msra.mxu0 0.0
    %891 = vmatprep.subr.mxu0 0.0
    %892 = vmatpush1.msra.mxu0 0.0
    %893 = vmatprep.subr.mxu0 0.0
    %894 = vmatpush1.msra.mxu0 0.0
    %895 = vmatprep.subr.mxu0 0.0
    %896 = vmatpush1.msra.mxu0 0.0
    %897 = vmatprep.subr.mxu0 0.0
    %898 = vmatpush1.msra.mxu0 0.0
    %899 = vmatprep.subr.mxu0 0.0
    %900 = vmatpush1.msra.mxu0 0.0
    %901 = vmatprep.subr.mxu0 0.0
    %902 = vmatpush1.msra.mxu0 0.0
    %903 = vmatprep.subr.mxu0 0.0
    %904 = vmatpush1.msra.mxu0 0.0
    %905 = vmatprep.subr.mxu0 0.0
    %906 = vmatpush1.msra.mxu0 0.0
    %907 = vmatprep.mubr.f32.mxu0 0.0
    %908 = vmatmul.mubr.f32.gmra.mrb[0].mxu0 %v841
    %v909 = vpop.f32.mrb[0].mxu0
    %v910 = vadd.f32 0.0, %v909
    %v911 = vpop.f32.mrb[0].mxu0
    %912 = vdwg.mxu0
    %v913 = vadd.f32 %v840, %v910
    %s914 = scalar_lea.vmem [#allocation3], 40
    %v915 = vld [vmem:[%s914] sm:$0xff]
    %v916 = vsel %vm232, %v835, 0
    %918 = vmatprep.subr.mxu0 0.0
    %919 = vmatpush1.msra.mxu0 %v418
    %920 = vmatprep.subr.mxu0 0.0
    %921 = vmatpush1.msra.mxu0 %v419
    %922 = vmatprep.subr.mxu0 0.0
    %923 = vmatpush1.msra.mxu0 %v420
    %924 = vmatprep.subr.mxu0 0.0
    %925 = vmatpush1.msra.mxu0 %v421
    %926 = vmatprep.subr.mxu0 0.0
    %927 = vmatpush1.msra.mxu0 0.0
    %928 = vmatprep.subr.mxu0 0.0
    %929 = vmatpush1.msra.mxu0 0.0
    %930 = vmatprep.subr.mxu0 0.0
    %931 = vmatpush1.msra.mxu0 0.0
    %932 = vmatprep.subr.mxu0 0.0
    %933 = vmatpush1.msra.mxu0 0.0
    %934 = vmatprep.subr.mxu0 0.0
    %935 = vmatpush1.msra.mxu0 0.0
    %936 = vmatprep.subr.mxu0 0.0
    %937 = vmatpush1.msra.mxu0 0.0
    %938 = vmatprep.subr.mxu0 0.0
    %939 = vmatpush1.msra.mxu0 0.0
    %940 = vmatprep.subr.mxu0 0.0
    %941 = vmatpush1.msra.mxu0 0.0
    %942 = vmatprep.subr.mxu0 0.0
    %943 = vmatpush1.msra.mxu0 0.0
    %944 = vmatprep.subr.mxu0 0.0
    %945 = vmatpush1.msra.mxu0 0.0
    %946 = vmatprep.subr.mxu0 0.0
    %947 = vmatpush1.msra.mxu0 0.0
    %948 = vmatprep.subr.mxu0 0.0
    %949 = vmatpush1.msra.mxu0 0.0
    %950 = vmatprep.subr.mxu0 0.0
    %951 = vmatpush1.msra.mxu0 0.0
    %952 = vmatprep.subr.mxu0 0.0
    %953 = vmatpush1.msra.mxu0 0.0
    %954 = vmatprep.subr.mxu0 0.0
    %955 = vmatpush1.msra.mxu0 0.0
    %956 = vmatprep.subr.mxu0 0.0
    %957 = vmatpush1.msra.mxu0 0.0
    %958 = vmatprep.subr.mxu0 0.0
    %959 = vmatpush1.msra.mxu0 0.0
    %960 = vmatprep.subr.mxu0 0.0
    %961 = vmatpush1.msra.mxu0 0.0
    %962 = vmatprep.subr.mxu0 0.0
    %963 = vmatpush1.msra.mxu0 0.0
    %964 = vmatprep.subr.mxu0 0.0
    %965 = vmatpush1.msra.mxu0 0.0
    %966 = vmatprep.subr.mxu0 0.0
    %967 = vmatpush1.msra.mxu0 0.0
    %968 = vmatprep.subr.mxu0 0.0
    %969 = vmatpush1.msra.mxu0 0.0
    %970 = vmatprep.subr.mxu0 0.0
    %971 = vmatpush1.msra.mxu0 0.0
    %972 = vmatprep.subr.mxu0 0.0
    %973 = vmatpush1.msra.mxu0 0.0
    %974 = vmatprep.subr.mxu0 0.0
    %975 = vmatpush1.msra.mxu0 0.0
    %976 = vmatprep.subr.mxu0 0.0
    %977 = vmatpush1.msra.mxu0 0.0
    %978 = vmatprep.subr.mxu0 0.0
    %979 = vmatpush1.msra.mxu0 0.0
    %980 = vmatprep.subr.mxu0 0.0
    %981 = vmatpush1.msra.mxu0 0.0
    %982 = vmatprep.mubr.f32.mxu0 0.0
    %983 = vmatmul.mubr.f32.gmra.mrb[0].mxu0 %v916
    %v984 = vpop.f32.mrb[0].mxu0
    %v985 = vadd.f32 0.0, %v984
    %v986 = vpop.f32.mrb[0].mxu0
    %987 = vdwg.mxu0
    %v988 = vadd.f32 %v915, %v985
    %v989 = vxor.u32 %v913, 2147483648
    %v990 = vmul.f32 %v989, 1.442695
    %v991 = vpow.pop %v990
    %v992 = vadd.f32 %v991, 1.0
    %v993 = vrcp.pop %v992
    %v994 = vmul.f32 1.0, %v993
    %v995 = vtanh.pop %v913
    %v996 = vmul.f32 %v994, %v796
    %998 = vrot.lane.b32.xlu0 %v995, 64
    %v999 = vpop.permute.xlu0 %998
    %v1001 = vmul.f32 %v994, %v999
    %1003 = vrot.lane.b32.xlu0 %v1001, 32
    %v1004 = vpop.permute.xlu0 %1003
    %v1006 = vadd.f32 %v996, %v1004
    %v1007 = vtanh.pop %v1006
    %1009 = vrot.lane.b32.xlu0 %v1007, 64
    %v1010 = vpop.permute.xlu0 %1009
    %v1012 = vmul.f32 %v994, %v1010
    %v1013 = vxor.u32 %v988, 2147483648
    %v1014 = vmul.f32 %v1013, 1.442695
    %v1015 = vpow.pop %v1014
    %v1016 = vadd.f32 %v1015, 1.0
    %v1017 = vrcp.pop %v1016
    %v1018 = vmul.f32 1.0, %v1017
    %v1019 = vtanh.pop %v988
    %v1020 = vmul.f32 %v1018, %v820
    %1022 = vrot.lane.b32.xlu0 %v1019, 64
    %v1023 = vpop.permute.xlu0 %1022
    %v1025 = vmul.f32 %v1018, %v1023
    %1027 = vrot.lane.b32.xlu0 %v1025, 32
    %v1028 = vpop.permute.xlu0 %1027
    %v1030 = vadd.f32 %v1020, %v1028
    %v1031 = vtanh.pop %v1030
    %1033 = vrot.lane.b32.xlu0 %v1031, 64
    %v1034 = vpop.permute.xlu0 %1033
    %v1036 = vmul.f32 %v1018, %v1034
    %1038 = vrot.lane.b32.xlu0 %v1012, 32
    %v1039 = vpop.permute.xlu0 %1038
    %s1041 = scalar_lea.vmem [#allocation4], 16
    %1042 = vst.msk [vmem:[%s1041] sm:$0xff] %vm232, %v1039
    %1044 = vrot.lane.b32.xlu0 %v1036, 32
    %v1045 = vpop.permute.xlu0 %1044
    %s1047 = scalar_lea.vmem [#allocation5], 40
    %1048 = vst.msk [vmem:[%s1047] sm:$0xff] %vm232, %v1045
    %s1049 = scalar_lea.vmem [#allocation2], 24
    %v1050 = vld [vmem:[%s1049] sm:$0xff]
    %v1051 = vsel %vm232, %v1039, 0
    %1053 = vmatprep.subr.mxu0 0.0
    %1054 = vmatpush1.msra.mxu0 %v414
    %1055 = vmatprep.subr.mxu0 0.0
    %1056 = vmatpush1.msra.mxu0 %v415
    %1057 = vmatprep.subr.mxu0 0.0
    %1058 = vmatpush1.msra.mxu0 %v416
    %1059 = vmatprep.subr.mxu0 0.0
    %1060 = vmatpush1.msra.mxu0 %v417
    %1061 = vmatprep.subr.mxu0 0.0
    %1062 = vmatpush1.msra.mxu0 0.0
    %1063 = vmatprep.subr.mxu0 0.0
    %1064 = vmatpush1.msra.mxu0 0.0
    %1065 = vmatprep.subr.mxu0 0.0
    %1066 = vmatpush1.msra.mxu0 0.0
    %1067 = vmatprep.subr.mxu0 0.0
    %1068 = vmatpush1.msra.mxu0 0.0
    %1069 = vmatprep.subr.mxu0 0.0
    %1070 = vmatpush1.msra.mxu0 0.0
    %1071 = vmatprep.subr.mxu0 0.0
    %1072 = vmatpush1.msra.mxu0 0.0
    %1073 = vmatprep.subr.mxu0 0.0
    %1074 = vmatpush1.msra.mxu0 0.0
    %1075 = vmatprep.subr.mxu0 0.0
    %1076 = vmatpush1.msra.mxu0 0.0
    %1077 = vmatprep.subr.mxu0 0.0
    %1078 = vmatpush1.msra.mxu0 0.0
    %1079 = vmatprep.subr.mxu0 0.0
    %1080 = vmatpush1.msra.mxu0 0.0
    %1081 = vmatprep.subr.mxu0 0.0
    %1082 = vmatpush1.msra.mxu0 0.0
    %1083 = vmatprep.subr.mxu0 0.0
    %1084 = vmatpush1.msra.mxu0 0.0
    %1085 = vmatprep.subr.mxu0 0.0
    %1086 = vmatpush1.msra.mxu0 0.0
    %1087 = vmatprep.subr.mxu0 0.0
    %1088 = vmatpush1.msra.mxu0 0.0
    %1089 = vmatprep.subr.mxu0 0.0
    %1090 = vmatpush1.msra.mxu0 0.0
    %1091 = vmatprep.subr.mxu0 0.0
    %1092 = vmatpush1.msra.mxu0 0.0
    %1093 = vmatprep.subr.mxu0 0.0
    %1094 = vmatpush1.msra.mxu0 0.0
    %1095 = vmatprep.subr.mxu0 0.0
    %1096 = vmatpush1.msra.mxu0 0.0
    %1097 = vmatprep.subr.mxu0 0.0
    %1098 = vmatpush1.msra.mxu0 0.0
    %1099 = vmatprep.subr.mxu0 0.0
    %1100 = vmatpush1.msra.mxu0 0.0
    %1101 = vmatprep.subr.mxu0 0.0
    %1102 = vmatpush1.msra.mxu0 0.0
    %1103 = vmatprep.subr.mxu0 0.0
    %1104 = vmatpush1.msra.mxu0 0.0
    %1105 = vmatprep.subr.mxu0 0.0
    %1106 = vmatpush1.msra.mxu0 0.0
    %1107 = vmatprep.subr.mxu0 0.0
    %1108 = vmatpush1.msra.mxu0 0.0
    %1109 = vmatprep.subr.mxu0 0.0
    %1110 = vmatpush1.msra.mxu0 0.0
    %1111 = vmatprep.subr.mxu0 0.0
    %1112 = vmatpush1.msra.mxu0 0.0
    %1113 = vmatprep.subr.mxu0 0.0
    %1114 = vmatpush1.msra.mxu0 0.0
    %1115 = vmatprep.subr.mxu0 0.0
    %1116 = vmatpush1.msra.mxu0 0.0
    %1117 = vmatprep.mubr.f32.mxu0 0.0
    %1118 = vmatmul.mubr.f32.gmra.mrb[0].mxu0 %v1051
    %v1119 = vpop.f32.mrb[0].mxu0
    %v1120 = vadd.f32 0.0, %v1119
    %v1121 = vpop.f32.mrb[0].mxu0
    %1122 = vdwg.mxu0
    %v1123 = vadd.f32 %v1050, %v1120
    %s1124 = scalar_lea.vmem [#allocation3], 32
    %v1125 = vld [vmem:[%s1124] sm:$0xff]
    %v1126 = vsel %vm232, %v1045, 0
    %1128 = vmatprep.subr.mxu0 0.0
    %1129 = vmatpush1.msra.mxu0 %v418
    %1130 = vmatprep.subr.mxu0 0.0
    %1131 = vmatpush1.msra.mxu0 %v419
    %1132 = vmatprep.subr.mxu0 0.0
    %1133 = vmatpush1.msra.mxu0 %v420
    %1134 = vmatprep.subr.mxu0 0.0
    %1135 = vmatpush1.msra.mxu0 %v421
    %1136 = vmatprep.subr.mxu0 0.0
    %1137 = vmatpush1.msra.mxu0 0.0
    %1138 = vmatprep.subr.mxu0 0.0
    %1139 = vmatpush1.msra.mxu0 0.0
    %1140 = vmatprep.subr.mxu0 0.0
    %1141 = vmatpush1.msra.mxu0 0.0
    %1142 = vmatprep.subr.mxu0 0.0
    %1143 = vmatpush1.msra.mxu0 0.0
    %1144 = vmatprep.subr.mxu0 0.0
    %1145 = vmatpush1.msra.mxu0 0.0
    %1146 = vmatprep.subr.mxu0 0.0
    %1147 = vmatpush1.msra.mxu0 0.0
    %1148 = vmatprep.subr.mxu0 0.0
    %1149 = vmatpush1.msra.mxu0 0.0
    %1150 = vmatprep.subr.mxu0 0.0
    %1151 = vmatpush1.msra.mxu0 0.0
    %1152 = vmatprep.subr.mxu0 0.0
    %1153 = vmatpush1.msra.mxu0 0.0
    %1154 = vmatprep.subr.mxu0 0.0
    %1155 = vmatpush1.msra.mxu0 0.0
    %1156 = vmatprep.subr.mxu0 0.0
    %1157 = vmatpush1.msra.mxu0 0.0
    %1158 = vmatprep.subr.mxu0 0.0
    %1159 = vmatpush1.msra.mxu0 0.0
    %1160 = vmatprep.subr.mxu0 0.0
    %1161 = vmatpush1.msra.mxu0 0.0
    %1162 = vmatprep.subr.mxu0 0.0
    %1163 = vmatpush1.msra.mxu0 0.0
    %1164 = vmatprep.subr.mxu0 0.0
    %1165 = vmatpush1.msra.mxu0 0.0
    %1166 = vmatprep.subr.mxu0 0.0
    %1167 = vmatpush1.msra.mxu0 0.0
    %1168 = vmatprep.subr.mxu0 0.0
    %1169 = vmatpush1.msra.mxu0 0.0
    %1170 = vmatprep.subr.mxu0 0.0
    %1171 = vmatpush1.msra.mxu0 0.0
    %1172 = vmatprep.subr.mxu0 0.0
    %1173 = vmatpush1.msra.mxu0 0.0
    %1174 = vmatprep.subr.mxu0 0.0
    %1175 = vmatpush1.msra.mxu0 0.0
    %1176 = vmatprep.subr.mxu0 0.0
    %1177 = vmatpush1.msra.mxu0 0.0
    %1178 = vmatprep.subr.mxu0 0.0
    %1179 = vmatpush1.msra.mxu0 0.0
    %1180 = vmatprep.subr.mxu0 0.0
    %1181 = vmatpush1.msra.mxu0 0.0
    %1182 = vmatprep.subr.mxu0 0.0
    %1183 = vmatpush1.msra.mxu0 0.0
    %1184 = vmatprep.subr.mxu0 0.0
    %1185 = vmatpush1.msra.mxu0 0.0
    %1186 = vmatprep.subr.mxu0 0.0
    %1187 = vmatpush1.msra.mxu0 0.0
    %1188 = vmatprep.subr.mxu0 0.0
    %1189 = vmatpush1.msra.mxu0 0.0
    %1190 = vmatprep.subr.mxu0 0.0
    %1191 = vmatpush1.msra.mxu0 0.0
    %1192 = vmatprep.mubr.f32.mxu0 0.0
    %1193 = vmatmul.mubr.f32.gmra.mrb[0].mxu0 %v1126
    %v1194 = vpop.f32.mrb[0].mxu0
    %v1195 = vadd.f32 0.0, %v1194
    %v1196 = vpop.f32.mrb[0].mxu0
    %1197 = vdwg.mxu0
    %v1198 = vadd.f32 %v1125, %v1195
    %v1199 = vxor.u32 %v1123, 2147483648
    %v1200 = vmul.f32 %v1199, 1.442695
    %v1201 = vpow.pop %v1200
    %v1202 = vadd.f32 %v1201, 1.0
    %v1203 = vrcp.pop %v1202
    %v1204 = vmul.f32 1.0, %v1203
    %v1205 = vtanh.pop %v1123
    %v1206 = vmul.f32 %v1204, %v1006
    %1208 = vrot.lane.b32.xlu0 %v1205, 64
    %v1209 = vpop.permute.xlu0 %1208
    %v1211 = vmul.f32 %v1204, %v1209
    %1213 = vrot.lane.b32.xlu0 %v1211, 32
    %v1214 = vpop.permute.xlu0 %1213
    %v1216 = vadd.f32 %v1206, %v1214
    %v1217 = vtanh.pop %v1216
    %1219 = vrot.lane.b32.xlu0 %v1217, 64
    %v1220 = vpop.permute.xlu0 %1219
    %v1222 = vmul.f32 %v1204, %v1220
    %v1223 = vxor.u32 %v1198, 2147483648
    %v1224 = vmul.f32 %v1223, 1.442695
    %v1225 = vpow.pop %v1224
    %v1226 = vadd.f32 %v1225, 1.0
    %v1227 = vrcp.pop %v1226
    %v1228 = vmul.f32 1.0, %v1227
    %v1229 = vtanh.pop %v1198
    %v1230 = vmul.f32 %v1228, %v1030
    %1232 = vrot.lane.b32.xlu0 %v1229, 64
    %v1233 = vpop.permute.xlu0 %1232
    %v1235 = vmul.f32 %v1228, %v1233
    %1237 = vrot.lane.b32.xlu0 %v1235, 32
    %v1238 = vpop.permute.xlu0 %1237
    %v1240 = vadd.f32 %v1230, %v1238
    %v1241 = vtanh.pop %v1240
    %1243 = vrot.lane.b32.xlu0 %v1241, 64
    %v1244 = vpop.permute.xlu0 %1243
    %v1246 = vmul.f32 %v1228, %v1244
    %1248 = vrot.lane.b32.xlu0 %v1222, 32
    %v1249 = vpop.permute.xlu0 %1248
    %s1251 = scalar_lea.vmem [#allocation4], 24
    %1252 = vst.msk [vmem:[%s1251] sm:$0xff] %vm232, %v1249
    %1254 = vrot.lane.b32.xlu0 %v1246, 32
    %v1255 = vpop.permute.xlu0 %1254
    %s1257 = scalar_lea.vmem [#allocation5], 32
    %1258 = vst.msk [vmem:[%s1257] sm:$0xff] %vm232, %v1255
    %s1259 = scalar_lea.vmem [#allocation2], 32
    %v1260 = vld [vmem:[%s1259] sm:$0xff]
    %v1261 = vsel %vm232, %v1249, 0
    %1263 = vmatprep.subr.mxu0 0.0
    %1264 = vmatpush1.msra.mxu0 %v414
    %1265 = vmatprep.subr.mxu0 0.0
    %1266 = vmatpush1.msra.mxu0 %v415
    %1267 = vmatprep.subr.mxu0 0.0
    %1268 = vmatpush1.msra.mxu0 %v416
    %1269 = vmatprep.subr.mxu0 0.0
    %1270 = vmatpush1.msra.mxu0 %v417
    %1271 = vmatprep.subr.mxu0 0.0
    %1272 = vmatpush1.msra.mxu0 0.0
    %1273 = vmatprep.subr.mxu0 0.0
    %1274 = vmatpush1.msra.mxu0 0.0
    %1275 = vmatprep.subr.mxu0 0.0
    %1276 = vmatpush1.msra.mxu0 0.0
    %1277 = vmatprep.subr.mxu0 0.0
    %1278 = vmatpush1.msra.mxu0 0.0
    %1279 = vmatprep.subr.mxu0 0.0
    %1280 = vmatpush1.msra.mxu0 0.0
    %1281 = vmatprep.subr.mxu0 0.0
    %1282 = vmatpush1.msra.mxu0 0.0
    %1283 = vmatprep.subr.mxu0 0.0
    %1284 = vmatpush1.msra.mxu0 0.0
    %1285 = vmatprep.subr.mxu0 0.0
    %1286 = vmatpush1.msra.mxu0 0.0
    %1287 = vmatprep.subr.mxu0 0.0
    %1288 = vmatpush1.msra.mxu0 0.0
    %1289 = vmatprep.subr.mxu0 0.0
    %1290 = vmatpush1.msra.mxu0 0.0
    %1291 = vmatprep.subr.mxu0 0.0
    %1292 = vmatpush1.msra.mxu0 0.0
    %1293 = vmatprep.subr.mxu0 0.0
    %1294 = vmatpush1.msra.mxu0 0.0
    %1295 = vmatprep.subr.mxu0 0.0
    %1296 = vmatpush1.msra.mxu0 0.0
    %1297 = vmatprep.subr.mxu0 0.0
    %1298 = vmatpush1.msra.mxu0 0.0
    %1299 = vmatprep.subr.mxu0 0.0
    %1300 = vmatpush1.msra.mxu0 0.0
    %1301 = vmatprep.subr.mxu0 0.0
    %1302 = vmatpush1.msra.mxu0 0.0
    %1303 = vmatprep.subr.mxu0 0.0
    %1304 = vmatpush1.msra.mxu0 0.0
    %1305 = vmatprep.subr.mxu0 0.0
    %1306 = vmatpush1.msra.mxu0 0.0
    %1307 = vmatprep.subr.mxu0 0.0
    %1308 = vmatpush1.msra.mxu0 0.0
    %1309 = vmatprep.subr.mxu0 0.0
    %1310 = vmatpush1.msra.mxu0 0.0
    %1311 = vmatprep.subr.mxu0 0.0
    %1312 = vmatpush1.msra.mxu0 0.0
    %1313 = vmatprep.subr.mxu0 0.0
    %1314 = vmatpush1.msra.mxu0 0.0
    %1315 = vmatprep.subr.mxu0 0.0
    %1316 = vmatpush1.msra.mxu0 0.0
    %1317 = vmatprep.subr.mxu0 0.0
    %1318 = vmatpush1.msra.mxu0 0.0
    %1319 = vmatprep.subr.mxu0 0.0
    %1320 = vmatpush1.msra.mxu0 0.0
    %1321 = vmatprep.subr.mxu0 0.0
    %1322 = vmatpush1.msra.mxu0 0.0
    %1323 = vmatprep.subr.mxu0 0.0
    %1324 = vmatpush1.msra.mxu0 0.0
    %1325 = vmatprep.subr.mxu0 0.0
    %1326 = vmatpush1.msra.mxu0 0.0
    %1327 = vmatprep.mubr.f32.mxu0 0.0
    %1328 = vmatmul.mubr.f32.gmra.mrb[0].mxu0 %v1261
    %v1329 = vpop.f32.mrb[0].mxu0
    %v1330 = vadd.f32 0.0, %v1329
    %v1331 = vpop.f32.mrb[0].mxu0
    %1332 = vdwg.mxu0
    %v1333 = vadd.f32 %v1260, %v1330
    %s1334 = scalar_lea.vmem [#allocation3], 24
    %v1335 = vld [vmem:[%s1334] sm:$0xff]
    %v1336 = vsel %vm232, %v1255, 0
    %1338 = vmatprep.subr.mxu0 0.0
    %1339 = vmatpush1.msra.mxu0 %v418
    %1340 = vmatprep.subr.mxu0 0.0
    %1341 = vmatpush1.msra.mxu0 %v419
    %1342 = vmatprep.subr.mxu0 0.0
    %1343 = vmatpush1.msra.mxu0 %v420
    %1344 = vmatprep.subr.mxu0 0.0
    %1345 = vmatpush1.msra.mxu0 %v421
    %1346 = vmatprep.subr.mxu0 0.0
    %1347 = vmatpush1.msra.mxu0 0.0
    %1348 = vmatprep.subr.mxu0 0.0
    %1349 = vmatpush1.msra.mxu0 0.0
    %1350 = vmatprep.subr.mxu0 0.0
    %1351 = vmatpush1.msra.mxu0 0.0
    %1352 = vmatprep.subr.mxu0 0.0
    %1353 = vmatpush1.msra.mxu0 0.0
    %1354 = vmatprep.subr.mxu0 0.0
    %1355 = vmatpush1.msra.mxu0 0.0
    %1356 = vmatprep.subr.mxu0 0.0
    %1357 = vmatpush1.msra.mxu0 0.0
    %1358 = vmatprep.subr.mxu0 0.0
    %1359 = vmatpush1.msra.mxu0 0.0
    %1360 = vmatprep.subr.mxu0 0.0
    %1361 = vmatpush1.msra.mxu0 0.0
    %1362 = vmatprep.subr.mxu0 0.0
    %1363 = vmatpush1.msra.mxu0 0.0
    %1364 = vmatprep.subr.mxu0 0.0
    %1365 = vmatpush1.msra.mxu0 0.0
    %1366 = vmatprep.subr.mxu0 0.0
    %1367 = vmatpush1.msra.mxu0 0.0
    %1368 = vmatprep.subr.mxu0 0.0
    %1369 = vmatpush1.msra.mxu0 0.0
    %1370 = vmatprep.subr.mxu0 0.0
    %1371 = vmatpush1.msra.mxu0 0.0
    %1372 = vmatprep.subr.mxu0 0.0
    %1373 = vmatpush1.msra.mxu0 0.0
    %1374 = vmatprep.subr.mxu0 0.0
    %1375 = vmatpush1.msra.mxu0 0.0
    %1376 = vmatprep.subr.mxu0 0.0
    %1377 = vmatpush1.msra.mxu0 0.0
    %1378 = vmatprep.subr.mxu0 0.0
    %1379 = vmatpush1.msra.mxu0 0.0
    %1380 = vmatprep.subr.mxu0 0.0
    %1381 = vmatpush1.msra.mxu0 0.0
    %1382 = vmatprep.subr.mxu0 0.0
    %1383 = vmatpush1.msra.mxu0 0.0
    %1384 = vmatprep.subr.mxu0 0.0
    %1385 = vmatpush1.msra.mxu0 0.0
    %1386 = vmatprep.subr.mxu0 0.0
    %1387 = vmatpush1.msra.mxu0 0.0
    %1388 = vmatprep.subr.mxu0 0.0
    %1389 = vmatpush1.msra.mxu0 0.0
    %1390 = vmatprep.subr.mxu0 0.0
    %1391 = vmatpush1.msra.mxu0 0.0
    %1392 = vmatprep.subr.mxu0 0.0
    %1393 = vmatpush1.msra.mxu0 0.0
    %1394 = vmatprep.subr.mxu0 0.0
    %1395 = vmatpush1.msra.mxu0 0.0
    %1396 = vmatprep.subr.mxu0 0.0
    %1397 = vmatpush1.msra.mxu0 0.0
    %1398 = vmatprep.subr.mxu0 0.0
    %1399 = vmatpush1.msra.mxu0 0.0
    %1400 = vmatprep.subr.mxu0 0.0
    %1401 = vmatpush1.msra.mxu0 0.0
    %1402 = vmatprep.mubr.f32.mxu0 0.0
    %1403 = vmatmul.mubr.f32.gmra.mrb[0].mxu0 %v1336
    %v1404 = vpop.f32.mrb[0].mxu0
    %v1405 = vadd.f32 0.0, %v1404
    %v1406 = vpop.f32.mrb[0].mxu0
    %1407 = vdwg.mxu0
    %v1408 = vadd.f32 %v1335, %v1405
    %v1409 = vxor.u32 %v1333, 2147483648
    %v1410 = vmul.f32 %v1409, 1.442695
    %v1411 = vpow.pop %v1410
    %v1412 = vadd.f32 %v1411, 1.0
    %v1413 = vrcp.pop %v1412
    %v1414 = vmul.f32 1.0, %v1413
    %v1415 = vtanh.pop %v1333
    %v1416 = vmul.f32 %v1414, %v1216
    %1418 = vrot.lane.b32.xlu0 %v1415, 64
    %v1419 = vpop.permute.xlu0 %1418
    %v1421 = vmul.f32 %v1414, %v1419
    %1423 = vrot.lane.b32.xlu0 %v1421, 32
    %v1424 = vpop.permute.xlu0 %1423
    %v1426 = vadd.f32 %v1416, %v1424
    %v1427 = vtanh.pop %v1426
    %1429 = vrot.lane.b32.xlu0 %v1427, 64
    %v1430 = vpop.permute.xlu0 %1429
    %v1432 = vmul.f32 %v1414, %v1430
    %v1433 = vxor.u32 %v1408, 2147483648
    %v1434 = vmul.f32 %v1433, 1.442695
    %v1435 = vpow.pop %v1434
    %v1436 = vadd.f32 %v1435, 1.0
    %v1437 = vrcp.pop %v1436
    %v1438 = vmul.f32 1.0, %v1437
    %v1439 = vtanh.pop %v1408
    %v1440 = vmul.f32 %v1438, %v1240
    %1442 = vrot.lane.b32.xlu0 %v1439, 64
    %v1443 = vpop.permute.xlu0 %1442
    %v1445 = vmul.f32 %v1438, %v1443
    %1447 = vrot.lane.b32.xlu0 %v1445, 32
    %v1448 = vpop.permute.xlu0 %1447
    %v1450 = vadd.f32 %v1440, %v1448
    %v1451 = vtanh.pop %v1450
    %1453 = vrot.lane.b32.xlu0 %v1451, 64
    %v1454 = vpop.permute.xlu0 %1453
    %v1456 = vmul.f32 %v1438, %v1454
    %1458 = vrot.lane.b32.xlu0 %v1432, 32
    %v1459 = vpop.permute.xlu0 %1458
    %s1461 = scalar_lea.vmem [#allocation4], 32
    %1462 = vst.msk [vmem:[%s1461] sm:$0xff] %vm232, %v1459
    %1464 = vrot.lane.b32.xlu0 %v1456, 32
    %v1465 = vpop.permute.xlu0 %1464
    %s1467 = scalar_lea.vmem [#allocation5], 24
    %1468 = vst.msk [vmem:[%s1467] sm:$0xff] %vm232, %v1465
    %s1469 = scalar_lea.vmem [#allocation2], 40
    %v1470 = vld [vmem:[%s1469] sm:$0xff]
    %v1471 = vsel %vm232, %v1459, 0
    %1473 = vmatprep.subr.mxu0 0.0
    %1474 = vmatpush1.msra.mxu0 %v414
    %1475 = vmatprep.subr.mxu0 0.0
    %1476 = vmatpush1.msra.mxu0 %v415
    %1477 = vmatprep.subr.mxu0 0.0
    %1478 = vmatpush1.msra.mxu0 %v416
    %1479 = vmatprep.subr.mxu0 0.0
    %1480 = vmatpush1.msra.mxu0 %v417
    %1481 = vmatprep.subr.mxu0 0.0
    %1482 = vmatpush1.msra.mxu0 0.0
    %1483 = vmatprep.subr.mxu0 0.0
    %1484 = vmatpush1.msra.mxu0 0.0
    %1485 = vmatprep.subr.mxu0 0.0
    %1486 = vmatpush1.msra.mxu0 0.0
    %1487 = vmatprep.subr.mxu0 0.0
    %1488 = vmatpush1.msra.mxu0 0.0
    %1489 = vmatprep.subr.mxu0 0.0
    %1490 = vmatpush1.msra.mxu0 0.0
    %1491 = vmatprep.subr.mxu0 0.0
    %1492 = vmatpush1.msra.mxu0 0.0
    %1493 = vmatprep.subr.mxu0 0.0
    %1494 = vmatpush1.msra.mxu0 0.0
    %1495 = vmatprep.subr.mxu0 0.0
    %1496 = vmatpush1.msra.mxu0 0.0
    %1497 = vmatprep.subr.mxu0 0.0
    %1498 = vmatpush1.msra.mxu0 0.0
    %1499 = vmatprep.subr.mxu0 0.0
    %1500 = vmatpush1.msra.mxu0 0.0
    %1501 = vmatprep.subr.mxu0 0.0
    %1502 = vmatpush1.msra.mxu0 0.0
    %1503 = vmatprep.subr.mxu0 0.0
    %1504 = vmatpush1.msra.mxu0 0.0
    %1505 = vmatprep.subr.mxu0 0.0
    %1506 = vmatpush1.msra.mxu0 0.0
    %1507 = vmatprep.subr.mxu0 0.0
    %1508 = vmatpush1.msra.mxu0 0.0
    %1509 = vmatprep.subr.mxu0 0.0
    %1510 = vmatpush1.msra.mxu0 0.0
    %1511 = vmatprep.subr.mxu0 0.0
    %1512 = vmatpush1.msra.mxu0 0.0
    %1513 = vmatprep.subr.mxu0 0.0
    %1514 = vmatpush1.msra.mxu0 0.0
    %1515 = vmatprep.subr.mxu0 0.0
    %1516 = vmatpush1.msra.mxu0 0.0
    %1517 = vmatprep.subr.mxu0 0.0
    %1518 = vmatpush1.msra.mxu0 0.0
    %1519 = vmatprep.subr.mxu0 0.0
    %1520 = vmatpush1.msra.mxu0 0.0
    %1521 = vmatprep.subr.mxu0 0.0
    %1522 = vmatpush1.msra.mxu0 0.0
    %1523 = vmatprep.subr.mxu0 0.0
    %1524 = vmatpush1.msra.mxu0 0.0
    %1525 = vmatprep.subr.mxu0 0.0
    %1526 = vmatpush1.msra.mxu0 0.0
    %1527 = vmatprep.subr.mxu0 0.0
    %1528 = vmatpush1.msra.mxu0 0.0
    %1529 = vmatprep.subr.mxu0 0.0
    %1530 = vmatpush1.msra.mxu0 0.0
    %1531 = vmatprep.subr.mxu0 0.0
    %1532 = vmatpush1.msra.mxu0 0.0
    %1533 = vmatprep.subr.mxu0 0.0
    %1534 = vmatpush1.msra.mxu0 0.0
    %1535 = vmatprep.subr.mxu0 0.0
    %1536 = vmatpush1.msra.mxu0 0.0
    %1537 = vmatprep.mubr.f32.mxu0 0.0
    %1538 = vmatmul.mubr.f32.gmra.mrb[0].mxu0 %v1471
    %v1539 = vpop.f32.mrb[0].mxu0
    %v1540 = vadd.f32 0.0, %v1539
    %v1541 = vpop.f32.mrb[0].mxu0
    %1542 = vdwg.mxu0
    %v1543 = vadd.f32 %v1470, %v1540
    %s1544 = scalar_lea.vmem [#allocation3], 16
    %v1545 = vld [vmem:[%s1544] sm:$0xff]
    %v1546 = vsel %vm232, %v1465, 0
    %1548 = vmatprep.subr.mxu0 0.0
    %1549 = vmatpush1.msra.mxu0 %v418
    %1550 = vmatprep.subr.mxu0 0.0
    %1551 = vmatpush1.msra.mxu0 %v419
    %1552 = vmatprep.subr.mxu0 0.0
    %1553 = vmatpush1.msra.mxu0 %v420
    %1554 = vmatprep.subr.mxu0 0.0
    %1555 = vmatpush1.msra.mxu0 %v421
    %1556 = vmatprep.subr.mxu0 0.0
    %1557 = vmatpush1.msra.mxu0 0.0
    %1558 = vmatprep.subr.mxu0 0.0
    %1559 = vmatpush1.msra.mxu0 0.0
    %1560 = vmatprep.subr.mxu0 0.0
    %1561 = vmatpush1.msra.mxu0 0.0
    %1562 = vmatprep.subr.mxu0 0.0
    %1563 = vmatpush1.msra.mxu0 0.0
    %1564 = vmatprep.subr.mxu0 0.0
    %1565 = vmatpush1.msra.mxu0 0.0
    %1566 = vmatprep.subr.mxu0 0.0
    %1567 = vmatpush1.msra.mxu0 0.0
    %1568 = vmatprep.subr.mxu0 0.0
    %1569 = vmatpush1.msra.mxu0 0.0
    %1570 = vmatprep.subr.mxu0 0.0
    %1571 = vmatpush1.msra.mxu0 0.0
    %1572 = vmatprep.subr.mxu0 0.0
    %1573 = vmatpush1.msra.mxu0 0.0
    %1574 = vmatprep.subr.mxu0 0.0
    %1575 = vmatpush1.msra.mxu0 0.0
    %1576 = vmatprep.subr.mxu0 0.0
    %1577 = vmatpush1.msra.mxu0 0.0
    %1578 = vmatprep.subr.mxu0 0.0
    %1579 = vmatpush1.msra.mxu0 0.0
    %1580 = vmatprep.subr.mxu0 0.0
    %1581 = vmatpush1.msra.mxu0 0.0
    %1582 = vmatprep.subr.mxu0 0.0
    %1583 = vmatpush1.msra.mxu0 0.0
    %1584 = vmatprep.subr.mxu0 0.0
    %1585 = vmatpush1.msra.mxu0 0.0
    %1586 = vmatprep.subr.mxu0 0.0
    %1587 = vmatpush1.msra.mxu0 0.0
    %1588 = vmatprep.subr.mxu0 0.0
    %1589 = vmatpush1.msra.mxu0 0.0
    %1590 = vmatprep.subr.mxu0 0.0
    %1591 = vmatpush1.msra.mxu0 0.0
    %1592 = vmatprep.subr.mxu0 0.0
    %1593 = vmatpush1.msra.mxu0 0.0
    %1594 = vmatprep.subr.mxu0 0.0
    %1595 = vmatpush1.msra.mxu0 0.0
    %1596 = vmatprep.subr.mxu0 0.0
    %1597 = vmatpush1.msra.mxu0 0.0
    %1598 = vmatprep.subr.mxu0 0.0
    %1599 = vmatpush1.msra.mxu0 0.0
    %1600 = vmatprep.subr.mxu0 0.0
    %1601 = vmatpush1.msra.mxu0 0.0
    %1602 = vmatprep.subr.mxu0 0.0
    %1603 = vmatpush1.msra.mxu0 0.0
    %1604 = vmatprep.subr.mxu0 0.0
    %1605 = vmatpush1.msra.mxu0 0.0
    %1606 = vmatprep.subr.mxu0 0.0
    %1607 = vmatpush1.msra.mxu0 0.0
    %1608 = vmatprep.subr.mxu0 0.0
    %1609 = vmatpush1.msra.mxu0 0.0
    %1610 = vmatprep.subr.mxu0 0.0
    %1611 = vmatpush1.msra.mxu0 0.0
    %1612 = vmatprep.mubr.f32.mxu0 0.0
    %1613 = vmatmul.mubr.f32.gmra.mrb[0].mxu0 %v1546
    %v1614 = vpop.f32.mrb[0].mxu0
    %v1615 = vadd.f32 0.0, %v1614
    %v1616 = vpop.f32.mrb[0].mxu0
    %1617 = vdwg.mxu0
    %v1618 = vadd.f32 %v1545, %v1615
    %v1619 = vxor.u32 %v1543, 2147483648
    %v1620 = vmul.f32 %v1619, 1.442695
    %v1621 = vpow.pop %v1620
    %v1622 = vadd.f32 %v1621, 1.0
    %v1623 = vrcp.pop %v1622
    %v1624 = vmul.f32 1.0, %v1623
    %v1625 = vtanh.pop %v1543
    %v1626 = vmul.f32 %v1624, %v1426
    %1628 = vrot.lane.b32.xlu0 %v1625, 64
    %v1629 = vpop.permute.xlu0 %1628
    %v1631 = vmul.f32 %v1624, %v1629
    %1633 = vrot.lane.b32.xlu0 %v1631, 32
    %v1634 = vpop.permute.xlu0 %1633
    %v1636 = vadd.f32 %v1626, %v1634
    %v1637 = vtanh.pop %v1636
    %1639 = vrot.lane.b32.xlu0 %v1637, 64
    %v1640 = vpop.permute.xlu0 %1639
    %v1642 = vmul.f32 %v1624, %v1640
    %v1643 = vxor.u32 %v1618, 2147483648
    %v1644 = vmul.f32 %v1643, 1.442695
    %v1645 = vpow.pop %v1644
    %v1646 = vadd.f32 %v1645, 1.0
    %v1647 = vrcp.pop %v1646
    %v1648 = vmul.f32 1.0, %v1647
    %v1649 = vtanh.pop %v1618
    %v1650 = vmul.f32 %v1648, %v1450
    %1652 = vrot.lane.b32.xlu0 %v1649, 64
    %v1653 = vpop.permute.xlu0 %1652
    %v1655 = vmul.f32 %v1648, %v1653
    %1657 = vrot.lane.b32.xlu0 %v1655, 32
    %v1658 = vpop.permute.xlu0 %1657
    %v1660 = vadd.f32 %v1650, %v1658
    %v1661 = vtanh.pop %v1660
    %1663 = vrot.lane.b32.xlu0 %v1661, 64
    %v1664 = vpop.permute.xlu0 %1663
    %v1666 = vmul.f32 %v1648, %v1664
    %1668 = vrot.lane.b32.xlu0 %v1642, 32
    %v1669 = vpop.permute.xlu0 %1668
    %s1671 = scalar_lea.vmem [#allocation4], 40
    %1672 = vst.msk [vmem:[%s1671] sm:$0xff] %vm232, %v1669
    %1674 = vrot.lane.b32.xlu0 %v1666, 32
    %v1675 = vpop.permute.xlu0 %1674
    %s1677 = scalar_lea.vmem [#allocation5], 16
    %1678 = vst.msk [vmem:[%s1677] sm:$0xff] %vm232, %v1675
    %s1679 = scalar_lea.vmem [#allocation2], 48
    %v1680 = vld [vmem:[%s1679] sm:$0xff]
    %v1681 = vsel %vm232, %v1669, 0
    %1683 = vmatprep.subr.mxu0 0.0
    %1684 = vmatpush1.msra.mxu0 %v414
    %1685 = vmatprep.subr.mxu0 0.0
    %1686 = vmatpush1.msra.mxu0 %v415
    %1687 = vmatprep.subr.mxu0 0.0
    %1688 = vmatpush1.msra.mxu0 %v416
    %1689 = vmatprep.subr.mxu0 0.0
    %1690 = vmatpush1.msra.mxu0 %v417
    %1691 = vmatprep.subr.mxu0 0.0
    %1692 = vmatpush1.msra.mxu0 0.0
    %1693 = vmatprep.subr.mxu0 0.0
    %1694 = vmatpush1.msra.mxu0 0.0
    %1695 = vmatprep.subr.mxu0 0.0
    %1696 = vmatpush1.msra.mxu0 0.0
    %1697 = vmatprep.subr.mxu0 0.0
    %1698 = vmatpush1.msra.mxu0 0.0
    %1699 = vmatprep.subr.mxu0 0.0
    %1700 = vmatpush1.msra.mxu0 0.0
    %1701 = vmatprep.subr.mxu0 0.0
    %1702 = vmatpush1.msra.mxu0 0.0
    %1703 = vmatprep.subr.mxu0 0.0
    %1704 = vmatpush1.msra.mxu0 0.0
    %1705 = vmatprep.subr.mxu0 0.0
    %1706 = vmatpush1.msra.mxu0 0.0
    %1707 = vmatprep.subr.mxu0 0.0
    %1708 = vmatpush1.msra.mxu0 0.0
    %1709 = vmatprep.subr.mxu0 0.0
    %1710 = vmatpush1.msra.mxu0 0.0
    %1711 = vmatprep.subr.mxu0 0.0
    %1712 = vmatpush1.msra.mxu0 0.0
    %1713 = vmatprep.subr.mxu0 0.0
    %1714 = vmatpush1.msra.mxu0 0.0
    %1715 = vmatprep.subr.mxu0 0.0
    %1716 = vmatpush1.msra.mxu0 0.0
    %1717 = vmatprep.subr.mxu0 0.0
    %1718 = vmatpush1.msra.mxu0 0.0
    %1719 = vmatprep.subr.mxu0 0.0
    %1720 = vmatpush1.msra.mxu0 0.0
    %1721 = vmatprep.subr.mxu0 0.0
    %1722 = vmatpush1.msra.mxu0 0.0
    %1723 = vmatprep.subr.mxu0 0.0
    %1724 = vmatpush1.msra.mxu0 0.0
    %1725 = vmatprep.subr.mxu0 0.0
    %1726 = vmatpush1.msra.mxu0 0.0
    %1727 = vmatprep.subr.mxu0 0.0
    %1728 = vmatpush1.msra.mxu0 0.0
    %1729 = vmatprep.subr.mxu0 0.0
    %1730 = vmatpush1.msra.mxu0 0.0
    %1731 = vmatprep.subr.mxu0 0.0
    %1732 = vmatpush1.msra.mxu0 0.0
    %1733 = vmatprep.subr.mxu0 0.0
    %1734 = vmatpush1.msra.mxu0 0.0
    %1735 = vmatprep.subr.mxu0 0.0
    %1736 = vmatpush1.msra.mxu0 0.0
    %1737 = vmatprep.subr.mxu0 0.0
    %1738 = vmatpush1.msra.mxu0 0.0
    %1739 = vmatprep.subr.mxu0 0.0
    %1740 = vmatpush1.msra.mxu0 0.0
    %1741 = vmatprep.subr.mxu0 0.0
    %1742 = vmatpush1.msra.mxu0 0.0
    %1743 = vmatprep.subr.mxu0 0.0
    %1744 = vmatpush1.msra.mxu0 0.0
    %1745 = vmatprep.subr.mxu0 0.0
    %1746 = vmatpush1.msra.mxu0 0.0
    %1747 = vmatprep.mubr.f32.mxu0 0.0
    %1748 = vmatmul.mubr.f32.gmra.mrb[0].mxu0 %v1681
    %v1749 = vpop.f32.mrb[0].mxu0
    %v1750 = vadd.f32 0.0, %v1749
    %v1751 = vpop.f32.mrb[0].mxu0
    %1752 = vdwg.mxu0
    %v1753 = vadd.f32 %v1680, %v1750
    %s1754 = scalar_lea.vmem [#allocation3], 8
    %v1755 = vld [vmem:[%s1754] sm:$0xff]
    %v1756 = vsel %vm232, %v1675, 0
    %1758 = vmatprep.subr.mxu0 0.0
    %1759 = vmatpush1.msra.mxu0 %v418
    %1760 = vmatprep.subr.mxu0 0.0
    %1761 = vmatpush1.msra.mxu0 %v419
    %1762 = vmatprep.subr.mxu0 0.0
    %1763 = vmatpush1.msra.mxu0 %v420
    %1764 = vmatprep.subr.mxu0 0.0
    %1765 = vmatpush1.msra.mxu0 %v421
    %1766 = vmatprep.subr.mxu0 0.0
    %1767 = vmatpush1.msra.mxu0 0.0
    %1768 = vmatprep.subr.mxu0 0.0
    %1769 = vmatpush1.msra.mxu0 0.0
    %1770 = vmatprep.subr.mxu0 0.0
    %1771 = vmatpush1.msra.mxu0 0.0
    %1772 = vmatprep.subr.mxu0 0.0
    %1773 = vmatpush1.msra.mxu0 0.0
    %1774 = vmatprep.subr.mxu0 0.0
    %1775 = vmatpush1.msra.mxu0 0.0
    %1776 = vmatprep.subr.mxu0 0.0
    %1777 = vmatpush1.msra.mxu0 0.0
    %1778 = vmatprep.subr.mxu0 0.0
    %1779 = vmatpush1.msra.mxu0 0.0
    %1780 = vmatprep.subr.mxu0 0.0
    %1781 = vmatpush1.msra.mxu0 0.0
    %1782 = vmatprep.subr.mxu0 0.0
    %1783 = vmatpush1.msra.mxu0 0.0
    %1784 = vmatprep.subr.mxu0 0.0
    %1785 = vmatpush1.msra.mxu0 0.0
    %1786 = vmatprep.subr.mxu0 0.0
    %1787 = vmatpush1.msra.mxu0 0.0
    %1788 = vmatprep.subr.mxu0 0.0
    %1789 = vmatpush1.msra.mxu0 0.0
    %1790 = vmatprep.subr.mxu0 0.0
    %1791 = vmatpush1.msra.mxu0 0.0
    %1792 = vmatprep.subr.mxu0 0.0
    %1793 = vmatpush1.msra.mxu0 0.0
    %1794 = vmatprep.subr.mxu0 0.0
    %1795 = vmatpush1.msra.mxu0 0.0
    %1796 = vmatprep.subr.mxu0 0.0
    %1797 = vmatpush1.msra.mxu0 0.0
    %1798 = vmatprep.subr.mxu0 0.0
    %1799 = vmatpush1.msra.mxu0 0.0
    %1800 = vmatprep.subr.mxu0 0.0
    %1801 = vmatpush1.msra.mxu0 0.0
    %1802 = vmatprep.subr.mxu0 0.0
    %1803 = vmatpush1.msra.mxu0 0.0
    %1804 = vmatprep.subr.mxu0 0.0
    %1805 = vmatpush1.msra.mxu0 0.0
    %1806 = vmatprep.subr.mxu0 0.0
    %1807 = vmatpush1.msra.mxu0 0.0
    %1808 = vmatprep.subr.mxu0 0.0
    %1809 = vmatpush1.msra.mxu0 0.0
    %1810 = vmatprep.subr.mxu0 0.0
    %1811 = vmatpush1.msra.mxu0 0.0
    %1812 = vmatprep.subr.mxu0 0.0
    %1813 = vmatpush1.msra.mxu0 0.0
    %1814 = vmatprep.subr.mxu0 0.0
    %1815 = vmatpush1.msra.mxu0 0.0
    %1816 = vmatprep.subr.mxu0 0.0
    %1817 = vmatpush1.msra.mxu0 0.0
    %1818 = vmatprep.subr.mxu0 0.0
    %1819 = vmatpush1.msra.mxu0 0.0
    %1820 = vmatprep.subr.mxu0 0.0
    %1821 = vmatpush1.msra.mxu0 0.0
    %1822 = vmatprep.mubr.f32.mxu0 0.0
    %1823 = vmatmul.mubr.f32.gmra.mrb[0].mxu0 %v1756
    %v1824 = vpop.f32.mrb[0].mxu0
    %v1825 = vadd.f32 0.0, %v1824
    %v1826 = vpop.f32.mrb[0].mxu0
    %1827 = vdwg.mxu0
    %v1828 = vadd.f32 %v1755, %v1825
    %v1829 = vxor.u32 %v1753, 2147483648
    %v1830 = vmul.f32 %v1829, 1.442695
    %v1831 = vpow.pop %v1830
    %v1832 = vadd.f32 %v1831, 1.0
    %v1833 = vrcp.pop %v1832
    %v1834 = vmul.f32 1.0, %v1833
    %v1835 = vtanh.pop %v1753
    %v1836 = vmul.f32 %v1834, %v1636
    %1838 = vrot.lane.b32.xlu0 %v1835, 64
    %v1839 = vpop.permute.xlu0 %1838
    %v1841 = vmul.f32 %v1834, %v1839
    %1843 = vrot.lane.b32.xlu0 %v1841, 32
    %v1844 = vpop.permute.xlu0 %1843
    %v1846 = vadd.f32 %v1836, %v1844
    %v1847 = vtanh.pop %v1846
    %1849 = vrot.lane.b32.xlu0 %v1847, 64
    %v1850 = vpop.permute.xlu0 %1849
    %v1852 = vmul.f32 %v1834, %v1850
    %v1853 = vxor.u32 %v1828, 2147483648
    %v1854 = vmul.f32 %v1853, 1.442695
    %v1855 = vpow.pop %v1854
    %v1856 = vadd.f32 %v1855, 1.0
    %v1857 = vrcp.pop %v1856
    %v1858 = vmul.f32 1.0, %v1857
    %v1859 = vtanh.pop %v1828
    %v1860 = vmul.f32 %v1858, %v1660
    %1862 = vrot.lane.b32.xlu0 %v1859, 64
    %v1863 = vpop.permute.xlu0 %1862
    %v1865 = vmul.f32 %v1858, %v1863
    %1867 = vrot.lane.b32.xlu0 %v1865, 32
    %v1868 = vpop.permute.xlu0 %1867
    %v1870 = vadd.f32 %v1860, %v1868
    %v1871 = vtanh.pop %v1870
    %1873 = vrot.lane.b32.xlu0 %v1871, 64
    %v1874 = vpop.permute.xlu0 %1873
    %v1876 = vmul.f32 %v1858, %v1874
    %1878 = vrot.lane.b32.xlu0 %v1852, 32
    %v1879 = vpop.permute.xlu0 %1878
    %s1881 = scalar_lea.vmem [#allocation4], 48
    %1882 = vst.msk [vmem:[%s1881] sm:$0xff] %vm232, %v1879
    %1884 = vrot.lane.b32.xlu0 %v1876, 32
    %v1885 = vpop.permute.xlu0 %1884
    %s1887 = scalar_lea.vmem [#allocation5], 8
    %1888 = vst.msk [vmem:[%s1887] sm:$0xff] %vm232, %v1885
    %s1889 = scalar_lea.vmem [#allocation2], 56
    %v1890 = vld [vmem:[%s1889] sm:$0xff]
    %v1891 = vsel %vm232, %v1879, 0
    %1893 = vmatprep.subr.mxu0 0.0
    %1894 = vmatpush1.msra.mxu0 %v414
    %1895 = vmatprep.subr.mxu0 0.0
    %1896 = vmatpush1.msra.mxu0 %v415
    %1897 = vmatprep.subr.mxu0 0.0
    %1898 = vmatpush1.msra.mxu0 %v416
    %1899 = vmatprep.subr.mxu0 0.0
    %1900 = vmatpush1.msra.mxu0 %v417
    %1901 = vmatprep.subr.mxu0 0.0
    %1902 = vmatpush1.msra.mxu0 0.0
    %1903 = vmatprep.subr.mxu0 0.0
    %1904 = vmatpush1.msra.mxu0 0.0
    %1905 = vmatprep.subr.mxu0 0.0
    %1906 = vmatpush1.msra.mxu0 0.0
    %1907 = vmatprep.subr.mxu0 0.0
    %1908 = vmatpush1.msra.mxu0 0.0
    %1909 = vmatprep.subr.mxu0 0.0
    %1910 = vmatpush1.msra.mxu0 0.0
    %1911 = vmatprep.subr.mxu0 0.0
    %1912 = vmatpush1.msra.mxu0 0.0
    %1913 = vmatprep.subr.mxu0 0.0
    %1914 = vmatpush1.msra.mxu0 0.0
    %1915 = vmatprep.subr.mxu0 0.0
    %1916 = vmatpush1.msra.mxu0 0.0
    %1917 = vmatprep.subr.mxu0 0.0
    %1918 = vmatpush1.msra.mxu0 0.0
    %1919 = vmatprep.subr.mxu0 0.0
    %1920 = vmatpush1.msra.mxu0 0.0
    %1921 = vmatprep.subr.mxu0 0.0
    %1922 = vmatpush1.msra.mxu0 0.0
    %1923 = vmatprep.subr.mxu0 0.0
    %1924 = vmatpush1.msra.mxu0 0.0
    %1925 = vmatprep.subr.mxu0 0.0
    %1926 = vmatpush1.msra.mxu0 0.0
    %1927 = vmatprep.subr.mxu0 0.0
    %1928 = vmatpush1.msra.mxu0 0.0
    %1929 = vmatprep.subr.mxu0 0.0
    %1930 = vmatpush1.msra.mxu0 0.0
    %1931 = vmatprep.subr.mxu0 0.0
    %1932 = vmatpush1.msra.mxu0 0.0
    %1933 = vmatprep.subr.mxu0 0.0
    %1934 = vmatpush1.msra.mxu0 0.0
    %1935 = vmatprep.subr.mxu0 0.0
    %1936 = vmatpush1.msra.mxu0 0.0
    %1937 = vmatprep.subr.mxu0 0.0
    %1938 = vmatpush1.msra.mxu0 0.0
    %1939 = vmatprep.subr.mxu0 0.0
    %1940 = vmatpush1.msra.mxu0 0.0
    %1941 = vmatprep.subr.mxu0 0.0
    %1942 = vmatpush1.msra.mxu0 0.0
    %1943 = vmatprep.subr.mxu0 0.0
    %1944 = vmatpush1.msra.mxu0 0.0
    %1945 = vmatprep.subr.mxu0 0.0
    %1946 = vmatpush1.msra.mxu0 0.0
    %1947 = vmatprep.subr.mxu0 0.0
    %1948 = vmatpush1.msra.mxu0 0.0
    %1949 = vmatprep.subr.mxu0 0.0
    %1950 = vmatpush1.msra.mxu0 0.0
    %1951 = vmatprep.subr.mxu0 0.0
    %1952 = vmatpush1.msra.mxu0 0.0
    %1953 = vmatprep.subr.mxu0 0.0
    %1954 = vmatpush1.msra.mxu0 0.0
    %1955 = vmatprep.subr.mxu0 0.0
    %1956 = vmatpush1.msra.mxu0 0.0
    %1957 = vmatprep.mubr.f32.mxu0 0.0
    %1958 = vmatmul.mubr.f32.gmra.mrb[0].mxu0 %v1891
    %v1959 = vpop.f32.mrb[0].mxu0
    %v1960 = vadd.f32 0.0, %v1959
    %v1961 = vpop.f32.mrb[0].mxu0
    %1962 = vdwg.mxu0
    %v1963 = vadd.f32 %v1890, %v1960
    %v1964 = vld [vmem:[#allocation3] sm:$0xff]
    %v1965 = vsel %vm232, %v1885, 0
    %1967 = vmatprep.subr.mxu0 0.0
    %1968 = vmatpush1.msra.mxu0 %v418
    %1969 = vmatprep.subr.mxu0 0.0
    %1970 = vmatpush1.msra.mxu0 %v419
    %1971 = vmatprep.subr.mxu0 0.0
    %1972 = vmatpush1.msra.mxu0 %v420
    %1973 = vmatprep.subr.mxu0 0.0
    %1974 = vmatpush1.msra.mxu0 %v421
    %1975 = vmatprep.subr.mxu0 0.0
    %1976 = vmatpush1.msra.mxu0 0.0
    %1977 = vmatprep.subr.mxu0 0.0
    %1978 = vmatpush1.msra.mxu0 0.0
    %1979 = vmatprep.subr.mxu0 0.0
    %1980 = vmatpush1.msra.mxu0 0.0
    %1981 = vmatprep.subr.mxu0 0.0
    %1982 = vmatpush1.msra.mxu0 0.0
    %1983 = vmatprep.subr.mxu0 0.0
    %1984 = vmatpush1.msra.mxu0 0.0
    %1985 = vmatprep.subr.mxu0 0.0
    %1986 = vmatpush1.msra.mxu0 0.0
    %1987 = vmatprep.subr.mxu0 0.0
    %1988 = vmatpush1.msra.mxu0 0.0
    %1989 = vmatprep.subr.mxu0 0.0
    %1990 = vmatpush1.msra.mxu0 0.0
    %1991 = vmatprep.subr.mxu0 0.0
    %1992 = vmatpush1.msra.mxu0 0.0
    %1993 = vmatprep.subr.mxu0 0.0
    %1994 = vmatpush1.msra.mxu0 0.0
    %1995 = vmatprep.subr.mxu0 0.0
    %1996 = vmatpush1.msra.mxu0 0.0
    %1997 = vmatprep.subr.mxu0 0.0
    %1998 = vmatpush1.msra.mxu0 0.0
    %1999 = vmatprep.subr.mxu0 0.0
    %2000 = vmatpush1.msra.mxu0 0.0
    %2001 = vmatprep.subr.mxu0 0.0
    %2002 = vmatpush1.msra.mxu0 0.0
    %2003 = vmatprep.subr.mxu0 0.0
    %2004 = vmatpush1.msra.mxu0 0.0
    %2005 = vmatprep.subr.mxu0 0.0
    %2006 = vmatpush1.msra.mxu0 0.0
    %2007 = vmatprep.subr.mxu0 0.0
    %2008 = vmatpush1.msra.mxu0 0.0
    %2009 = vmatprep.subr.mxu0 0.0
    %2010 = vmatpush1.msra.mxu0 0.0
    %2011 = vmatprep.subr.mxu0 0.0
    %2012 = vmatpush1.msra.mxu0 0.0
    %2013 = vmatprep.subr.mxu0 0.0
    %2014 = vmatpush1.msra.mxu0 0.0
    %2015 = vmatprep.subr.mxu0 0.0
    %2016 = vmatpush1.msra.mxu0 0.0
    %2017 = vmatprep.subr.mxu0 0.0
    %2018 = vmatpush1.msra.mxu0 0.0
    %2019 = vmatprep.subr.mxu0 0.0
    %2020 = vmatpush1.msra.mxu0 0.0
    %2021 = vmatprep.subr.mxu0 0.0
    %2022 = vmatpush1.msra.mxu0 0.0
    %2023 = vmatprep.subr.mxu0 0.0
    %2024 = vmatpush1.msra.mxu0 0.0
    %2025 = vmatprep.subr.mxu0 0.0
    %2026 = vmatpush1.msra.mxu0 0.0
    %2027 = vmatprep.subr.mxu0 0.0
    %2028 = vmatpush1.msra.mxu0 0.0
    %2029 = vmatprep.subr.mxu0 0.0
    %2030 = vmatpush1.msra.mxu0 0.0
    %2031 = vmatprep.mubr.f32.mxu0 0.0
    %2032 = vmatmul.mubr.f32.gmra.mrb[0].mxu0 %v1965
    %v2033 = vpop.f32.mrb[0].mxu0
    %v2034 = vadd.f32 0.0, %v2033
    %v2035 = vpop.f32.mrb[0].mxu0
    %2036 = vdwg.mxu0
    %v2037 = vadd.f32 %v1964, %v2034
    %v2038 = vxor.u32 %v1963, 2147483648
    %v2039 = vmul.f32 %v2038, 1.442695
    %v2040 = vpow.pop %v2039
    %v2041 = vadd.f32 %v2040, 1.0
    %v2042 = vrcp.pop %v2041
    %v2043 = vmul.f32 1.0, %v2042
    %v2044 = vtanh.pop %v1963
    %v2045 = vmul.f32 %v2043, %v1846
    %2047 = vrot.lane.b32.xlu0 %v2044, 64
    %v2048 = vpop.permute.xlu0 %2047
    %v2050 = vmul.f32 %v2043, %v2048
    %2052 = vrot.lane.b32.xlu0 %v2050, 32
    %v2053 = vpop.permute.xlu0 %2052
    %v2055 = vadd.f32 %v2045, %v2053
    %v2056 = vtanh.pop %v2055
    %2058 = vrot.lane.b32.xlu0 %v2056, 64
    %v2059 = vpop.permute.xlu0 %2058
    %v2061 = vmul.f32 %v2043, %v2059
    %v2062 = vxor.u32 %v2037, 2147483648
    %v2063 = vmul.f32 %v2062, 1.442695
    %v2064 = vpow.pop %v2063
    %v2065 = vadd.f32 %v2064, 1.0
    %v2066 = vrcp.pop %v2065
    %v2067 = vmul.f32 1.0, %v2066
    %v2068 = vtanh.pop %v2037
    %v2069 = vmul.f32 %v2067, %v1870
    %2071 = vrot.lane.b32.xlu0 %v2068, 64
    %v2072 = vpop.permute.xlu0 %2071
    %v2074 = vmul.f32 %v2067, %v2072
    %2076 = vrot.lane.b32.xlu0 %v2074, 32
    %v2077 = vpop.permute.xlu0 %2076
    %v2079 = vadd.f32 %v2069, %v2077
    %v2080 = vtanh.pop %v2079
    %2082 = vrot.lane.b32.xlu0 %v2080, 64
    %v2083 = vpop.permute.xlu0 %2082
    %v2085 = vmul.f32 %v2067, %v2083
    %2087 = vrot.lane.b32.xlu0 %v2061, 32
    %v2088 = vpop.permute.xlu0 %2087
    %s2090 = scalar_lea.vmem [#allocation4], 56
    %2091 = vst.msk [vmem:[%s2090] sm:$0xff] %vm232, %v2088
    %2093 = vrot.lane.b32.xlu0 %v2085, 32
    %v2094 = vpop.permute.xlu0 %2093
    %2096 = vst.msk [vmem:[#allocation5] sm:$0xff] %vm232, %v2094
    %v2097 = vld [vmem:[#allocation4] sm:$0xff]
    %v2098 = vld [vmem:[#allocation4 + $0x8] sm:$0xff]
    %v2099 = vld [vmem:[#allocation4 + $0x10] sm:$0xff]
    %v2100 = vld [vmem:[#allocation4 + $0x18] sm:$0xff]
    %v2101 = vld [vmem:[#allocation4 + $0x20] sm:$0xff]
    %v2102 = vld [vmem:[#allocation4 + $0x28] sm:$0xff]
    %v2103 = vld [vmem:[#allocation4 + $0x30] sm:$0xff]
    %v2104 = vld [vmem:[#allocation4 + $0x38] sm:$0xff]
    %v2105 = vpack.c.bf16 %v2098, %v2097
    %v2106 = vpack.c.bf16 %v2100, %v2099
    %v2107 = vpack.c.bf16 %v2102, %v2101
    %v2108 = vpack.c.bf16 %v2104, %v2103
    %v2109 = vld [vmem:[#allocation5] sm:$0xff]
    %v2110 = vld [vmem:[#allocation5 + $0x8] sm:$0xff]
    %v2111 = vld [vmem:[#allocation5 + $0x10] sm:$0xff]
    %v2112 = vld [vmem:[#allocation5 + $0x18] sm:$0xff]
    %v2113 = vld [vmem:[#allocation5 + $0x20] sm:$0xff]
    %v2114 = vld [vmem:[#allocation5 + $0x28] sm:$0xff]
    %v2115 = vld [vmem:[#allocation5 + $0x30] sm:$0xff]
    %v2116 = vld [vmem:[#allocation5 + $0x38] sm:$0xff]
    %v2117 = vpack.c.bf16 %v2110, %v2109
    %v2118 = vpack.c.bf16 %v2112, %v2111
    %v2119 = vpack.c.bf16 %v2114, %v2113
    %v2120 = vpack.c.bf16 %v2116, %v2115
    %v2121 = vld [vmem:[%s7] sm:$0xf]
    %v2122 = vld [vmem:[%s7 + $0x4] sm:$0xf]
    %v2123 = vld [vmem:[%s7 + $0x8] sm:$0xf]
    %v2124 = vld [vmem:[%s7 + $0xc] sm:$0xf]
    %v2125 = vld [vmem:[%s7 + $0x10] sm:$0xf]
    %v2126 = vld [vmem:[%s7 + $0x14] sm:$0xf]
    %v2127 = vld [vmem:[%s7 + $0x18] sm:$0xf]
    %v2128 = vld [vmem:[%s7 + $0x1c] sm:$0xf]
    %v2129 = vld [vmem:[%s8] sm:$0xf]
    %v2130 = vld [vmem:[%s8 + $0x4] sm:$0xf]
    %v2131 = vld [vmem:[%s8 + $0x8] sm:$0xf]
    %v2132 = vld [vmem:[%s8 + $0xc] sm:$0xf]
    %v2133 = vld [vmem:[%s8 + $0x10] sm:$0xf]
    %v2134 = vld [vmem:[%s8 + $0x14] sm:$0xf]
    %v2135 = vld [vmem:[%s8 + $0x18] sm:$0xf]
    %v2136 = vld [vmem:[%s8 + $0x1c] sm:$0xf]
    %v2141 = vunpack.c.l.b16 %v2125
    %v2142 = vunpack.c.l.b16 %v2126
    %v2143 = vunpack.c.l.b16 %v2127
    %v2144 = vunpack.c.l.b16 %v2128
    %v2145 = vpack.c.b16 %v2142, %v2141
    %v2146 = vpack.c.b16 %v2144, %v2143
    %v2150 = vsel %vm232, %v2117, 0
    %v2153 = vsel %vm232, %v2118, 0
    %v2156 = vsel %vm232, %v2119, 0
    %v2159 = vsel %vm232, %v2120, 0
    %2161 = vmatprep.subr.bf16.mxu0 0
    %2162 = vmatpush1.bf16.msra.mxu0 %v2145
    %2163 = vmatprep.subr.bf16.mxu0 0
    %2164 = vmatpush1.bf16.msra.mxu0 %v2146
    %2165 = vmatprep.subr.bf16.mxu0 0
    %2166 = vmatpush1.bf16.msra.mxu0 0
    %2167 = vmatprep.subr.bf16.mxu0 0
    %2168 = vmatpush1.bf16.msra.mxu0 0
    %2169 = vmatprep.subr.bf16.mxu0 0
    %2170 = vmatpush1.bf16.msra.mxu0 0
    %2171 = vmatprep.subr.bf16.mxu0 0
    %2172 = vmatpush1.bf16.msra.mxu0 0
    %2173 = vmatprep.subr.bf16.mxu0 0
    %2174 = vmatpush1.bf16.msra.mxu0 0
    %2175 = vmatprep.subr.bf16.mxu0 0
    %2176 = vmatpush1.bf16.msra.mxu0 0
    %2177 = vmatprep.subr.bf16.mxu0 0
    %2178 = vmatpush1.bf16.msra.mxu0 0
    %2179 = vmatprep.subr.bf16.mxu0 0
    %2180 = vmatpush1.bf16.msra.mxu0 0
    %2181 = vmatprep.subr.bf16.mxu0 0
    %2182 = vmatpush1.bf16.msra.mxu0 0
    %2183 = vmatprep.subr.bf16.mxu0 0
    %2184 = vmatpush1.bf16.msra.mxu0 0
    %2185 = vmatprep.subr.bf16.mxu0 0
    %2186 = vmatpush1.bf16.msra.mxu0 0
    %2187 = vmatprep.subr.bf16.mxu0 0
    %2188 = vmatpush1.bf16.msra.mxu0 0
    %2189 = vmatprep.subr.bf16.mxu0 0
    %2190 = vmatpush1.bf16.msra.mxu0 0
    %2191 = vmatprep.subr.bf16.mxu0 0
    %2192 = vmatpush1.bf16.msra.mxu0 0
    %2193 = vmatprep.mubr.bf16.mxu0 0
    %2194 = vmatmul.mubr.bf16.gmra.mrb[0].mxu0 %v2150
    %v2195 = vpop.f32.mrb[0].mxu0
    %v2196 = vadd.f32 0.0, %v2195
    %v2197 = vpop.f32.mrb[0].mxu0
    %v2198 = vpop.f32.mrb[0].mxu0
    %v2199 = vadd.f32 0.0, %v2198
    %v2200 = vpop.f32.mrb[0].mxu0
    %2201 = vmatprep.mubr.bf16.mxu0 0
    %2202 = vmatmul.mubr.bf16.gmra.mrb[0].mxu0 %v2153
    %v2203 = vpop.f32.mrb[0].mxu0
    %v2204 = vadd.f32 0.0, %v2203
    %v2205 = vpop.f32.mrb[0].mxu0
    %v2206 = vpop.f32.mrb[0].mxu0
    %v2207 = vadd.f32 0.0, %v2206
    %v2208 = vpop.f32.mrb[0].mxu0
    %2209 = vmatprep.mubr.bf16.mxu0 0
    %2210 = vmatmul.mubr.bf16.gmra.mrb[0].mxu0 %v2156
    %v2211 = vpop.f32.mrb[0].mxu0
    %v2212 = vadd.f32 0.0, %v2211
    %v2213 = vpop.f32.mrb[0].mxu0
    %v2214 = vpop.f32.mrb[0].mxu0
    %v2215 = vadd.f32 0.0, %v2214
    %v2216 = vpop.f32.mrb[0].mxu0
    %2217 = vmatprep.mubr.bf16.mxu0 0
    %2218 = vmatmul.mubr.bf16.gmra.mrb[0].mxu0 %v2159
    %v2219 = vpop.f32.mrb[0].mxu0
    %v2220 = vadd.f32 0.0, %v2219
    %v2221 = vpop.f32.mrb[0].mxu0
    %v2222 = vpop.f32.mrb[0].mxu0
    %v2223 = vadd.f32 0.0, %v2222
    %v2224 = vpop.f32.mrb[0].mxu0
    %2225 = vdwg.mxu0
    %v2230 = vunpack.c.l.b16 %v2121
    %v2231 = vunpack.c.l.b16 %v2122
    %v2232 = vunpack.c.l.b16 %v2123
    %v2233 = vunpack.c.l.b16 %v2124
    %v2234 = vpack.c.b16 %v2231, %v2230
    %v2235 = vpack.c.b16 %v2233, %v2232
    %v2239 = vsel %vm232, %v2105, 0
    %v2242 = vsel %vm232, %v2106, 0
    %v2245 = vsel %vm232, %v2107, 0
    %v2248 = vsel %vm232, %v2108, 0
    %2250 = vmatprep.subr.bf16.mxu0 0
    %2251 = vmatpush1.bf16.msra.mxu0 %v2234
    %2252 = vmatprep.subr.bf16.mxu0 0
    %2253 = vmatpush1.bf16.msra.mxu0 %v2235
    %2254 = vmatprep.subr.bf16.mxu0 0
    %2255 = vmatpush1.bf16.msra.mxu0 0
    %2256 = vmatprep.subr.bf16.mxu0 0
    %2257 = vmatpush1.bf16.msra.mxu0 0
    %2258 = vmatprep.subr.bf16.mxu0 0
    %2259 = vmatpush1.bf16.msra.mxu0 0
    %2260 = vmatprep.subr.bf16.mxu0 0
    %2261 = vmatpush1.bf16.msra.mxu0 0
    %2262 = vmatprep.subr.bf16.mxu0 0
    %2263 = vmatpush1.bf16.msra.mxu0 0
    %2264 = vmatprep.subr.bf16.mxu0 0
    %2265 = vmatpush1.bf16.msra.mxu0 0
    %2266 = vmatprep.subr.bf16.mxu0 0
    %2267 = vmatpush1.bf16.msra.mxu0 0
    %2268 = vmatprep.subr.bf16.mxu0 0
    %2269 = vmatpush1.bf16.msra.mxu0 0
    %2270 = vmatprep.subr.bf16.mxu0 0
    %2271 = vmatpush1.bf16.msra.mxu0 0
    %2272 = vmatprep.subr.bf16.mxu0 0
    %2273 = vmatpush1.bf16.msra.mxu0 0
    %2274 = vmatprep.subr.bf16.mxu0 0
    %2275 = vmatpush1.bf16.msra.mxu0 0
    %2276 = vmatprep.subr.bf16.mxu0 0
    %2277 = vmatpush1.bf16.msra.mxu0 0
    %2278 = vmatprep.subr.bf16.mxu0 0
    %2279 = vmatpush1.bf16.msra.mxu0 0
    %2280 = vmatprep.subr.bf16.mxu0 0
    %2281 = vmatpush1.bf16.msra.mxu0 0
    %2282 = vmatprep.mubr.bf16.mxu0 0
    %2283 = vmatmul.mubr.bf16.gmra.mrb[0].mxu0 %v2239
    %v2284 = vpop.f32.mrb[0].mxu0
    %v2285 = vadd.f32 %v2196, %v2284
    %v2286 = vpop.f32.mrb[0].mxu0
    %v2287 = vpop.f32.mrb[0].mxu0
    %v2288 = vadd.f32 %v2199, %v2287
    %v2289 = vpop.f32.mrb[0].mxu0
    %2290 = vmatprep.mubr.bf16.mxu0 0
    %2291 = vmatmul.mubr.bf16.gmra.mrb[0].mxu0 %v2242
    %v2292 = vpop.f32.mrb[0].mxu0
    %v2293 = vadd.f32 %v2204, %v2292
    %v2294 = vpop.f32.mrb[0].mxu0
    %v2295 = vpop.f32.mrb[0].mxu0
    %v2296 = vadd.f32 %v2207, %v2295
    %v2297 = vpop.f32.mrb[0].mxu0
    %2298 = vmatprep.mubr.bf16.mxu0 0
    %2299 = vmatmul.mubr.bf16.gmra.mrb[0].mxu0 %v2245
    %v2300 = vpop.f32.mrb[0].mxu0
    %v2301 = vadd.f32 %v2212, %v2300
    %v2302 = vpop.f32.mrb[0].mxu0
    %v2303 = vpop.f32.mrb[0].mxu0
    %v2304 = vadd.f32 %v2215, %v2303
    %v2305 = vpop.f32.mrb[0].mxu0
    %2306 = vmatprep.mubr.bf16.mxu0 0
    %2307 = vmatmul.mubr.bf16.gmra.mrb[0].mxu0 %v2248
    %v2308 = vpop.f32.mrb[0].mxu0
    %v2309 = vadd.f32 %v2220, %v2308
    %v2310 = vpop.f32.mrb[0].mxu0
    %v2311 = vpop.f32.mrb[0].mxu0
    %v2312 = vadd.f32 %v2223, %v2311
    %v2313 = vpop.f32.mrb[0].mxu0
    %2314 = vdwg.mxu0
    %v2315 = vld [vmem:[#allocation13] sm:$0x1]
    %v2317 = vlaneseq
    %v2318 = vshrl.u32 %v2317, 7
    %v2319 = vsub.s32 0, %v2318
    %v2320 = vrot.slane %v2315, %v2319
    %v2322 = vadd.f32 %v2285, %v2320
    %v2323 = vadd.f32 %v2288, %v2320
    %v2324 = vadd.f32 %v2293, %v2320
    %v2325 = vadd.f32 %v2296, %v2320
    %v2326 = vadd.f32 %v2301, %v2320
    %v2327 = vadd.f32 %v2304, %v2320
    %v2328 = vadd.f32 %v2309, %v2320
    %v2329 = vadd.f32 %v2312, %v2320
    %2330 = vst [vmem:[#allocation2] sm:$0xff] %v2322
    %2331 = vst [vmem:[#allocation2 + $0x8] sm:$0xff] %v2323
    %2332 = vst [vmem:[#allocation2 + $0x10] sm:$0xff] %v2324
    %2333 = vst [vmem:[#allocation2 + $0x18] sm:$0xff] %v2325
    %2334 = vst [vmem:[#allocation2 + $0x20] sm:$0xff] %v2326
    %2335 = vst [vmem:[#allocation2 + $0x28] sm:$0xff] %v2327
    %2336 = vst [vmem:[#allocation2 + $0x30] sm:$0xff] %v2328
    %2337 = vst [vmem:[#allocation2 + $0x38] sm:$0xff] %v2329
    %v2342 = vunpack.c.l.b16 %v2133
    %v2343 = vunpack.c.l.b16 %v2134
    %v2344 = vunpack.c.l.b16 %v2135
    %v2345 = vunpack.c.l.b16 %v2136
    %v2346 = vpack.c.b16 %v2343, %v2342
    %v2347 = vpack.c.b16 %v2345, %v2344
    %2350 = vmatprep.subr.bf16.mxu0 0
    %2351 = vmatpush1.bf16.msra.mxu0 %v2346
    %2352 = vmatprep.subr.bf16.mxu0 0
    %2353 = vmatpush1.bf16.msra.mxu0 %v2347
    %2354 = vmatprep.subr.bf16.mxu0 0
    %2355 = vmatpush1.bf16.msra.mxu0 0
    %2356 = vmatprep.subr.bf16.mxu0 0
    %2357 = vmatpush1.bf16.msra.mxu0 0
    %2358 = vmatprep.subr.bf16.mxu0 0
    %2359 = vmatpush1.bf16.msra.mxu0 0
    %2360 = vmatprep.subr.bf16.mxu0 0
    %2361 = vmatpush1.bf16.msra.mxu0 0
    %2362 = vmatprep.subr.bf16.mxu0 0
    %2363 = vmatpush1.bf16.msra.mxu0 0
    %2364 = vmatprep.subr.bf16.mxu0 0
    %2365 = vmatpush1.bf16.msra.mxu0 0
    %2366 = vmatprep.subr.bf16.mxu0 0
    %2367 = vmatpush1.bf16.msra.mxu0 0
    %2368 = vmatprep.subr.bf16.mxu0 0
    %2369 = vmatpush1.bf16.msra.mxu0 0
    %2370 = vmatprep.subr.bf16.mxu0 0
    %2371 = vmatpush1.bf16.msra.mxu0 0
    %2372 = vmatprep.subr.bf16.mxu0 0
    %2373 = vmatpush1.bf16.msra.mxu0 0
    %2374 = vmatprep.subr.bf16.mxu0 0
    %2375 = vmatpush1.bf16.msra.mxu0 0
    %2376 = vmatprep.subr.bf16.mxu0 0
    %2377 = vmatpush1.bf16.msra.mxu0 0
    %2378 = vmatprep.subr.bf16.mxu0 0
    %2379 = vmatpush1.bf16.msra.mxu0 0
    %2380 = vmatprep.subr.bf16.mxu0 0
    %2381 = vmatpush1.bf16.msra.mxu0 0
    %2382 = vmatprep.mubr.bf16.mxu0 0
    %2383 = vmatmul.mubr.bf16.gmra.mrb[0].mxu0 %v2150
    %v2384 = vpop.f32.mrb[0].mxu0
    %v2385 = vadd.f32 0.0, %v2384
    %v2386 = vpop.f32.mrb[0].mxu0
    %v2387 = vpop.f32.mrb[0].mxu0
    %v2388 = vadd.f32 0.0, %v2387
    %v2389 = vpop.f32.mrb[0].mxu0
    %2390 = vmatprep.mubr.bf16.mxu0 0
    %2391 = vmatmul.mubr.bf16.gmra.mrb[0].mxu0 %v2153
    %v2392 = vpop.f32.mrb[0].mxu0
    %v2393 = vadd.f32 0.0, %v2392
    %v2394 = vpop.f32.mrb[0].mxu0
    %v2395 = vpop.f32.mrb[0].mxu0
    %v2396 = vadd.f32 0.0, %v2395
    %v2397 = vpop.f32.mrb[0].mxu0
    %2398 = vmatprep.mubr.bf16.mxu0 0
    %2399 = vmatmul.mubr.bf16.gmra.mrb[0].mxu0 %v2156
    %v2400 = vpop.f32.mrb[0].mxu0
    %v2401 = vadd.f32 0.0, %v2400
    %v2402 = vpop.f32.mrb[0].mxu0
    %v2403 = vpop.f32.mrb[0].mxu0
    %v2404 = vadd.f32 0.0, %v2403
    %v2405 = vpop.f32.mrb[0].mxu0
    %2406 = vmatprep.mubr.bf16.mxu0 0
    %2407 = vmatmul.mubr.bf16.gmra.mrb[0].mxu0 %v2159
    %v2408 = vpop.f32.mrb[0].mxu0
    %v2409 = vadd.f32 0.0, %v2408
    %v2410 = vpop.f32.mrb[0].mxu0
    %v2411 = vpop.f32.mrb[0].mxu0
    %v2412 = vadd.f32 0.0, %v2411
    %v2413 = vpop.f32.mrb[0].mxu0
    %2414 = vdwg.mxu0
    %v2419 = vunpack.c.l.b16 %v2129
    %v2420 = vunpack.c.l.b16 %v2130
    %v2421 = vunpack.c.l.b16 %v2131
    %v2422 = vunpack.c.l.b16 %v2132
    %v2423 = vpack.c.b16 %v2420, %v2419
    %v2424 = vpack.c.b16 %v2422, %v2421
    %2427 = vmatprep.subr.bf16.mxu0 0
    %2428 = vmatpush1.bf16.msra.mxu0 %v2423
    %2429 = vmatprep.subr.bf16.mxu0 0
    %2430 = vmatpush1.bf16.msra.mxu0 %v2424
    %2431 = vmatprep.subr.bf16.mxu0 0
    %2432 = vmatpush1.bf16.msra.mxu0 0
    %2433 = vmatprep.subr.bf16.mxu0 0
    %2434 = vmatpush1.bf16.msra.mxu0 0
    %2435 = vmatprep.subr.bf16.mxu0 0
    %2436 = vmatpush1.bf16.msra.mxu0 0
    %2437 = vmatprep.subr.bf16.mxu0 0
    %2438 = vmatpush1.bf16.msra.mxu0 0
    %2439 = vmatprep.subr.bf16.mxu0 0
    %2440 = vmatpush1.bf16.msra.mxu0 0
    %2441 = vmatprep.subr.bf16.mxu0 0
    %2442 = vmatpush1.bf16.msra.mxu0 0
    %2443 = vmatprep.subr.bf16.mxu0 0
    %2444 = vmatpush1.bf16.msra.mxu0 0
    %2445 = vmatprep.subr.bf16.mxu0 0
    %2446 = vmatpush1.bf16.msra.mxu0 0
    %2447 = vmatprep.subr.bf16.mxu0 0
    %2448 = vmatpush1.bf16.msra.mxu0 0
    %2449 = vmatprep.subr.bf16.mxu0 0
    %2450 = vmatpush1.bf16.msra.mxu0 0
    %2451 = vmatprep.subr.bf16.mxu0 0
    %2452 = vmatpush1.bf16.msra.mxu0 0
    %2453 = vmatprep.subr.bf16.mxu0 0
    %2454 = vmatpush1.bf16.msra.mxu0 0
    %2455 = vmatprep.subr.bf16.mxu0 0
    %2456 = vmatpush1.bf16.msra.mxu0 0
    %2457 = vmatprep.subr.bf16.mxu0 0
    %2458 = vmatpush1.bf16.msra.mxu0 0
    %2459 = vmatprep.mubr.bf16.mxu0 0
    %2460 = vmatmul.mubr.bf16.gmra.mrb[0].mxu0 %v2239
    %v2461 = vpop.f32.mrb[0].mxu0
    %v2462 = vadd.f32 %v2385, %v2461
    %v2463 = vpop.f32.mrb[0].mxu0
    %v2464 = vpop.f32.mrb[0].mxu0
    %v2465 = vadd.f32 %v2388, %v2464
    %v2466 = vpop.f32.mrb[0].mxu0
    %2467 = vmatprep.mubr.bf16.mxu0 0
    %2468 = vmatmul.mubr.bf16.gmra.mrb[0].mxu0 %v2242
    %v2469 = vpop.f32.mrb[0].mxu0
    %v2470 = vadd.f32 %v2393, %v2469
    %v2471 = vpop.f32.mrb[0].mxu0
    %v2472 = vpop.f32.mrb[0].mxu0
    %v2473 = vadd.f32 %v2396, %v2472
    %v2474 = vpop.f32.mrb[0].mxu0
    %2475 = vmatprep.mubr.bf16.mxu0 0
    %2476 = vmatmul.mubr.bf16.gmra.mrb[0].mxu0 %v2245
    %v2477 = vpop.f32.mrb[0].mxu0
    %v2478 = vadd.f32 %v2401, %v2477
    %v2479 = vpop.f32.mrb[0].mxu0
    %v2480 = vpop.f32.mrb[0].mxu0
    %v2481 = vadd.f32 %v2404, %v2480
    %v2482 = vpop.f32.mrb[0].mxu0
    %2483 = vmatprep.mubr.bf16.mxu0 0
    %2484 = vmatmul.mubr.bf16.gmra.mrb[0].mxu0 %v2248
    %v2485 = vpop.f32.mrb[0].mxu0
    %v2486 = vadd.f32 %v2409, %v2485
    %v2487 = vpop.f32.mrb[0].mxu0
    %v2488 = vpop.f32.mrb[0].mxu0
    %v2489 = vadd.f32 %v2412, %v2488
    %v2490 = vpop.f32.mrb[0].mxu0
    %2491 = vdwg.mxu0
    %v2492 = vld [vmem:[#allocation14] sm:$0x1]
    %v2494 = vlaneseq
    %v2495 = vshrl.u32 %v2494, 7
    %v2496 = vsub.s32 0, %v2495
    %v2497 = vrot.slane %v2492, %v2496
    %v2499 = vadd.f32 %v2462, %v2497
    %v2500 = vadd.f32 %v2465, %v2497
    %v2501 = vadd.f32 %v2470, %v2497
    %v2502 = vadd.f32 %v2473, %v2497
    %v2503 = vadd.f32 %v2478, %v2497
    %v2504 = vadd.f32 %v2481, %v2497
    %v2505 = vadd.f32 %v2486, %v2497
    %v2506 = vadd.f32 %v2489, %v2497
    %2507 = vst [vmem:[#allocation3] sm:$0xff] %v2499
    %2508 = vst [vmem:[#allocation3 + $0x8] sm:$0xff] %v2500
    %2509 = vst [vmem:[#allocation3 + $0x10] sm:$0xff] %v2501
    %2510 = vst [vmem:[#allocation3 + $0x18] sm:$0xff] %v2502
    %2511 = vst [vmem:[#allocation3 + $0x20] sm:$0xff] %v2503
    %2512 = vst [vmem:[#allocation3 + $0x28] sm:$0xff] %v2504
    %2513 = vst [vmem:[#allocation3 + $0x30] sm:$0xff] %v2505
    %2514 = vst [vmem:[#allocation3 + $0x38] sm:$0xff] %v2506
    %v2515 = vld [vmem:[#allocation16] sm:$0xff]
    %v2516 = vld [vmem:[#allocation16 + $0x8] sm:$0xff]
    %v2517 = vld [vmem:[#allocation16 + $0x10] sm:$0xff]
    %v2518 = vld [vmem:[#allocation16 + $0x18] sm:$0xff]
    %v2519 = vld [vmem:[#allocation17] sm:$0xff]
    %v2520 = vld [vmem:[#allocation17 + $0x8] sm:$0xff]
    %v2521 = vld [vmem:[#allocation17 + $0x10] sm:$0xff]
    %v2522 = vld [vmem:[#allocation17 + $0x18] sm:$0xff]
    %v2523 = vld [vmem:[#allocation2] sm:$0xff]
    %2524 = vmatprep.subr.mxu0 0.0
    %2525 = vmatpush1.msra.mxu0 %v2515
    %2526 = vmatprep.subr.mxu0 0.0
    %2527 = vmatpush1.msra.mxu0 %v2516
    %2528 = vmatprep.subr.mxu0 0.0
    %2529 = vmatpush1.msra.mxu0 %v2517
    %2530 = vmatprep.subr.mxu0 0.0
    %2531 = vmatpush1.msra.mxu0 %v2518
    %2532 = vmatprep.subr.mxu0 0.0
    %2533 = vmatpush1.msra.mxu0 0.0
    %2534 = vmatprep.subr.mxu0 0.0
    %2535 = vmatpush1.msra.mxu0 0.0
    %2536 = vmatprep.subr.mxu0 0.0
    %2537 = vmatpush1.msra.mxu0 0.0
    %2538 = vmatprep.subr.mxu0 0.0
    %2539 = vmatpush1.msra.mxu0 0.0
    %2540 = vmatprep.subr.mxu0 0.0
    %2541 = vmatpush1.msra.mxu0 0.0
    %2542 = vmatprep.subr.mxu0 0.0
    %2543 = vmatpush1.msra.mxu0 0.0
    %2544 = vmatprep.subr.mxu0 0.0
    %2545 = vmatpush1.msra.mxu0 0.0
    %2546 = vmatprep.subr.mxu0 0.0
    %2547 = vmatpush1.msra.mxu0 0.0
    %2548 = vmatprep.subr.mxu0 0.0
    %2549 = vmatpush1.msra.mxu0 0.0
    %2550 = vmatprep.subr.mxu0 0.0
    %2551 = vmatpush1.msra.mxu0 0.0
    %2552 = vmatprep.subr.mxu0 0.0
    %2553 = vmatpush1.msra.mxu0 0.0
    %2554 = vmatprep.subr.mxu0 0.0
    %2555 = vmatpush1.msra.mxu0 0.0
    %2556 = vmatprep.subr.mxu0 0.0
    %2557 = vmatpush1.msra.mxu0 0.0
    %2558 = vmatprep.subr.mxu0 0.0
    %2559 = vmatpush1.msra.mxu0 0.0
    %2560 = vmatprep.subr.mxu0 0.0
    %2561 = vmatpush1.msra.mxu0 0.0
    %2562 = vmatprep.subr.mxu0 0.0
    %2563 = vmatpush1.msra.mxu0 0.0
    %2564 = vmatprep.subr.mxu0 0.0
    %2565 = vmatpush1.msra.mxu0 0.0
    %2566 = vmatprep.subr.mxu0 0.0
    %2567 = vmatpush1.msra.mxu0 0.0
    %2568 = vmatprep.subr.mxu0 0.0
    %2569 = vmatpush1.msra.mxu0 0.0
    %2570 = vmatprep.subr.mxu0 0.0
    %2571 = vmatpush1.msra.mxu0 0.0
    %2572 = vmatprep.subr.mxu0 0.0
    %2573 = vmatpush1.msra.mxu0 0.0
    %2574 = vmatprep.subr.mxu0 0.0
    %2575 = vmatpush1.msra.mxu0 0.0
    %2576 = vmatprep.subr.mxu0 0.0
    %2577 = vmatpush1.msra.mxu0 0.0
    %2578 = vmatprep.subr.mxu0 0.0
    %2579 = vmatpush1.msra.mxu0 0.0
    %2580 = vmatprep.subr.mxu0 0.0
    %2581 = vmatpush1.msra.mxu0 0.0
    %2582 = vmatprep.subr.mxu0 0.0
    %2583 = vmatpush1.msra.mxu0 0.0
    %2584 = vmatprep.subr.mxu0 0.0
    %2585 = vmatpush1.msra.mxu0 0.0
    %2586 = vmatprep.subr.mxu0 0.0
    %2587 = vmatpush1.msra.mxu0 0.0
    %2588 = vmatprep.mubr.f32.mxu0 0.0
    %2589 = vmatmul.mubr.f32.gmra.mrb[0].mxu0 %v424
    %v2590 = vpop.f32.mrb[0].mxu0
    %v2591 = vadd.f32 0.0, %v2590
    %v2592 = vpop.f32.mrb[0].mxu0
    %2593 = vdwg.mxu0
    %v2594 = vadd.f32 %v2523, %v2591
    %v2595 = vld [vmem:[%s497] sm:$0xff]
    %2596 = vmatprep.subr.mxu0 0.0
    %2597 = vmatpush1.msra.mxu0 %v2519
    %2598 = vmatprep.subr.mxu0 0.0
    %2599 = vmatpush1.msra.mxu0 %v2520
    %2600 = vmatprep.subr.mxu0 0.0
    %2601 = vmatpush1.msra.mxu0 %v2521
    %2602 = vmatprep.subr.mxu0 0.0
    %2603 = vmatpush1.msra.mxu0 %v2522
    %2604 = vmatprep.subr.mxu0 0.0
    %2605 = vmatpush1.msra.mxu0 0.0
    %2606 = vmatprep.subr.mxu0 0.0
    %2607 = vmatpush1.msra.mxu0 0.0
    %2608 = vmatprep.subr.mxu0 0.0
    %2609 = vmatpush1.msra.mxu0 0.0
    %2610 = vmatprep.subr.mxu0 0.0
    %2611 = vmatpush1.msra.mxu0 0.0
    %2612 = vmatprep.subr.mxu0 0.0
    %2613 = vmatpush1.msra.mxu0 0.0
    %2614 = vmatprep.subr.mxu0 0.0
    %2615 = vmatpush1.msra.mxu0 0.0
    %2616 = vmatprep.subr.mxu0 0.0
    %2617 = vmatpush1.msra.mxu0 0.0
    %2618 = vmatprep.subr.mxu0 0.0
    %2619 = vmatpush1.msra.mxu0 0.0
    %2620 = vmatprep.subr.mxu0 0.0
    %2621 = vmatpush1.msra.mxu0 0.0
    %2622 = vmatprep.subr.mxu0 0.0
    %2623 = vmatpush1.msra.mxu0 0.0
    %2624 = vmatprep.subr.mxu0 0.0
    %2625 = vmatpush1.msra.mxu0 0.0
    %2626 = vmatprep.subr.mxu0 0.0
    %2627 = vmatpush1.msra.mxu0 0.0
    %2628 = vmatprep.subr.mxu0 0.0
    %2629 = vmatpush1.msra.mxu0 0.0
    %2630 = vmatprep.subr.mxu0 0.0
    %2631 = vmatpush1.msra.mxu0 0.0
    %2632 = vmatprep.subr.mxu0 0.0
    %2633 = vmatpush1.msra.mxu0 0.0
    %2634 = vmatprep.subr.mxu0 0.0
    %2635 = vmatpush1.msra.mxu0 0.0
    %2636 = vmatprep.subr.mxu0 0.0
    %2637 = vmatpush1.msra.mxu0 0.0
    %2638 = vmatprep.subr.mxu0 0.0
    %2639 = vmatpush1.msra.mxu0 0.0
    %2640 = vmatprep.subr.mxu0 0.0
    %2641 = vmatpush1.msra.mxu0 0.0
    %2642 = vmatprep.subr.mxu0 0.0
    %2643 = vmatpush1.msra.mxu0 0.0
    %2644 = vmatprep.subr.mxu0 0.0
    %2645 = vmatpush1.msra.mxu0 0.0
    %2646 = vmatprep.subr.mxu0 0.0
    %2647 = vmatpush1.msra.mxu0 0.0
    %2648 = vmatprep.subr.mxu0 0.0
    %2649 = vmatpush1.msra.mxu0 0.0
    %2650 = vmatprep.subr.mxu0 0.0
    %2651 = vmatpush1.msra.mxu0 0.0
    %2652 = vmatprep.subr.mxu0 0.0
    %2653 = vmatpush1.msra.mxu0 0.0
    %2654 = vmatprep.subr.mxu0 0.0
    %2655 = vmatpush1.msra.mxu0 0.0
    %2656 = vmatprep.subr.mxu0 0.0
    %2657 = vmatpush1.msra.mxu0 0.0
    %2658 = vmatprep.subr.mxu0 0.0
    %2659 = vmatpush1.msra.mxu0 0.0
    %2660 = vmatprep.mubr.f32.mxu0 0.0
    %2661 = vmatmul.mubr.f32.gmra.mrb[0].mxu0 %v424
    %v2662 = vpop.f32.mrb[0].mxu0
    %v2663 = vadd.f32 0.0, %v2662
    %v2664 = vpop.f32.mrb[0].mxu0
    %2665 = vdwg.mxu0
    %v2666 = vadd.f32 %v2595, %v2663
    %v2667 = vxor.u32 %v2594, 2147483648
    %v2668 = vmul.f32 %v2667, 1.442695
    %v2669 = vpow.pop %v2668
    %v2670 = vadd.f32 %v2669, 1.0
    %v2671 = vrcp.pop %v2670
    %v2672 = vmul.f32 1.0, %v2671
    %v2673 = vtanh.pop %v2594
    %v2674 = vmul.f32 %v2672, 0.0
    %2676 = vrot.lane.b32.xlu0 %v2673, 64
    %v2677 = vpop.permute.xlu0 %2676
    %v2679 = vmul.f32 %v2672, %v2677
    %2681 = vrot.lane.b32.xlu0 %v2679, 32
    %v2682 = vpop.permute.xlu0 %2681
    %v2684 = vadd.f32 %v2674, %v2682
    %v2685 = vtanh.pop %v2684
    %2687 = vrot.lane.b32.xlu0 %v2685, 64
    %v2688 = vpop.permute.xlu0 %2687
    %v2690 = vmul.f32 %v2672, %v2688
    %v2691 = vxor.u32 %v2666, 2147483648
    %v2692 = vmul.f32 %v2691, 1.442695
    %v2693 = vpow.pop %v2692
    %v2694 = vadd.f32 %v2693, 1.0
    %v2695 = vrcp.pop %v2694
    %v2696 = vmul.f32 1.0, %v2695
    %v2697 = vtanh.pop %v2666
    %v2698 = vmul.f32 %v2696, 0.0
    %2700 = vrot.lane.b32.xlu0 %v2697, 64
    %v2701 = vpop.permute.xlu0 %2700
    %v2703 = vmul.f32 %v2696, %v2701
    %2705 = vrot.lane.b32.xlu0 %v2703, 32
    %v2706 = vpop.permute.xlu0 %2705
    %v2708 = vadd.f32 %v2698, %v2706
    %v2709 = vtanh.pop %v2708
    %2711 = vrot.lane.b32.xlu0 %v2709, 64
    %v2712 = vpop.permute.xlu0 %2711
    %v2714 = vmul.f32 %v2696, %v2712
    %v2715 = vadd.f32 %v2690, 0.0
    %v2716 = vadd.f32 %v2714, 0.0
    %v2717 = vld [vmem:[%s629] sm:$0xff]
    %2719 = vrot.lane.b32.xlu0 %v2690, 32
    %v2720 = vpop.permute.xlu0 %2719
    %v2721 = vsel %vm232, %v2720, 0
    %2723 = vmatprep.subr.mxu0 0.0
    %2724 = vmatpush1.msra.mxu0 %v2515
    %2725 = vmatprep.subr.mxu0 0.0
    %2726 = vmatpush1.msra.mxu0 %v2516
    %2727 = vmatprep.subr.mxu0 0.0
    %2728 = vmatpush1.msra.mxu0 %v2517
    %2729 = vmatprep.subr.mxu0 0.0
    %2730 = vmatpush1.msra.mxu0 %v2518
    %2731 = vmatprep.subr.mxu0 0.0
    %2732 = vmatpush1.msra.mxu0 0.0
    %2733 = vmatprep.subr.mxu0 0.0
    %2734 = vmatpush1.msra.mxu0 0.0
    %2735 = vmatprep.subr.mxu0 0.0
    %2736 = vmatpush1.msra.mxu0 0.0
    %2737 = vmatprep.subr.mxu0 0.0
    %2738 = vmatpush1.msra.mxu0 0.0
    %2739 = vmatprep.subr.mxu0 0.0
    %2740 = vmatpush1.msra.mxu0 0.0
    %2741 = vmatprep.subr.mxu0 0.0
    %2742 = vmatpush1.msra.mxu0 0.0
    %2743 = vmatprep.subr.mxu0 0.0
    %2744 = vmatpush1.msra.mxu0 0.0
    %2745 = vmatprep.subr.mxu0 0.0
    %2746 = vmatpush1.msra.mxu0 0.0
    %2747 = vmatprep.subr.mxu0 0.0
    %2748 = vmatpush1.msra.mxu0 0.0
    %2749 = vmatprep.subr.mxu0 0.0
    %2750 = vmatpush1.msra.mxu0 0.0
    %2751 = vmatprep.subr.mxu0 0.0
    %2752 = vmatpush1.msra.mxu0 0.0
    %2753 = vmatprep.subr.mxu0 0.0
    %2754 = vmatpush1.msra.mxu0 0.0
    %2755 = vmatprep.subr.mxu0 0.0
    %2756 = vmatpush1.msra.mxu0 0.0
    %2757 = vmatprep.subr.mxu0 0.0
    %2758 = vmatpush1.msra.mxu0 0.0
    %2759 = vmatprep.subr.mxu0 0.0
    %2760 = vmatpush1.msra.mxu0 0.0
    %2761 = vmatprep.subr.mxu0 0.0
    %2762 = vmatpush1.msra.mxu0 0.0
    %2763 = vmatprep.subr.mxu0 0.0
    %2764 = vmatpush1.msra.mxu0 0.0
    %2765 = vmatprep.subr.mxu0 0.0
    %2766 = vmatpush1.msra.mxu0 0.0
    %2767 = vmatprep.subr.mxu0 0.0
    %2768 = vmatpush1.msra.mxu0 0.0
    %2769 = vmatprep.subr.mxu0 0.0
    %2770 = vmatpush1.msra.mxu0 0.0
    %2771 = vmatprep.subr.mxu0 0.0
    %2772 = vmatpush1.msra.mxu0 0.0
    %2773 = vmatprep.subr.mxu0 0.0
    %2774 = vmatpush1.msra.mxu0 0.0
    %2775 = vmatprep.subr.mxu0 0.0
    %2776 = vmatpush1.msra.mxu0 0.0
    %2777 = vmatprep.subr.mxu0 0.0
    %2778 = vmatpush1.msra.mxu0 0.0
    %2779 = vmatprep.subr.mxu0 0.0
    %2780 = vmatpush1.msra.mxu0 0.0
    %2781 = vmatprep.subr.mxu0 0.0
    %2782 = vmatpush1.msra.mxu0 0.0
    %2783 = vmatprep.subr.mxu0 0.0
    %2784 = vmatpush1.msra.mxu0 0.0
    %2785 = vmatprep.subr.mxu0 0.0
    %2786 = vmatpush1.msra.mxu0 0.0
    %2787 = vmatprep.mubr.f32.mxu0 0.0
    %2788 = vmatmul.mubr.f32.gmra.mrb[0].mxu0 %v2721
    %v2789 = vpop.f32.mrb[0].mxu0
    %v2790 = vadd.f32 0.0, %v2789
    %v2791 = vpop.f32.mrb[0].mxu0
    %2792 = vdwg.mxu0
    %v2793 = vadd.f32 %v2717, %v2790
    %v2794 = vld [vmem:[%s704] sm:$0xff]
    %2796 = vrot.lane.b32.xlu0 %v2714, 32
    %v2797 = vpop.permute.xlu0 %2796
    %v2798 = vsel %vm232, %v2797, 0
    %2800 = vmatprep.subr.mxu0 0.0
    %2801 = vmatpush1.msra.mxu0 %v2519
    %2802 = vmatprep.subr.mxu0 0.0
    %2803 = vmatpush1.msra.mxu0 %v2520
    %2804 = vmatprep.subr.mxu0 0.0
    %2805 = vmatpush1.msra.mxu0 %v2521
    %2806 = vmatprep.subr.mxu0 0.0
    %2807 = vmatpush1.msra.mxu0 %v2522
    %2808 = vmatprep.subr.mxu0 0.0
    %2809 = vmatpush1.msra.mxu0 0.0
    %2810 = vmatprep.subr.mxu0 0.0
    %2811 = vmatpush1.msra.mxu0 0.0
    %2812 = vmatprep.subr.mxu0 0.0
    %2813 = vmatpush1.msra.mxu0 0.0
    %2814 = vmatprep.subr.mxu0 0.0
    %2815 = vmatpush1.msra.mxu0 0.0
    %2816 = vmatprep.subr.mxu0 0.0
    %2817 = vmatpush1.msra.mxu0 0.0
    %2818 = vmatprep.subr.mxu0 0.0
    %2819 = vmatpush1.msra.mxu0 0.0
    %2820 = vmatprep.subr.mxu0 0.0
    %2821 = vmatpush1.msra.mxu0 0.0
    %2822 = vmatprep.subr.mxu0 0.0
    %2823 = vmatpush1.msra.mxu0 0.0
    %2824 = vmatprep.subr.mxu0 0.0
    %2825 = vmatpush1.msra.mxu0 0.0
    %2826 = vmatprep.subr.mxu0 0.0
    %2827 = vmatpush1.msra.mxu0 0.0
    %2828 = vmatprep.subr.mxu0 0.0
    %2829 = vmatpush1.msra.mxu0 0.0
    %2830 = vmatprep.subr.mxu0 0.0
    %2831 = vmatpush1.msra.mxu0 0.0
    %2832 = vmatprep.subr.mxu0 0.0
    %2833 = vmatpush1.msra.mxu0 0.0
    %2834 = vmatprep.subr.mxu0 0.0
    %2835 = vmatpush1.msra.mxu0 0.0
    %2836 = vmatprep.subr.mxu0 0.0
    %2837 = vmatpush1.msra.mxu0 0.0
    %2838 = vmatprep.subr.mxu0 0.0
    %2839 = vmatpush1.msra.mxu0 0.0
    %2840 = vmatprep.subr.mxu0 0.0
    %2841 = vmatpush1.msra.mxu0 0.0
    %2842 = vmatprep.subr.mxu0 0.0
    %2843 = vmatpush1.msra.mxu0 0.0
    %2844 = vmatprep.subr.mxu0 0.0
    %2845 = vmatpush1.msra.mxu0 0.0
    %2846 = vmatprep.subr.mxu0 0.0
    %2847 = vmatpush1.msra.mxu0 0.0
    %2848 = vmatprep.subr.mxu0 0.0
    %2849 = vmatpush1.msra.mxu0 0.0
    %2850 = vmatprep.subr.mxu0 0.0
    %2851 = vmatpush1.msra.mxu0 0.0
    %2852 = vmatprep.subr.mxu0 0.0
    %2853 = vmatpush1.msra.mxu0 0.0
    %2854 = vmatprep.subr.mxu0 0.0
    %2855 = vmatpush1.msra.mxu0 0.0
    %2856 = vmatprep.subr.mxu0 0.0
    %2857 = vmatpush1.msra.mxu0 0.0
    %2858 = vmatprep.subr.mxu0 0.0
    %2859 = vmatpush1.msra.mxu0 0.0
    %2860 = vmatprep.subr.mxu0 0.0
    %2861 = vmatpush1.msra.mxu0 0.0
    %2862 = vmatprep.subr.mxu0 0.0
    %2863 = vmatpush1.msra.mxu0 0.0
    %2864 = vmatprep.mubr.f32.mxu0 0.0
    %2865 = vmatmul.mubr.f32.gmra.mrb[0].mxu0 %v2798
    %v2866 = vpop.f32.mrb[0].mxu0
    %v2867 = vadd.f32 0.0, %v2866
    %v2868 = vpop.f32.mrb[0].mxu0
    %2869 = vdwg.mxu0
    %v2870 = vadd.f32 %v2794, %v2867
    %v2871 = vxor.u32 %v2793, 2147483648
    %v2872 = vmul.f32 %v2871, 1.442695
    %v2873 = vpow.pop %v2872
    %v2874 = vadd.f32 %v2873, 1.0
    %v2875 = vrcp.pop %v2874
    %v2876 = vmul.f32 1.0, %v2875
    %v2877 = vtanh.pop %v2793
    %v2878 = vmul.f32 %v2876, %v2684
    %2880 = vrot.lane.b32.xlu0 %v2877, 64
    %v2881 = vpop.permute.xlu0 %2880
    %v2883 = vmul.f32 %v2876, %v2881
    %2885 = vrot.lane.b32.xlu0 %v2883, 32
    %v2886 = vpop.permute.xlu0 %2885
    %v2888 = vadd.f32 %v2878, %v2886
    %v2889 = vtanh.pop %v2888
    %2891 = vrot.lane.b32.xlu0 %v2889, 64
    %v2892 = vpop.permute.xlu0 %2891
    %v2894 = vmul.f32 %v2876, %v2892
    %v2895 = vxor.u32 %v2870, 2147483648
    %v2896 = vmul.f32 %v2895, 1.442695
    %v2897 = vpow.pop %v2896
    %v2898 = vadd.f32 %v2897, 1.0
    %v2899 = vrcp.pop %v2898
    %v2900 = vmul.f32 1.0, %v2899
    %v2901 = vtanh.pop %v2870
    %v2902 = vmul.f32 %v2900, %v2708
    %2904 = vrot.lane.b32.xlu0 %v2901, 64
    %v2905 = vpop.permute.xlu0 %2904
    %v2907 = vmul.f32 %v2900, %v2905
    %2909 = vrot.lane.b32.xlu0 %v2907, 32
    %v2910 = vpop.permute.xlu0 %2909
    %v2912 = vadd.f32 %v2902, %v2910
    %v2913 = vtanh.pop %v2912
    %2915 = vrot.lane.b32.xlu0 %v2913, 64
    %v2916 = vpop.permute.xlu0 %2915
    %v2918 = vmul.f32 %v2900, %v2916
    %v2919 = vadd.f32 %v2715, %v2894
    %v2920 = vadd.f32 %v2716, %v2918
    %v2921 = vmax.f32 %v2690, %v2894
    %v2922 = vmax.f32 %v2714, %v2918
    %v2923 = vld [vmem:[%s839] sm:$0xff]
    %2925 = vrot.lane.b32.xlu0 %v2894, 32
    %v2926 = vpop.permute.xlu0 %2925
    %v2927 = vsel %vm232, %v2926, 0
    %2929 = vmatprep.subr.mxu0 0.0
    %2930 = vmatpush1.msra.mxu0 %v2515
    %2931 = vmatprep.subr.mxu0 0.0
    %2932 = vmatpush1.msra.mxu0 %v2516
    %2933 = vmatprep.subr.mxu0 0.0
    %2934 = vmatpush1.msra.mxu0 %v2517
    %2935 = vmatprep.subr.mxu0 0.0
    %2936 = vmatpush1.msra.mxu0 %v2518
    %2937 = vmatprep.subr.mxu0 0.0
    %2938 = vmatpush1.msra.mxu0 0.0
    %2939 = vmatprep.subr.mxu0 0.0
    %2940 = vmatpush1.msra.mxu0 0.0
    %2941 = vmatprep.subr.mxu0 0.0
    %2942 = vmatpush1.msra.mxu0 0.0
    %2943 = vmatprep.subr.mxu0 0.0
    %2944 = vmatpush1.msra.mxu0 0.0
    %2945 = vmatprep.subr.mxu0 0.0
    %2946 = vmatpush1.msra.mxu0 0.0
    %2947 = vmatprep.subr.mxu0 0.0
    %2948 = vmatpush1.msra.mxu0 0.0
    %2949 = vmatprep.subr.mxu0 0.0
    %2950 = vmatpush1.msra.mxu0 0.0
    %2951 = vmatprep.subr.mxu0 0.0
    %2952 = vmatpush1.msra.mxu0 0.0
    %2953 = vmatprep.subr.mxu0 0.0
    %2954 = vmatpush1.msra.mxu0 0.0
    %2955 = vmatprep.subr.mxu0 0.0
    %2956 = vmatpush1.msra.mxu0 0.0
    %2957 = vmatprep.subr.mxu0 0.0
    %2958 = vmatpush1.msra.mxu0 0.0
    %2959 = vmatprep.subr.mxu0 0.0
    %2960 = vmatpush1.msra.mxu0 0.0
    %2961 = vmatprep.subr.mxu0 0.0
    %2962 = vmatpush1.msra.mxu0 0.0
    %2963 = vmatprep.subr.mxu0 0.0
    %2964 = vmatpush1.msra.mxu0 0.0
    %2965 = vmatprep.subr.mxu0 0.0
    %2966 = vmatpush1.msra.mxu0 0.0
    %2967 = vmatprep.subr.mxu0 0.0
    %2968 = vmatpush1.msra.mxu0 0.0
    %2969 = vmatprep.subr.mxu0 0.0
    %2970 = vmatpush1.msra.mxu0 0.0
    %2971 = vmatprep.subr.mxu0 0.0
    %2972 = vmatpush1.msra.mxu0 0.0
    %2973 = vmatprep.subr.mxu0 0.0
    %2974 = vmatpush1.msra.mxu0 0.0
    %2975 = vmatprep.subr.mxu0 0.0
    %2976 = vmatpush1.msra.mxu0 0.0
    %2977 = vmatprep.subr.mxu0 0.0
    %2978 = vmatpush1.msra.mxu0 0.0
    %2979 = vmatprep.subr.mxu0 0.0
    %2980 = vmatpush1.msra.mxu0 0.0
    %2981 = vmatprep.subr.mxu0 0.0
    %2982 = vmatpush1.msra.mxu0 0.0
    %2983 = vmatprep.subr.mxu0 0.0
    %2984 = vmatpush1.msra.mxu0 0.0
    %2985 = vmatprep.subr.mxu0 0.0
    %2986 = vmatpush1.msra.mxu0 0.0
    %2987 = vmatprep.subr.mxu0 0.0
    %2988 = vmatpush1.msra.mxu0 0.0
    %2989 = vmatprep.subr.mxu0 0.0
    %2990 = vmatpush1.msra.mxu0 0.0
    %2991 = vmatprep.subr.mxu0 0.0
    %2992 = vmatpush1.msra.mxu0 0.0
    %2993 = vmatprep.mubr.f32.mxu0 0.0
    %2994 = vmatmul.mubr.f32.gmra.mrb[0].mxu0 %v2927
    %v2995 = vpop.f32.mrb[0].mxu0
    %v2996 = vadd.f32 0.0, %v2995
    %v2997 = vpop.f32.mrb[0].mxu0
    %2998 = vdwg.mxu0
    %v2999 = vadd.f32 %v2923, %v2996
    %v3000 = vld [vmem:[%s914] sm:$0xff]
    %3002 = vrot.lane.b32.xlu0 %v2918, 32
    %v3003 = vpop.permute.xlu0 %3002
    %v3004 = vsel %vm232, %v3003, 0
    %3006 = vmatprep.subr.mxu0 0.0
    %3007 = vmatpush1.msra.mxu0 %v2519
    %3008 = vmatprep.subr.mxu0 0.0
    %3009 = vmatpush1.msra.mxu0 %v2520
    %3010 = vmatprep.subr.mxu0 0.0
    %3011 = vmatpush1.msra.mxu0 %v2521
    %3012 = vmatprep.subr.mxu0 0.0
    %3013 = vmatpush1.msra.mxu0 %v2522
    %3014 = vmatprep.subr.mxu0 0.0
    %3015 = vmatpush1.msra.mxu0 0.0
    %3016 = vmatprep.subr.mxu0 0.0
    %3017 = vmatpush1.msra.mxu0 0.0
    %3018 = vmatprep.subr.mxu0 0.0
    %3019 = vmatpush1.msra.mxu0 0.0
    %3020 = vmatprep.subr.mxu0 0.0
    %3021 = vmatpush1.msra.mxu0 0.0
    %3022 = vmatprep.subr.mxu0 0.0
    %3023 = vmatpush1.msra.mxu0 0.0
    %3024 = vmatprep.subr.mxu0 0.0
    %3025 = vmatpush1.msra.mxu0 0.0
    %3026 = vmatprep.subr.mxu0 0.0
    %3027 = vmatpush1.msra.mxu0 0.0
    %3028 = vmatprep.subr.mxu0 0.0
    %3029 = vmatpush1.msra.mxu0 0.0
    %3030 = vmatprep.subr.mxu0 0.0
    %3031 = vmatpush1.msra.mxu0 0.0
    %3032 = vmatprep.subr.mxu0 0.0
    %3033 = vmatpush1.msra.mxu0 0.0
    %3034 = vmatprep.subr.mxu0 0.0
    %3035 = vmatpush1.msra.mxu0 0.0
    %3036 = vmatprep.subr.mxu0 0.0
    %3037 = vmatpush1.msra.mxu0 0.0
    %3038 = vmatprep.subr.mxu0 0.0
    %3039 = vmatpush1.msra.mxu0 0.0
    %3040 = vmatprep.subr.mxu0 0.0
    %3041 = vmatpush1.msra.mxu0 0.0
    %3042 = vmatprep.subr.mxu0 0.0
    %3043 = vmatpush1.msra.mxu0 0.0
    %3044 = vmatprep.subr.mxu0 0.0
    %3045 = vmatpush1.msra.mxu0 0.0
    %3046 = vmatprep.subr.mxu0 0.0
    %3047 = vmatpush1.msra.mxu0 0.0
    %3048 = vmatprep.subr.mxu0 0.0
    %3049 = vmatpush1.msra.mxu0 0.0
    %3050 = vmatprep.subr.mxu0 0.0
    %3051 = vmatpush1.msra.mxu0 0.0
    %3052 = vmatprep.subr.mxu0 0.0
    %3053 = vmatpush1.msra.mxu0 0.0
    %3054 = vmatprep.subr.mxu0 0.0
    %3055 = vmatpush1.msra.mxu0 0.0
    %3056 = vmatprep.subr.mxu0 0.0
    %3057 = vmatpush1.msra.mxu0 0.0
    %3058 = vmatprep.subr.mxu0 0.0
    %3059 = vmatpush1.msra.mxu0 0.0
    %3060 = vmatprep.subr.mxu0 0.0
    %3061 = vmatpush1.msra.mxu0 0.0
    %3062 = vmatprep.subr.mxu0 0.0
    %3063 = vmatpush1.msra.mxu0 0.0
    %3064 = vmatprep.subr.mxu0 0.0
    %3065 = vmatpush1.msra.mxu0 0.0
    %3066 = vmatprep.subr.mxu0 0.0
    %3067 = vmatpush1.msra.mxu0 0.0
    %3068 = vmatprep.subr.mxu0 0.0
    %3069 = vmatpush1.msra.mxu0 0.0
    %3070 = vmatprep.mubr.f32.mxu0 0.0
    %3071 = vmatmul.mubr.f32.gmra.mrb[0].mxu0 %v3004
    %v3072 = vpop.f32.mrb[0].mxu0
    %v3073 = vadd.f32 0.0, %v3072
    %v3074 = vpop.f32.mrb[0].mxu0
    %3075 = vdwg.mxu0
    %v3076 = vadd.f32 %v3000, %v3073
    %v3077 = vxor.u32 %v2999, 2147483648
    %v3078 = vmul.f32 %v3077, 1.442695
    %v3079 = vpow.pop %v3078
    %v3080 = vadd.f32 %v3079, 1.0
    %v3081 = vrcp.pop %v3080
    %v3082 = vmul.f32 1.0, %v3081
    %v3083 = vtanh.pop %v2999
    %v3084 = vmul.f32 %v3082, %v2888
    %3086 = vrot.lane.b32.xlu0 %v3083, 64
    %v3087 = vpop.permute.xlu0 %3086
    %v3089 = vmul.f32 %v3082, %v3087
    %3091 = vrot.lane.b32.xlu0 %v3089, 32
    %v3092 = vpop.permute.xlu0 %3091
    %v3094 = vadd.f32 %v3084, %v3092
    %v3095 = vtanh.pop %v3094
    %3097 = vrot.lane.b32.xlu0 %v3095, 64
    %v3098 = vpop.permute.xlu0 %3097
    %v3100 = vmul.f32 %v3082, %v3098
    %v3101 = vxor.u32 %v3076, 2147483648
    %v3102 = vmul.f32 %v3101, 1.442695
    %v3103 = vpow.pop %v3102
    %v3104 = vadd.f32 %v3103, 1.0
    %v3105 = vrcp.pop %v3104
    %v3106 = vmul.f32 1.0, %v3105
    %v3107 = vtanh.pop %v3076
    %v3108 = vmul.f32 %v3106, %v2912
    %3110 = vrot.lane.b32.xlu0 %v3107, 64
    %v3111 = vpop.permute.xlu0 %3110
    %v3113 = vmul.f32 %v3106, %v3111
    %3115 = vrot.lane.b32.xlu0 %v3113, 32
    %v3116 = vpop.permute.xlu0 %3115
    %v3118 = vadd.f32 %v3108, %v3116
    %v3119 = vtanh.pop %v3118
    %3121 = vrot.lane.b32.xlu0 %v3119, 64
    %v3122 = vpop.permute.xlu0 %3121
    %v3124 = vmul.f32 %v3106, %v3122
    %v3125 = vadd.f32 %v2919, %v3100
    %v3126 = vadd.f32 %v2920, %v3124
    %v3127 = vmax.f32 %v2921, %v3100
    %v3128 = vmax.f32 %v2922, %v3124
    %v3129 = vld [vmem:[%s1049] sm:$0xff]
    %3131 = vrot.lane.b32.xlu0 %v3100, 32
    %v3132 = vpop.permute.xlu0 %3131
    %v3133 = vsel %vm232, %v3132, 0
    %3135 = vmatprep.subr.mxu0 0.0
    %3136 = vmatpush1.msra.mxu0 %v2515
    %3137 = vmatprep.subr.mxu0 0.0
    %3138 = vmatpush1.msra.mxu0 %v2516
    %3139 = vmatprep.subr.mxu0 0.0
    %3140 = vmatpush1.msra.mxu0 %v2517
    %3141 = vmatprep.subr.mxu0 0.0
    %3142 = vmatpush1.msra.mxu0 %v2518
    %3143 = vmatprep.subr.mxu0 0.0
    %3144 = vmatpush1.msra.mxu0 0.0
    %3145 = vmatprep.subr.mxu0 0.0
    %3146 = vmatpush1.msra.mxu0 0.0
    %3147 = vmatprep.subr.mxu0 0.0
    %3148 = vmatpush1.msra.mxu0 0.0
    %3149 = vmatprep.subr.mxu0 0.0
    %3150 = vmatpush1.msra.mxu0 0.0
    %3151 = vmatprep.subr.mxu0 0.0
    %3152 = vmatpush1.msra.mxu0 0.0
    %3153 = vmatprep.subr.mxu0 0.0
    %3154 = vmatpush1.msra.mxu0 0.0
    %3155 = vmatprep.subr.mxu0 0.0
    %3156 = vmatpush1.msra.mxu0 0.0
    %3157 = vmatprep.subr.mxu0 0.0
    %3158 = vmatpush1.msra.mxu0 0.0
    %3159 = vmatprep.subr.mxu0 0.0
    %3160 = vmatpush1.msra.mxu0 0.0
    %3161 = vmatprep.subr.mxu0 0.0
    %3162 = vmatpush1.msra.mxu0 0.0
    %3163 = vmatprep.subr.mxu0 0.0
    %3164 = vmatpush1.msra.mxu0 0.0
    %3165 = vmatprep.subr.mxu0 0.0
    %3166 = vmatpush1.msra.mxu0 0.0
    %3167 = vmatprep.subr.mxu0 0.0
    %3168 = vmatpush1.msra.mxu0 0.0
    %3169 = vmatprep.subr.mxu0 0.0
    %3170 = vmatpush1.msra.mxu0 0.0
    %3171 = vmatprep.subr.mxu0 0.0
    %3172 = vmatpush1.msra.mxu0 0.0
    %3173 = vmatprep.subr.mxu0 0.0
    %3174 = vmatpush1.msra.mxu0 0.0
    %3175 = vmatprep.subr.mxu0 0.0
    %3176 = vmatpush1.msra.mxu0 0.0
    %3177 = vmatprep.subr.mxu0 0.0
    %3178 = vmatpush1.msra.mxu0 0.0
    %3179 = vmatprep.subr.mxu0 0.0
    %3180 = vmatpush1.msra.mxu0 0.0
    %3181 = vmatprep.subr.mxu0 0.0
    %3182 = vmatpush1.msra.mxu0 0.0
    %3183 = vmatprep.subr.mxu0 0.0
    %3184 = vmatpush1.msra.mxu0 0.0
    %3185 = vmatprep.subr.mxu0 0.0
    %3186 = vmatpush1.msra.mxu0 0.0
    %3187 = vmatprep.subr.mxu0 0.0
    %3188 = vmatpush1.msra.mxu0 0.0
    %3189 = vmatprep.subr.mxu0 0.0
    %3190 = vmatpush1.msra.mxu0 0.0
    %3191 = vmatprep.subr.mxu0 0.0
    %3192 = vmatpush1.msra.mxu0 0.0
    %3193 = vmatprep.subr.mxu0 0.0
    %3194 = vmatpush1.msra.mxu0 0.0
    %3195 = vmatprep.subr.mxu0 0.0
    %3196 = vmatpush1.msra.mxu0 0.0
    %3197 = vmatprep.subr.mxu0 0.0
    %3198 = vmatpush1.msra.mxu0 0.0
    %3199 = vmatprep.mubr.f32.mxu0 0.0
    %3200 = vmatmul.mubr.f32.gmra.mrb[0].mxu0 %v3133
    %v3201 = vpop.f32.mrb[0].mxu0
    %v3202 = vadd.f32 0.0, %v3201
    %v3203 = vpop.f32.mrb[0].mxu0
    %3204 = vdwg.mxu0
    %v3205 = vadd.f32 %v3129, %v3202
    %v3206 = vld [vmem:[%s1124] sm:$0xff]
    %3208 = vrot.lane.b32.xlu0 %v3124, 32
    %v3209 = vpop.permute.xlu0 %3208
    %v3210 = vsel %vm232, %v3209, 0
    %3212 = vmatprep.subr.mxu0 0.0
    %3213 = vmatpush1.msra.mxu0 %v2519
    %3214 = vmatprep.subr.mxu0 0.0
    %3215 = vmatpush1.msra.mxu0 %v2520
    %3216 = vmatprep.subr.mxu0 0.0
    %3217 = vmatpush1.msra.mxu0 %v2521
    %3218 = vmatprep.subr.mxu0 0.0
    %3219 = vmatpush1.msra.mxu0 %v2522
    %3220 = vmatprep.subr.mxu0 0.0
    %3221 = vmatpush1.msra.mxu0 0.0
    %3222 = vmatprep.subr.mxu0 0.0
    %3223 = vmatpush1.msra.mxu0 0.0
    %3224 = vmatprep.subr.mxu0 0.0
    %3225 = vmatpush1.msra.mxu0 0.0
    %3226 = vmatprep.subr.mxu0 0.0
    %3227 = vmatpush1.msra.mxu0 0.0
    %3228 = vmatprep.subr.mxu0 0.0
    %3229 = vmatpush1.msra.mxu0 0.0
    %3230 = vmatprep.subr.mxu0 0.0
    %3231 = vmatpush1.msra.mxu0 0.0
    %3232 = vmatprep.subr.mxu0 0.0
    %3233 = vmatpush1.msra.mxu0 0.0
    %3234 = vmatprep.subr.mxu0 0.0
    %3235 = vmatpush1.msra.mxu0 0.0
    %3236 = vmatprep.subr.mxu0 0.0
    %3237 = vmatpush1.msra.mxu0 0.0
    %3238 = vmatprep.subr.mxu0 0.0
    %3239 = vmatpush1.msra.mxu0 0.0
    %3240 = vmatprep.subr.mxu0 0.0
    %3241 = vmatpush1.msra.mxu0 0.0
    %3242 = vmatprep.subr.mxu0 0.0
    %3243 = vmatpush1.msra.mxu0 0.0
    %3244 = vmatprep.subr.mxu0 0.0
    %3245 = vmatpush1.msra.mxu0 0.0
    %3246 = vmatprep.subr.mxu0 0.0
    %3247 = vmatpush1.msra.mxu0 0.0
    %3248 = vmatprep.subr.mxu0 0.0
    %3249 = vmatpush1.msra.mxu0 0.0
    %3250 = vmatprep.subr.mxu0 0.0
    %3251 = vmatpush1.msra.mxu0 0.0
    %3252 = vmatprep.subr.mxu0 0.0
    %3253 = vmatpush1.msra.mxu0 0.0
    %3254 = vmatprep.subr.mxu0 0.0
    %3255 = vmatpush1.msra.mxu0 0.0
    %3256 = vmatprep.subr.mxu0 0.0
    %3257 = vmatpush1.msra.mxu0 0.0
    %3258 = vmatprep.subr.mxu0 0.0
    %3259 = vmatpush1.msra.mxu0 0.0
    %3260 = vmatprep.subr.mxu0 0.0
    %3261 = vmatpush1.msra.mxu0 0.0
    %3262 = vmatprep.subr.mxu0 0.0
    %3263 = vmatpush1.msra.mxu0 0.0
    %3264 = vmatprep.subr.mxu0 0.0
    %3265 = vmatpush1.msra.mxu0 0.0
    %3266 = vmatprep.subr.mxu0 0.0
    %3267 = vmatpush1.msra.mxu0 0.0
    %3268 = vmatprep.subr.mxu0 0.0
    %3269 = vmatpush1.msra.mxu0 0.0
    %3270 = vmatprep.subr.mxu0 0.0
    %3271 = vmatpush1.msra.mxu0 0.0
    %3272 = vmatprep.subr.mxu0 0.0
    %3273 = vmatpush1.msra.mxu0 0.0
    %3274 = vmatprep.subr.mxu0 0.0
    %3275 = vmatpush1.msra.mxu0 0.0
    %3276 = vmatprep.mubr.f32.mxu0 0.0
    %3277 = vmatmul.mubr.f32.gmra.mrb[0].mxu0 %v3210
    %v3278 = vpop.f32.mrb[0].mxu0
    %v3279 = vadd.f32 0.0, %v3278
    %v3280 = vpop.f32.mrb[0].mxu0
    %3281 = vdwg.mxu0
    %v3282 = vadd.f32 %v3206, %v3279
    %v3283 = vxor.u32 %v3205, 2147483648
    %v3284 = vmul.f32 %v3283, 1.442695
    %v3285 = vpow.pop %v3284
    %v3286 = vadd.f32 %v3285, 1.0
    %v3287 = vrcp.pop %v3286
    %v3288 = vmul.f32 1.0, %v3287
    %v3289 = vtanh.pop %v3205
    %v3290 = vmul.f32 %v3288, %v3094
    %3292 = vrot.lane.b32.xlu0 %v3289, 64
    %v3293 = vpop.permute.xlu0 %3292
    %v3295 = vmul.f32 %v3288, %v3293
    %3297 = vrot.lane.b32.xlu0 %v3295, 32
    %v3298 = vpop.permute.xlu0 %3297
    %v3300 = vadd.f32 %v3290, %v3298
    %v3301 = vtanh.pop %v3300
    %3303 = vrot.lane.b32.xlu0 %v3301, 64
    %v3304 = vpop.permute.xlu0 %3303
    %v3306 = vmul.f32 %v3288, %v3304
    %v3307 = vxor.u32 %v3282, 2147483648
    %v3308 = vmul.f32 %v3307, 1.442695
    %v3309 = vpow.pop %v3308
    %v3310 = vadd.f32 %v3309, 1.0
    %v3311 = vrcp.pop %v3310
    %v3312 = vmul.f32 1.0, %v3311
    %v3313 = vtanh.pop %v3282
    %v3314 = vmul.f32 %v3312, %v3118
    %3316 = vrot.lane.b32.xlu0 %v3313, 64
    %v3317 = vpop.permute.xlu0 %3316
    %v3319 = vmul.f32 %v3312, %v3317
    %3321 = vrot.lane.b32.xlu0 %v3319, 32
    %v3322 = vpop.permute.xlu0 %3321
    %v3324 = vadd.f32 %v3314, %v3322
    %v3325 = vtanh.pop %v3324
    %3327 = vrot.lane.b32.xlu0 %v3325, 64
    %v3328 = vpop.permute.xlu0 %3327
    %v3330 = vmul.f32 %v3312, %v3328
    %v3331 = vadd.f32 %v3125, %v3306
    %v3332 = vadd.f32 %v3126, %v3330
    %v3333 = vmax.f32 %v3127, %v3306
    %v3334 = vmax.f32 %v3128, %v3330
    %v3335 = vld [vmem:[%s1259] sm:$0xff]
    %3337 = vrot.lane.b32.xlu0 %v3306, 32
    %v3338 = vpop.permute.xlu0 %3337
    %v3339 = vsel %vm232, %v3338, 0
    %3341 = vmatprep.subr.mxu0 0.0
    %3342 = vmatpush1.msra.mxu0 %v2515
    %3343 = vmatprep.subr.mxu0 0.0
    %3344 = vmatpush1.msra.mxu0 %v2516
    %3345 = vmatprep.subr.mxu0 0.0
    %3346 = vmatpush1.msra.mxu0 %v2517
    %3347 = vmatprep.subr.mxu0 0.0
    %3348 = vmatpush1.msra.mxu0 %v2518
    %3349 = vmatprep.subr.mxu0 0.0
    %3350 = vmatpush1.msra.mxu0 0.0
    %3351 = vmatprep.subr.mxu0 0.0
    %3352 = vmatpush1.msra.mxu0 0.0
    %3353 = vmatprep.subr.mxu0 0.0
    %3354 = vmatpush1.msra.mxu0 0.0
    %3355 = vmatprep.subr.mxu0 0.0
    %3356 = vmatpush1.msra.mxu0 0.0
    %3357 = vmatprep.subr.mxu0 0.0
    %3358 = vmatpush1.msra.mxu0 0.0
    %3359 = vmatprep.subr.mxu0 0.0
    %3360 = vmatpush1.msra.mxu0 0.0
    %3361 = vmatprep.subr.mxu0 0.0
    %3362 = vmatpush1.msra.mxu0 0.0
    %3363 = vmatprep.subr.mxu0 0.0
    %3364 = vmatpush1.msra.mxu0 0.0
    %3365 = vmatprep.subr.mxu0 0.0
    %3366 = vmatpush1.msra.mxu0 0.0
    %3367 = vmatprep.subr.mxu0 0.0
    %3368 = vmatpush1.msra.mxu0 0.0
    %3369 = vmatprep.subr.mxu0 0.0
    %3370 = vmatpush1.msra.mxu0 0.0
    %3371 = vmatprep.subr.mxu0 0.0
    %3372 = vmatpush1.msra.mxu0 0.0
    %3373 = vmatprep.subr.mxu0 0.0
    %3374 = vmatpush1.msra.mxu0 0.0
    %3375 = vmatprep.subr.mxu0 0.0
    %3376 = vmatpush1.msra.mxu0 0.0
    %3377 = vmatprep.subr.mxu0 0.0
    %3378 = vmatpush1.msra.mxu0 0.0
    %3379 = vmatprep.subr.mxu0 0.0
    %3380 = vmatpush1.msra.mxu0 0.0
    %3381 = vmatprep.subr.mxu0 0.0
    %3382 = vmatpush1.msra.mxu0 0.0
    %3383 = vmatprep.subr.mxu0 0.0
    %3384 = vmatpush1.msra.mxu0 0.0
    %3385 = vmatprep.subr.mxu0 0.0
    %3386 = vmatpush1.msra.mxu0 0.0
    %3387 = vmatprep.subr.mxu0 0.0
    %3388 = vmatpush1.msra.mxu0 0.0
    %3389 = vmatprep.subr.mxu0 0.0
    %3390 = vmatpush1.msra.mxu0 0.0
    %3391 = vmatprep.subr.mxu0 0.0
    %3392 = vmatpush1.msra.mxu0 0.0
    %3393 = vmatprep.subr.mxu0 0.0
    %3394 = vmatpush1.msra.mxu0 0.0
    %3395 = vmatprep.subr.mxu0 0.0
    %3396 = vmatpush1.msra.mxu0 0.0
    %3397 = vmatprep.subr.mxu0 0.0
    %3398 = vmatpush1.msra.mxu0 0.0
    %3399 = vmatprep.subr.mxu0 0.0
    %3400 = vmatpush1.msra.mxu0 0.0
    %3401 = vmatprep.subr.mxu0 0.0
    %3402 = vmatpush1.msra.mxu0 0.0
    %3403 = vmatprep.subr.mxu0 0.0
    %3404 = vmatpush1.msra.mxu0 0.0
    %3405 = vmatprep.mubr.f32.mxu0 0.0
    %3406 = vmatmul.mubr.f32.gmra.mrb[0].mxu0 %v3339
    %v3407 = vpop.f32.mrb[0].mxu0
    %v3408 = vadd.f32 0.0, %v3407
    %v3409 = vpop.f32.mrb[0].mxu0
    %3410 = vdwg.mxu0
    %v3411 = vadd.f32 %v3335, %v3408
    %v3412 = vld [vmem:[%s1334] sm:$0xff]
    %3414 = vrot.lane.b32.xlu0 %v3330, 32
    %v3415 = vpop.permute.xlu0 %3414
    %v3416 = vsel %vm232, %v3415, 0
    %3418 = vmatprep.subr.mxu0 0.0
    %3419 = vmatpush1.msra.mxu0 %v2519
    %3420 = vmatprep.subr.mxu0 0.0
    %3421 = vmatpush1.msra.mxu0 %v2520
    %3422 = vmatprep.subr.mxu0 0.0
    %3423 = vmatpush1.msra.mxu0 %v2521
    %3424 = vmatprep.subr.mxu0 0.0
    %3425 = vmatpush1.msra.mxu0 %v2522
    %3426 = vmatprep.subr.mxu0 0.0
    %3427 = vmatpush1.msra.mxu0 0.0
    %3428 = vmatprep.subr.mxu0 0.0
    %3429 = vmatpush1.msra.mxu0 0.0
    %3430 = vmatprep.subr.mxu0 0.0
    %3431 = vmatpush1.msra.mxu0 0.0
    %3432 = vmatprep.subr.mxu0 0.0
    %3433 = vmatpush1.msra.mxu0 0.0
    %3434 = vmatprep.subr.mxu0 0.0
    %3435 = vmatpush1.msra.mxu0 0.0
    %3436 = vmatprep.subr.mxu0 0.0
    %3437 = vmatpush1.msra.mxu0 0.0
    %3438 = vmatprep.subr.mxu0 0.0
    %3439 = vmatpush1.msra.mxu0 0.0
    %3440 = vmatprep.subr.mxu0 0.0
    %3441 = vmatpush1.msra.mxu0 0.0
    %3442 = vmatprep.subr.mxu0 0.0
    %3443 = vmatpush1.msra.mxu0 0.0
    %3444 = vmatprep.subr.mxu0 0.0
    %3445 = vmatpush1.msra.mxu0 0.0
    %3446 = vmatprep.subr.mxu0 0.0
    %3447 = vmatpush1.msra.mxu0 0.0
    %3448 = vmatprep.subr.mxu0 0.0
    %3449 = vmatpush1.msra.mxu0 0.0
    %3450 = vmatprep.subr.mxu0 0.0
    %3451 = vmatpush1.msra.mxu0 0.0
    %3452 = vmatprep.subr.mxu0 0.0
    %3453 = vmatpush1.msra.mxu0 0.0
    %3454 = vmatprep.subr.mxu0 0.0
    %3455 = vmatpush1.msra.mxu0 0.0
    %3456 = vmatprep.subr.mxu0 0.0
    %3457 = vmatpush1.msra.mxu0 0.0
    %3458 = vmatprep.subr.mxu0 0.0
    %3459 = vmatpush1.msra.mxu0 0.0
    %3460 = vmatprep.subr.mxu0 0.0
    %3461 = vmatpush1.msra.mxu0 0.0
    %3462 = vmatprep.subr.mxu0 0.0
    %3463 = vmatpush1.msra.mxu0 0.0
    %3464 = vmatprep.subr.mxu0 0.0
    %3465 = vmatpush1.msra.mxu0 0.0
    %3466 = vmatprep.subr.mxu0 0.0
    %3467 = vmatpush1.msra.mxu0 0.0
    %3468 = vmatprep.subr.mxu0 0.0
    %3469 = vmatpush1.msra.mxu0 0.0
    %3470 = vmatprep.subr.mxu0 0.0
    %3471 = vmatpush1.msra.mxu0 0.0
    %3472 = vmatprep.subr.mxu0 0.0
    %3473 = vmatpush1.msra.mxu0 0.0
    %3474 = vmatprep.subr.mxu0 0.0
    %3475 = vmatpush1.msra.mxu0 0.0
    %3476 = vmatprep.subr.mxu0 0.0
    %3477 = vmatpush1.msra.mxu0 0.0
    %3478 = vmatprep.subr.mxu0 0.0
    %3479 = vmatpush1.msra.mxu0 0.0
    %3480 = vmatprep.subr.mxu0 0.0
    %3481 = vmatpush1.msra.mxu0 0.0
    %3482 = vmatprep.mubr.f32.mxu0 0.0
    %3483 = vmatmul.mubr.f32.gmra.mrb[0].mxu0 %v3416
    %v3484 = vpop.f32.mrb[0].mxu0
    %v3485 = vadd.f32 0.0, %v3484
    %v3486 = vpop.f32.mrb[0].mxu0
    %3487 = vdwg.mxu0
    %v3488 = vadd.f32 %v3412, %v3485
    %v3489 = vxor.u32 %v3411, 2147483648
    %v3490 = vmul.f32 %v3489, 1.442695
    %v3491 = vpow.pop %v3490
    %v3492 = vadd.f32 %v3491, 1.0
    %v3493 = vrcp.pop %v3492
    %v3494 = vmul.f32 1.0, %v3493
    %v3495 = vtanh.pop %v3411
    %v3496 = vmul.f32 %v3494, %v3300
    %3498 = vrot.lane.b32.xlu0 %v3495, 64
    %v3499 = vpop.permute.xlu0 %3498
    %v3501 = vmul.f32 %v3494, %v3499
    %3503 = vrot.lane.b32.xlu0 %v3501, 32
    %v3504 = vpop.permute.xlu0 %3503
    %v3506 = vadd.f32 %v3496, %v3504
    %v3507 = vtanh.pop %v3506
    %3509 = vrot.lane.b32.xlu0 %v3507, 64
    %v3510 = vpop.permute.xlu0 %3509
    %v3512 = vmul.f32 %v3494, %v3510
    %v3513 = vxor.u32 %v3488, 2147483648
    %v3514 = vmul.f32 %v3513, 1.442695
    %v3515 = vpow.pop %v3514
    %v3516 = vadd.f32 %v3515, 1.0
    %v3517 = vrcp.pop %v3516
    %v3518 = vmul.f32 1.0, %v3517
    %v3519 = vtanh.pop %v3488
    %v3520 = vmul.f32 %v3518, %v3324
    %3522 = vrot.lane.b32.xlu0 %v3519, 64
    %v3523 = vpop.permute.xlu0 %3522
    %v3525 = vmul.f32 %v3518, %v3523
    %3527 = vrot.lane.b32.xlu0 %v3525, 32
    %v3528 = vpop.permute.xlu0 %3527
    %v3530 = vadd.f32 %v3520, %v3528
    %v3531 = vtanh.pop %v3530
    %3533 = vrot.lane.b32.xlu0 %v3531, 64
    %v3534 = vpop.permute.xlu0 %3533
    %v3536 = vmul.f32 %v3518, %v3534
    %v3537 = vadd.f32 %v3331, %v3512
    %v3538 = vadd.f32 %v3332, %v3536
    %v3539 = vmax.f32 %v3333, %v3512
    %v3540 = vmax.f32 %v3334, %v3536
    %v3541 = vld [vmem:[%s1469] sm:$0xff]
    %3543 = vrot.lane.b32.xlu0 %v3512, 32
    %v3544 = vpop.permute.xlu0 %3543
    %v3545 = vsel %vm232, %v3544, 0
    %3547 = vmatprep.subr.mxu0 0.0
    %3548 = vmatpush1.msra.mxu0 %v2515
    %3549 = vmatprep.subr.mxu0 0.0
    %3550 = vmatpush1.msra.mxu0 %v2516
    %3551 = vmatprep.subr.mxu0 0.0
    %3552 = vmatpush1.msra.mxu0 %v2517
    %3553 = vmatprep.subr.mxu0 0.0
    %3554 = vmatpush1.msra.mxu0 %v2518
    %3555 = vmatprep.subr.mxu0 0.0
    %3556 = vmatpush1.msra.mxu0 0.0
    %3557 = vmatprep.subr.mxu0 0.0
    %3558 = vmatpush1.msra.mxu0 0.0
    %3559 = vmatprep.subr.mxu0 0.0
    %3560 = vmatpush1.msra.mxu0 0.0
    %3561 = vmatprep.subr.mxu0 0.0
    %3562 = vmatpush1.msra.mxu0 0.0
    %3563 = vmatprep.subr.mxu0 0.0
    %3564 = vmatpush1.msra.mxu0 0.0
    %3565 = vmatprep.subr.mxu0 0.0
    %3566 = vmatpush1.msra.mxu0 0.0
    %3567 = vmatprep.subr.mxu0 0.0
    %3568 = vmatpush1.msra.mxu0 0.0
    %3569 = vmatprep.subr.mxu0 0.0
    %3570 = vmatpush1.msra.mxu0 0.0
    %3571 = vmatprep.subr.mxu0 0.0
    %3572 = vmatpush1.msra.mxu0 0.0
    %3573 = vmatprep.subr.mxu0 0.0
    %3574 = vmatpush1.msra.mxu0 0.0
    %3575 = vmatprep.subr.mxu0 0.0
    %3576 = vmatpush1.msra.mxu0 0.0
    %3577 = vmatprep.subr.mxu0 0.0
    %3578 = vmatpush1.msra.mxu0 0.0
    %3579 = vmatprep.subr.mxu0 0.0
    %3580 = vmatpush1.msra.mxu0 0.0
    %3581 = vmatprep.subr.mxu0 0.0
    %3582 = vmatpush1.msra.mxu0 0.0
    %3583 = vmatprep.subr.mxu0 0.0
    %3584 = vmatpush1.msra.mxu0 0.0
    %3585 = vmatprep.subr.mxu0 0.0
    %3586 = vmatpush1.msra.mxu0 0.0
    %3587 = vmatprep.subr.mxu0 0.0
    %3588 = vmatpush1.msra.mxu0 0.0
    %3589 = vmatprep.subr.mxu0 0.0
    %3590 = vmatpush1.msra.mxu0 0.0
    %3591 = vmatprep.subr.mxu0 0.0
    %3592 = vmatpush1.msra.mxu0 0.0
    %3593 = vmatprep.subr.mxu0 0.0
    %3594 = vmatpush1.msra.mxu0 0.0
    %3595 = vmatprep.subr.mxu0 0.0
    %3596 = vmatpush1.msra.mxu0 0.0
    %3597 = vmatprep.subr.mxu0 0.0
    %3598 = vmatpush1.msra.mxu0 0.0
    %3599 = vmatprep.subr.mxu0 0.0
    %3600 = vmatpush1.msra.mxu0 0.0
    %3601 = vmatprep.subr.mxu0 0.0
    %3602 = vmatpush1.msra.mxu0 0.0
    %3603 = vmatprep.subr.mxu0 0.0
    %3604 = vmatpush1.msra.mxu0 0.0
    %3605 = vmatprep.subr.mxu0 0.0
    %3606 = vmatpush1.msra.mxu0 0.0
    %3607 = vmatprep.subr.mxu0 0.0
    %3608 = vmatpush1.msra.mxu0 0.0
    %3609 = vmatprep.subr.mxu0 0.0
    %3610 = vmatpush1.msra.mxu0 0.0
    %3611 = vmatprep.mubr.f32.mxu0 0.0
    %3612 = vmatmul.mubr.f32.gmra.mrb[0].mxu0 %v3545
    %v3613 = vpop.f32.mrb[0].mxu0
    %v3614 = vadd.f32 0.0, %v3613
    %v3615 = vpop.f32.mrb[0].mxu0
    %3616 = vdwg.mxu0
    %v3617 = vadd.f32 %v3541, %v3614
    %v3618 = vld [vmem:[%s1544] sm:$0xff]
    %3620 = vrot.lane.b32.xlu0 %v3536, 32
    %v3621 = vpop.permute.xlu0 %3620
    %v3622 = vsel %vm232, %v3621, 0
    %3624 = vmatprep.subr.mxu0 0.0
    %3625 = vmatpush1.msra.mxu0 %v2519
    %3626 = vmatprep.subr.mxu0 0.0
    %3627 = vmatpush1.msra.mxu0 %v2520
    %3628 = vmatprep.subr.mxu0 0.0
    %3629 = vmatpush1.msra.mxu0 %v2521
    %3630 = vmatprep.subr.mxu0 0.0
    %3631 = vmatpush1.msra.mxu0 %v2522
    %3632 = vmatprep.subr.mxu0 0.0
    %3633 = vmatpush1.msra.mxu0 0.0
    %3634 = vmatprep.subr.mxu0 0.0
    %3635 = vmatpush1.msra.mxu0 0.0
    %3636 = vmatprep.subr.mxu0 0.0
    %3637 = vmatpush1.msra.mxu0 0.0
    %3638 = vmatprep.subr.mxu0 0.0
    %3639 = vmatpush1.msra.mxu0 0.0
    %3640 = vmatprep.subr.mxu0 0.0
    %3641 = vmatpush1.msra.mxu0 0.0
    %3642 = vmatprep.subr.mxu0 0.0
    %3643 = vmatpush1.msra.mxu0 0.0
    %3644 = vmatprep.subr.mxu0 0.0
    %3645 = vmatpush1.msra.mxu0 0.0
    %3646 = vmatprep.subr.mxu0 0.0
    %3647 = vmatpush1.msra.mxu0 0.0
    %3648 = vmatprep.subr.mxu0 0.0
    %3649 = vmatpush1.msra.mxu0 0.0
    %3650 = vmatprep.subr.mxu0 0.0
    %3651 = vmatpush1.msra.mxu0 0.0
    %3652 = vmatprep.subr.mxu0 0.0
    %3653 = vmatpush1.msra.mxu0 0.0
    %3654 = vmatprep.subr.mxu0 0.0
    %3655 = vmatpush1.msra.mxu0 0.0
    %3656 = vmatprep.subr.mxu0 0.0
    %3657 = vmatpush1.msra.mxu0 0.0
    %3658 = vmatprep.subr.mxu0 0.0
    %3659 = vmatpush1.msra.mxu0 0.0
    %3660 = vmatprep.subr.mxu0 0.0
    %3661 = vmatpush1.msra.mxu0 0.0
    %3662 = vmatprep.subr.mxu0 0.0
    %3663 = vmatpush1.msra.mxu0 0.0
    %3664 = vmatprep.subr.mxu0 0.0
    %3665 = vmatpush1.msra.mxu0 0.0
    %3666 = vmatprep.subr.mxu0 0.0
    %3667 = vmatpush1.msra.mxu0 0.0
    %3668 = vmatprep.subr.mxu0 0.0
    %3669 = vmatpush1.msra.mxu0 0.0
    %3670 = vmatprep.subr.mxu0 0.0
    %3671 = vmatpush1.msra.mxu0 0.0
    %3672 = vmatprep.subr.mxu0 0.0
    %3673 = vmatpush1.msra.mxu0 0.0
    %3674 = vmatprep.subr.mxu0 0.0
    %3675 = vmatpush1.msra.mxu0 0.0
    %3676 = vmatprep.subr.mxu0 0.0
    %3677 = vmatpush1.msra.mxu0 0.0
    %3678 = vmatprep.subr.mxu0 0.0
    %3679 = vmatpush1.msra.mxu0 0.0
    %3680 = vmatprep.subr.mxu0 0.0
    %3681 = vmatpush1.msra.mxu0 0.0
    %3682 = vmatprep.subr.mxu0 0.0
    %3683 = vmatpush1.msra.mxu0 0.0
    %3684 = vmatprep.subr.mxu0 0.0
    %3685 = vmatpush1.msra.mxu0 0.0
    %3686 = vmatprep.subr.mxu0 0.0
    %3687 = vmatpush1.msra.mxu0 0.0
    %3688 = vmatprep.mubr.f32.mxu0 0.0
    %3689 = vmatmul.mubr.f32.gmra.mrb[0].mxu0 %v3622
    %v3690 = vpop.f32.mrb[0].mxu0
    %v3691 = vadd.f32 0.0, %v3690
    %v3692 = vpop.f32.mrb[0].mxu0
    %3693 = vdwg.mxu0
    %v3694 = vadd.f32 %v3618, %v3691
    %v3695 = vxor.u32 %v3617, 2147483648
    %v3696 = vmul.f32 %v3695, 1.442695
    %v3697 = vpow.pop %v3696
    %v3698 = vadd.f32 %v3697, 1.0
    %v3699 = vrcp.pop %v3698
    %v3700 = vmul.f32 1.0, %v3699
    %v3701 = vtanh.pop %v3617
    %v3702 = vmul.f32 %v3700, %v3506
    %3704 = vrot.lane.b32.xlu0 %v3701, 64
    %v3705 = vpop.permute.xlu0 %3704
    %v3707 = vmul.f32 %v3700, %v3705
    %3709 = vrot.lane.b32.xlu0 %v3707, 32
    %v3710 = vpop.permute.xlu0 %3709
    %v3712 = vadd.f32 %v3702, %v3710
    %v3713 = vtanh.pop %v3712
    %3715 = vrot.lane.b32.xlu0 %v3713, 64
    %v3716 = vpop.permute.xlu0 %3715
    %v3718 = vmul.f32 %v3700, %v3716
    %v3719 = vxor.u32 %v3694, 2147483648
    %v3720 = vmul.f32 %v3719, 1.442695
    %v3721 = vpow.pop %v3720
    %v3722 = vadd.f32 %v3721, 1.0
    %v3723 = vrcp.pop %v3722
    %v3724 = vmul.f32 1.0, %v3723
    %v3725 = vtanh.pop %v3694
    %v3726 = vmul.f32 %v3724, %v3530
    %3728 = vrot.lane.b32.xlu0 %v3725, 64
    %v3729 = vpop.permute.xlu0 %3728
    %v3731 = vmul.f32 %v3724, %v3729
    %3733 = vrot.lane.b32.xlu0 %v3731, 32
    %v3734 = vpop.permute.xlu0 %3733
    %v3736 = vadd.f32 %v3726, %v3734
    %v3737 = vtanh.pop %v3736
    %3739 = vrot.lane.b32.xlu0 %v3737, 64
    %v3740 = vpop.permute.xlu0 %3739
    %v3742 = vmul.f32 %v3724, %v3740
    %v3743 = vadd.f32 %v3537, %v3718
    %v3744 = vadd.f32 %v3538, %v3742
    %v3745 = vmax.f32 %v3539, %v3718
    %v3746 = vmax.f32 %v3540, %v3742
    %v3747 = vld [vmem:[%s1679] sm:$0xff]
    %3749 = vrot.lane.b32.xlu0 %v3718, 32
    %v3750 = vpop.permute.xlu0 %3749
    %v3751 = vsel %vm232, %v3750, 0
    %3753 = vmatprep.subr.mxu0 0.0
    %3754 = vmatpush1.msra.mxu0 %v2515
    %3755 = vmatprep.subr.mxu0 0.0
    %3756 = vmatpush1.msra.mxu0 %v2516
    %3757 = vmatprep.subr.mxu0 0.0
    %3758 = vmatpush1.msra.mxu0 %v2517
    %3759 = vmatprep.subr.mxu0 0.0
    %3760 = vmatpush1.msra.mxu0 %v2518
    %3761 = vmatprep.subr.mxu0 0.0
    %3762 = vmatpush1.msra.mxu0 0.0
    %3763 = vmatprep.subr.mxu0 0.0
    %3764 = vmatpush1.msra.mxu0 0.0
    %3765 = vmatprep.subr.mxu0 0.0
    %3766 = vmatpush1.msra.mxu0 0.0
    %3767 = vmatprep.subr.mxu0 0.0
    %3768 = vmatpush1.msra.mxu0 0.0
    %3769 = vmatprep.subr.mxu0 0.0
    %3770 = vmatpush1.msra.mxu0 0.0
    %3771 = vmatprep.subr.mxu0 0.0
    %3772 = vmatpush1.msra.mxu0 0.0
    %3773 = vmatprep.subr.mxu0 0.0
    %3774 = vmatpush1.msra.mxu0 0.0
    %3775 = vmatprep.subr.mxu0 0.0
    %3776 = vmatpush1.msra.mxu0 0.0
    %3777 = vmatprep.subr.mxu0 0.0
    %3778 = vmatpush1.msra.mxu0 0.0
    %3779 = vmatprep.subr.mxu0 0.0
    %3780 = vmatpush1.msra.mxu0 0.0
    %3781 = vmatprep.subr.mxu0 0.0
    %3782 = vmatpush1.msra.mxu0 0.0
    %3783 = vmatprep.subr.mxu0 0.0
    %3784 = vmatpush1.msra.mxu0 0.0
    %3785 = vmatprep.subr.mxu0 0.0
    %3786 = vmatpush1.msra.mxu0 0.0
    %3787 = vmatprep.subr.mxu0 0.0
    %3788 = vmatpush1.msra.mxu0 0.0
    %3789 = vmatprep.subr.mxu0 0.0
    %3790 = vmatpush1.msra.mxu0 0.0
    %3791 = vmatprep.subr.mxu0 0.0
    %3792 = vmatpush1.msra.mxu0 0.0
    %3793 = vmatprep.subr.mxu0 0.0
    %3794 = vmatpush1.msra.mxu0 0.0
    %3795 = vmatprep.subr.mxu0 0.0
    %3796 = vmatpush1.msra.mxu0 0.0
    %3797 = vmatprep.subr.mxu0 0.0
    %3798 = vmatpush1.msra.mxu0 0.0
    %3799 = vmatprep.subr.mxu0 0.0
    %3800 = vmatpush1.msra.mxu0 0.0
    %3801 = vmatprep.subr.mxu0 0.0
    %3802 = vmatpush1.msra.mxu0 0.0
    %3803 = vmatprep.subr.mxu0 0.0
    %3804 = vmatpush1.msra.mxu0 0.0
    %3805 = vmatprep.subr.mxu0 0.0
    %3806 = vmatpush1.msra.mxu0 0.0
    %3807 = vmatprep.subr.mxu0 0.0
    %3808 = vmatpush1.msra.mxu0 0.0
    %3809 = vmatprep.subr.mxu0 0.0
    %3810 = vmatpush1.msra.mxu0 0.0
    %3811 = vmatprep.subr.mxu0 0.0
    %3812 = vmatpush1.msra.mxu0 0.0
    %3813 = vmatprep.subr.mxu0 0.0
    %3814 = vmatpush1.msra.mxu0 0.0
    %3815 = vmatprep.subr.mxu0 0.0
    %3816 = vmatpush1.msra.mxu0 0.0
    %3817 = vmatprep.mubr.f32.mxu0 0.0
    %3818 = vmatmul.mubr.f32.gmra.mrb[0].mxu0 %v3751
    %v3819 = vpop.f32.mrb[0].mxu0
    %v3820 = vadd.f32 0.0, %v3819
    %v3821 = vpop.f32.mrb[0].mxu0
    %3822 = vdwg.mxu0
    %v3823 = vadd.f32 %v3747, %v3820
    %v3824 = vld [vmem:[%s1754] sm:$0xff]
    %3826 = vrot.lane.b32.xlu0 %v3742, 32
    %v3827 = vpop.permute.xlu0 %3826
    %v3828 = vsel %vm232, %v3827, 0
    %3830 = vmatprep.subr.mxu0 0.0
    %3831 = vmatpush1.msra.mxu0 %v2519
    %3832 = vmatprep.subr.mxu0 0.0
    %3833 = vmatpush1.msra.mxu0 %v2520
    %3834 = vmatprep.subr.mxu0 0.0
    %3835 = vmatpush1.msra.mxu0 %v2521
    %3836 = vmatprep.subr.mxu0 0.0
    %3837 = vmatpush1.msra.mxu0 %v2522
    %3838 = vmatprep.subr.mxu0 0.0
    %3839 = vmatpush1.msra.mxu0 0.0
    %3840 = vmatprep.subr.mxu0 0.0
    %3841 = vmatpush1.msra.mxu0 0.0
    %3842 = vmatprep.subr.mxu0 0.0
    %3843 = vmatpush1.msra.mxu0 0.0
    %3844 = vmatprep.subr.mxu0 0.0
    %3845 = vmatpush1.msra.mxu0 0.0
    %3846 = vmatprep.subr.mxu0 0.0
    %3847 = vmatpush1.msra.mxu0 0.0
    %3848 = vmatprep.subr.mxu0 0.0
    %3849 = vmatpush1.msra.mxu0 0.0
    %3850 = vmatprep.subr.mxu0 0.0
    %3851 = vmatpush1.msra.mxu0 0.0
    %3852 = vmatprep.subr.mxu0 0.0
    %3853 = vmatpush1.msra.mxu0 0.0
    %3854 = vmatprep.subr.mxu0 0.0
    %3855 = vmatpush1.msra.mxu0 0.0
    %3856 = vmatprep.subr.mxu0 0.0
    %3857 = vmatpush1.msra.mxu0 0.0
    %3858 = vmatprep.subr.mxu0 0.0
    %3859 = vmatpush1.msra.mxu0 0.0
    %3860 = vmatprep.subr.mxu0 0.0
    %3861 = vmatpush1.msra.mxu0 0.0
    %3862 = vmatprep.subr.mxu0 0.0
    %3863 = vmatpush1.msra.mxu0 0.0
    %3864 = vmatprep.subr.mxu0 0.0
    %3865 = vmatpush1.msra.mxu0 0.0
    %3866 = vmatprep.subr.mxu0 0.0
    %3867 = vmatpush1.msra.mxu0 0.0
    %3868 = vmatprep.subr.mxu0 0.0
    %3869 = vmatpush1.msra.mxu0 0.0
    %3870 = vmatprep.subr.mxu0 0.0
    %3871 = vmatpush1.msra.mxu0 0.0
    %3872 = vmatprep.subr.mxu0 0.0
    %3873 = vmatpush1.msra.mxu0 0.0
    %3874 = vmatprep.subr.mxu0 0.0
    %3875 = vmatpush1.msra.mxu0 0.0
    %3876 = vmatprep.subr.mxu0 0.0
    %3877 = vmatpush1.msra.mxu0 0.0
    %3878 = vmatprep.subr.mxu0 0.0
    %3879 = vmatpush1.msra.mxu0 0.0
    %3880 = vmatprep.subr.mxu0 0.0
    %3881 = vmatpush1.msra.mxu0 0.0
    %3882 = vmatprep.subr.mxu0 0.0
    %3883 = vmatpush1.msra.mxu0 0.0
    %3884 = vmatprep.subr.mxu0 0.0
    %3885 = vmatpush1.msra.mxu0 0.0
    %3886 = vmatprep.subr.mxu0 0.0
    %3887 = vmatpush1.msra.mxu0 0.0
    %3888 = vmatprep.subr.mxu0 0.0
    %3889 = vmatpush1.msra.mxu0 0.0
    %3890 = vmatprep.subr.mxu0 0.0
    %3891 = vmatpush1.msra.mxu0 0.0
    %3892 = vmatprep.subr.mxu0 0.0
    %3893 = vmatpush1.msra.mxu0 0.0
    %3894 = vmatprep.mubr.f32.mxu0 0.0
    %3895 = vmatmul.mubr.f32.gmra.mrb[0].mxu0 %v3828
    %v3896 = vpop.f32.mrb[0].mxu0
    %v3897 = vadd.f32 0.0, %v3896
    %v3898 = vpop.f32.mrb[0].mxu0
    %3899 = vdwg.mxu0
    %v3900 = vadd.f32 %v3824, %v3897
    %v3901 = vxor.u32 %v3823, 2147483648
    %v3902 = vmul.f32 %v3901, 1.442695
    %v3903 = vpow.pop %v3902
    %v3904 = vadd.f32 %v3903, 1.0
    %v3905 = vrcp.pop %v3904
    %v3906 = vmul.f32 1.0, %v3905
    %v3907 = vtanh.pop %v3823
    %v3908 = vmul.f32 %v3906, %v3712
    %3910 = vrot.lane.b32.xlu0 %v3907, 64
    %v3911 = vpop.permute.xlu0 %3910
    %v3913 = vmul.f32 %v3906, %v3911
    %3915 = vrot.lane.b32.xlu0 %v3913, 32
    %v3916 = vpop.permute.xlu0 %3915
    %v3918 = vadd.f32 %v3908, %v3916
    %v3919 = vtanh.pop %v3918
    %3921 = vrot.lane.b32.xlu0 %v3919, 64
    %v3922 = vpop.permute.xlu0 %3921
    %v3924 = vmul.f32 %v3906, %v3922
    %v3925 = vxor.u32 %v3900, 2147483648
    %v3926 = vmul.f32 %v3925, 1.442695
    %v3927 = vpow.pop %v3926
    %v3928 = vadd.f32 %v3927, 1.0
    %v3929 = vrcp.pop %v3928
    %v3930 = vmul.f32 1.0, %v3929
    %v3931 = vtanh.pop %v3900
    %v3932 = vmul.f32 %v3930, %v3736
    %3934 = vrot.lane.b32.xlu0 %v3931, 64
    %v3935 = vpop.permute.xlu0 %3934
    %v3937 = vmul.f32 %v3930, %v3935
    %3939 = vrot.lane.b32.xlu0 %v3937, 32
    %v3940 = vpop.permute.xlu0 %3939
    %v3942 = vadd.f32 %v3932, %v3940
    %v3943 = vtanh.pop %v3942
    %3945 = vrot.lane.b32.xlu0 %v3943, 64
    %v3946 = vpop.permute.xlu0 %3945
    %v3948 = vmul.f32 %v3930, %v3946
    %v3949 = vadd.f32 %v3743, %v3924
    %v3950 = vadd.f32 %v3744, %v3948
    %v3951 = vmax.f32 %v3745, %v3924
    %v3952 = vmax.f32 %v3746, %v3948
    %v3953 = vld [vmem:[%s1889] sm:$0xff]
    %3955 = vrot.lane.b32.xlu0 %v3924, 32
    %v3956 = vpop.permute.xlu0 %3955
    %v3957 = vsel %vm232, %v3956, 0
    %3959 = vmatprep.subr.mxu0 0.0
    %3960 = vmatpush1.msra.mxu0 %v2515
    %3961 = vmatprep.subr.mxu0 0.0
    %3962 = vmatpush1.msra.mxu0 %v2516
    %3963 = vmatprep.subr.mxu0 0.0
    %3964 = vmatpush1.msra.mxu0 %v2517
    %3965 = vmatprep.subr.mxu0 0.0
    %3966 = vmatpush1.msra.mxu0 %v2518
    %3967 = vmatprep.subr.mxu0 0.0
    %3968 = vmatpush1.msra.mxu0 0.0
    %3969 = vmatprep.subr.mxu0 0.0
    %3970 = vmatpush1.msra.mxu0 0.0
    %3971 = vmatprep.subr.mxu0 0.0
    %3972 = vmatpush1.msra.mxu0 0.0
    %3973 = vmatprep.subr.mxu0 0.0
    %3974 = vmatpush1.msra.mxu0 0.0
    %3975 = vmatprep.subr.mxu0 0.0
    %3976 = vmatpush1.msra.mxu0 0.0
    %3977 = vmatprep.subr.mxu0 0.0
    %3978 = vmatpush1.msra.mxu0 0.0
    %3979 = vmatprep.subr.mxu0 0.0
    %3980 = vmatpush1.msra.mxu0 0.0
    %3981 = vmatprep.subr.mxu0 0.0
    %3982 = vmatpush1.msra.mxu0 0.0
    %3983 = vmatprep.subr.mxu0 0.0
    %3984 = vmatpush1.msra.mxu0 0.0
    %3985 = vmatprep.subr.mxu0 0.0
    %3986 = vmatpush1.msra.mxu0 0.0
    %3987 = vmatprep.subr.mxu0 0.0
    %3988 = vmatpush1.msra.mxu0 0.0
    %3989 = vmatprep.subr.mxu0 0.0
    %3990 = vmatpush1.msra.mxu0 0.0
    %3991 = vmatprep.subr.mxu0 0.0
    %3992 = vmatpush1.msra.mxu0 0.0
    %3993 = vmatprep.subr.mxu0 0.0
    %3994 = vmatpush1.msra.mxu0 0.0
    %3995 = vmatprep.subr.mxu0 0.0
    %3996 = vmatpush1.msra.mxu0 0.0
    %3997 = vmatprep.subr.mxu0 0.0
    %3998 = vmatpush1.msra.mxu0 0.0
    %3999 = vmatprep.subr.mxu0 0.0
    %4000 = vmatpush1.msra.mxu0 0.0
    %4001 = vmatprep.subr.mxu0 0.0
    %4002 = vmatpush1.msra.mxu0 0.0
    %4003 = vmatprep.subr.mxu0 0.0
    %4004 = vmatpush1.msra.mxu0 0.0
    %4005 = vmatprep.subr.mxu0 0.0
    %4006 = vmatpush1.msra.mxu0 0.0
    %4007 = vmatprep.subr.mxu0 0.0
    %4008 = vmatpush1.msra.mxu0 0.0
    %4009 = vmatprep.subr.mxu0 0.0
    %4010 = vmatpush1.msra.mxu0 0.0
    %4011 = vmatprep.subr.mxu0 0.0
    %4012 = vmatpush1.msra.mxu0 0.0
    %4013 = vmatprep.subr.mxu0 0.0
    %4014 = vmatpush1.msra.mxu0 0.0
    %4015 = vmatprep.subr.mxu0 0.0
    %4016 = vmatpush1.msra.mxu0 0.0
    %4017 = vmatprep.subr.mxu0 0.0
    %4018 = vmatpush1.msra.mxu0 0.0
    %4019 = vmatprep.subr.mxu0 0.0
    %4020 = vmatpush1.msra.mxu0 0.0
    %4021 = vmatprep.subr.mxu0 0.0
    %4022 = vmatpush1.msra.mxu0 0.0
    %4023 = vmatprep.mubr.f32.mxu0 0.0
    %4024 = vmatmul.mubr.f32.gmra.mrb[0].mxu0 %v3957
    %v4025 = vpop.f32.mrb[0].mxu0
    %v4026 = vadd.f32 0.0, %v4025
    %v4027 = vpop.f32.mrb[0].mxu0
    %4028 = vdwg.mxu0
    %v4029 = vadd.f32 %v3953, %v4026
    %v4030 = vld [vmem:[#allocation3] sm:$0xff]
    %4032 = vrot.lane.b32.xlu0 %v3948, 32
    %v4033 = vpop.permute.xlu0 %4032
    %v4034 = vsel %vm232, %v4033, 0
    %4036 = vmatprep.subr.mxu0 0.0
    %4037 = vmatpush1.msra.mxu0 %v2519
    %4038 = vmatprep.subr.mxu0 0.0
    %4039 = vmatpush1.msra.mxu0 %v2520
    %4040 = vmatprep.subr.mxu0 0.0
    %4041 = vmatpush1.msra.mxu0 %v2521
    %4042 = vmatprep.subr.mxu0 0.0
    %4043 = vmatpush1.msra.mxu0 %v2522
    %4044 = vmatprep.subr.mxu0 0.0
    %4045 = vmatpush1.msra.mxu0 0.0
    %4046 = vmatprep.subr.mxu0 0.0
    %4047 = vmatpush1.msra.mxu0 0.0
    %4048 = vmatprep.subr.mxu0 0.0
    %4049 = vmatpush1.msra.mxu0 0.0
    %4050 = vmatprep.subr.mxu0 0.0
    %4051 = vmatpush1.msra.mxu0 0.0
    %4052 = vmatprep.subr.mxu0 0.0
    %4053 = vmatpush1.msra.mxu0 0.0
    %4054 = vmatprep.subr.mxu0 0.0
    %4055 = vmatpush1.msra.mxu0 0.0
    %4056 = vmatprep.subr.mxu0 0.0
    %4057 = vmatpush1.msra.mxu0 0.0
    %4058 = vmatprep.subr.mxu0 0.0
    %4059 = vmatpush1.msra.mxu0 0.0
    %4060 = vmatprep.subr.mxu0 0.0
    %4061 = vmatpush1.msra.mxu0 0.0
    %4062 = vmatprep.subr.mxu0 0.0
    %4063 = vmatpush1.msra.mxu0 0.0
    %4064 = vmatprep.subr.mxu0 0.0
    %4065 = vmatpush1.msra.mxu0 0.0
    %4066 = vmatprep.subr.mxu0 0.0
    %4067 = vmatpush1.msra.mxu0 0.0
    %4068 = vmatprep.subr.mxu0 0.0
    %4069 = vmatpush1.msra.mxu0 0.0
    %4070 = vmatprep.subr.mxu0 0.0
    %4071 = vmatpush1.msra.mxu0 0.0
    %4072 = vmatprep.subr.mxu0 0.0
    %4073 = vmatpush1.msra.mxu0 0.0
    %4074 = vmatprep.subr.mxu0 0.0
    %4075 = vmatpush1.msra.mxu0 0.0
    %4076 = vmatprep.subr.mxu0 0.0
    %4077 = vmatpush1.msra.mxu0 0.0
    %4078 = vmatprep.subr.mxu0 0.0
    %4079 = vmatpush1.msra.mxu0 0.0
    %4080 = vmatprep.subr.mxu0 0.0
    %4081 = vmatpush1.msra.mxu0 0.0
    %4082 = vmatprep.subr.mxu0 0.0
    %4083 = vmatpush1.msra.mxu0 0.0
    %4084 = vmatprep.subr.mxu0 0.0
    %4085 = vmatpush1.msra.mxu0 0.0
    %4086 = vmatprep.subr.mxu0 0.0
    %4087 = vmatpush1.msra.mxu0 0.0
    %4088 = vmatprep.subr.mxu0 0.0
    %4089 = vmatpush1.msra.mxu0 0.0
    %4090 = vmatprep.subr.mxu0 0.0
    %4091 = vmatpush1.msra.mxu0 0.0
    %4092 = vmatprep.subr.mxu0 0.0
    %4093 = vmatpush1.msra.mxu0 0.0
    %4094 = vmatprep.subr.mxu0 0.0
    %4095 = vmatpush1.msra.mxu0 0.0
    %4096 = vmatprep.subr.mxu0 0.0
    %4097 = vmatpush1.msra.mxu0 0.0
    %4098 = vmatprep.subr.mxu0 0.0
    %4099 = vmatpush1.msra.mxu0 0.0
    %4100 = vmatprep.mubr.f32.mxu0 0.0
    %4101 = vmatmul.mubr.f32.gmra.mrb[0].mxu0 %v4034
    %v4102 = vpop.f32.mrb[0].mxu0
    %v4103 = vadd.f32 0.0, %v4102
    %v4104 = vpop.f32.mrb[0].mxu0
    %4105 = vdwg.mxu0
    %v4106 = vadd.f32 %v4030, %v4103
    %v4107 = vxor.u32 %v4029, 2147483648
    %v4108 = vmul.f32 %v4107, 1.442695
    %v4109 = vpow.pop %v4108
    %v4110 = vadd.f32 %v4109, 1.0
    %v4111 = vrcp.pop %v4110
    %v4112 = vmul.f32 1.0, %v4111
    %v4113 = vtanh.pop %v4029
    %v4114 = vmul.f32 %v4112, %v3918
    %4116 = vrot.lane.b32.xlu0 %v4113, 64
    %v4117 = vpop.permute.xlu0 %4116
    %v4119 = vmul.f32 %v4112, %v4117
    %4121 = vrot.lane.b32.xlu0 %v4119, 32
    %v4122 = vpop.permute.xlu0 %4121
    %v4124 = vadd.f32 %v4114, %v4122
    %v4125 = vtanh.pop %v4124
    %4127 = vrot.lane.b32.xlu0 %v4125, 64
    %v4128 = vpop.permute.xlu0 %4127
    %v4130 = vmul.f32 %v4112, %v4128
    %v4131 = vxor.u32 %v4106, 2147483648
    %v4132 = vmul.f32 %v4131, 1.442695
    %v4133 = vpow.pop %v4132
    %v4134 = vadd.f32 %v4133, 1.0
    %v4135 = vrcp.pop %v4134
    %v4136 = vmul.f32 1.0, %v4135
    %v4137 = vtanh.pop %v4106
    %v4138 = vmul.f32 %v4136, %v3942
    %4140 = vrot.lane.b32.xlu0 %v4137, 64
    %v4141 = vpop.permute.xlu0 %4140
    %v4143 = vmul.f32 %v4136, %v4141
    %4145 = vrot.lane.b32.xlu0 %v4143, 32
    %v4146 = vpop.permute.xlu0 %4145
    %v4148 = vadd.f32 %v4138, %v4146
    %v4149 = vtanh.pop %v4148
    %4151 = vrot.lane.b32.xlu0 %v4149, 64
    %v4152 = vpop.permute.xlu0 %4151
    %v4154 = vmul.f32 %v4136, %v4152
    %v4155 = vadd.f32 %v3949, %v4130
    %v4156 = vadd.f32 %v3950, %v4154
    %v4157 = vmax.f32 %v3951, %v4130
    %v4158 = vmax.f32 %v3952, %v4154
    %v4159 = vmul.f32 %v4155, 0.125
    %v4160 = vmul.f32 %v4156, 0.125
    %4162 = vrot.lane.b32.xlu0 %v4157, 32
    %v4163 = vpop.permute.xlu0 %4162
    %4166 = vrot.lane.b32.xlu0 %v4158, 64
    %v4167 = vpop.permute.xlu0 %4166
    %4170 = vrot.lane.b32.xlu0 %v4159, 96
    %v4171 = vpop.permute.xlu0 %4170
    %v4173 = vsel %vm232, %v4163, %v4167
    %vm4174 = vcmask 523264
    %v4175 = vsel %vm4174, %v4173, %v4171
    %vm4176 = vcmask 785408
    %v4177 = vsel %vm4176, %v4175, %v4160
    %v4178 = vld [vmem:[%s13] sm:$0xff]
    %v4179 = vld [vmem:[%s13 + $0x8] sm:$0xff]
    %v4180 = vld [vmem:[%s13 + $0x10] sm:$0xff]
    %v4181 = vld [vmem:[%s13 + $0x18] sm:$0xff]
    %v4182 = vld [vmem:[%s13 + $0x20] sm:$0xff]
    %v4183 = vld [vmem:[%s13 + $0x28] sm:$0xff]
    %v4184 = vld [vmem:[%s13 + $0x30] sm:$0xff]
    %v4185 = vld [vmem:[%s13 + $0x38] sm:$0xff]
    %v4186 = vld [vmem:[%s13 + $0x40] sm:$0xff]
    %v4187 = vld [vmem:[%s13 + $0x48] sm:$0xff]
    %v4188 = vld [vmem:[%s13 + $0x50] sm:$0xff]
    %v4189 = vld [vmem:[%s13 + $0x58] sm:$0xff]
    %v4190 = vld [vmem:[%s13 + $0x60] sm:$0xff]
    %v4191 = vld [vmem:[%s13 + $0x68] sm:$0xff]
    %v4192 = vld [vmem:[%s13 + $0x70] sm:$0xff]
    %v4193 = vld [vmem:[%s13 + $0x78] sm:$0xff]
    %v4194 = vld [vmem:[%s13 + $0x80] sm:$0xff]
    %v4195 = vld [vmem:[%s13 + $0x88] sm:$0xff]
    %v4196 = vld [vmem:[%s13 + $0x90] sm:$0xff]
    %v4197 = vld [vmem:[%s13 + $0x98] sm:$0xff]
    %v4198 = vld [vmem:[%s13 + $0xa0] sm:$0xff]
    %v4199 = vld [vmem:[%s13 + $0xa8] sm:$0xff]
    %v4200 = vld [vmem:[%s13 + $0xb0] sm:$0xff]
    %v4201 = vld [vmem:[%s13 + $0xb8] sm:$0xff]
    %v4202 = vld [vmem:[%s13 + $0xc0] sm:$0xff]
    %v4203 = vld [vmem:[%s13 + $0xc8] sm:$0xff]
    %v4204 = vld [vmem:[%s13 + $0xd0] sm:$0xff]
    %v4205 = vld [vmem:[%s13 + $0xd8] sm:$0xff]
    %v4206 = vld [vmem:[%s13 + $0xe0] sm:$0xff]
    %v4207 = vld [vmem:[%s13 + $0xe8] sm:$0xff]
    %v4208 = vld [vmem:[%s13 + $0xf0] sm:$0xff]
    %v4209 = vld [vmem:[%s13 + $0xf8] sm:$0xff]
    %v4210 = vld [vmem:[#allocation19] sm:$0x3]
    %v4212 = vlaneseq
    %v4213 = vshrl.u32 %v4212, 7
    %v4214 = vsub.s32 0, %v4213
    %v4215 = vrot.slane %v4210, %v4214
    %v4216 = vlaneseq
    %v4217 = vshrl.u32 %v4216, 7
    %v4218 = vsub.s32 1, %v4217
    %v4219 = vrot.slane %v4210, %v4218
    %4222 = vmatprep.subr.mxu0 %v4179
    %4223 = vmatpush1.msra.mxu0 %v4178
    %4224 = vmatprep.subr.mxu0 %v4181
    %4225 = vmatpush1.msra.mxu0 %v4180
    %4226 = vmatprep.subr.mxu0 %v4183
    %4227 = vmatpush1.msra.mxu0 %v4182
    %4228 = vmatprep.subr.mxu0 %v4185
    %4229 = vmatpush1.msra.mxu0 %v4184
    %4230 = vmatprep.subr.mxu0 %v4187
    %4231 = vmatpush1.msra.mxu0 %v4186
    %4232 = vmatprep.subr.mxu0 %v4189
    %4233 = vmatpush1.msra.mxu0 %v4188
    %4234 = vmatprep.subr.mxu0 %v4191
    %4235 = vmatpush1.msra.mxu0 %v4190
    %4236 = vmatprep.subr.mxu0 %v4193
    %4237 = vmatpush1.msra.mxu0 %v4192
    %4238 = vmatprep.subr.mxu0 %v4195
    %4239 = vmatpush1.msra.mxu0 %v4194
    %4240 = vmatprep.subr.mxu0 %v4197
    %4241 = vmatpush1.msra.mxu0 %v4196
    %4242 = vmatprep.subr.mxu0 %v4199
    %4243 = vmatpush1.msra.mxu0 %v4198
    %4244 = vmatprep.subr.mxu0 %v4201
    %4245 = vmatpush1.msra.mxu0 %v4200
    %4246 = vmatprep.subr.mxu0 %v4203
    %4247 = vmatpush1.msra.mxu0 %v4202
    %4248 = vmatprep.subr.mxu0 %v4205
    %4249 = vmatpush1.msra.mxu0 %v4204
    %4250 = vmatprep.subr.mxu0 %v4207
    %4251 = vmatpush1.msra.mxu0 %v4206
    %4252 = vmatprep.subr.mxu0 %v4209
    %4253 = vmatpush1.msra.mxu0 %v4208
    %4254 = vmatprep.subr.mxu0 0.0
    %4255 = vmatpush1.msra.mxu0 0.0
    %4256 = vmatprep.subr.mxu0 0.0
    %4257 = vmatpush1.msra.mxu0 0.0
    %4258 = vmatprep.subr.mxu0 0.0
    %4259 = vmatpush1.msra.mxu0 0.0
    %4260 = vmatprep.subr.mxu0 0.0
    %4261 = vmatpush1.msra.mxu0 0.0
    %4262 = vmatprep.subr.mxu0 0.0
    %4263 = vmatpush1.msra.mxu0 0.0
    %4264 = vmatprep.subr.mxu0 0.0
    %4265 = vmatpush1.msra.mxu0 0.0
    %4266 = vmatprep.subr.mxu0 0.0
    %4267 = vmatpush1.msra.mxu0 0.0
    %4268 = vmatprep.subr.mxu0 0.0
    %4269 = vmatpush1.msra.mxu0 0.0
    %4270 = vmatprep.subr.mxu0 0.0
    %4271 = vmatpush1.msra.mxu0 0.0
    %4272 = vmatprep.subr.mxu0 0.0
    %4273 = vmatpush1.msra.mxu0 0.0
    %4274 = vmatprep.subr.mxu0 0.0
    %4275 = vmatpush1.msra.mxu0 0.0
    %4276 = vmatprep.subr.mxu0 0.0
    %4277 = vmatpush1.msra.mxu0 0.0
    %4278 = vmatprep.subr.mxu0 0.0
    %4279 = vmatpush1.msra.mxu0 0.0
    %4280 = vmatprep.subr.mxu0 0.0
    %4281 = vmatpush1.msra.mxu0 0.0
    %4282 = vmatprep.subr.mxu0 0.0
    %4283 = vmatpush1.msra.mxu0 0.0
    %4284 = vmatprep.subr.mxu0 0.0
    %4285 = vmatpush1.msra.mxu0 0.0
    %4286 = vmatprep.mubr.f32.mxu0 0.0
    %4287 = vmatmul.mubr.f32.gmra.mrb[0].mxu0 %v4177
    %v4288 = vpop.f32.mrb[0].mxu0
    %v4289 = vadd.f32 %v4215, %v4288
    %v4290 = vpop.f32.mrb[0].mxu0
    %v4291 = vadd.f32 %v4219, %v4290
    %4292 = vdwg.mxu0
    %v4293 = vmax.f32 %v4289, 0.0
    %v4294 = vmax.f32 %v4291, 0.0
    %v4295 = vadd.f32 %v4177, %v4293
    %v4296 = vadd.f32 %v4295, %v4294
    %v4297 = vld [vmem:[%s15] sm:$0xff]
    %v4298 = vld [vmem:[%s15 + $0x8] sm:$0xff]
    %v4299 = vld [vmem:[%s15 + $0x10] sm:$0xff]
    %v4300 = vld [vmem:[%s15 + $0x18] sm:$0xff]
    %v4301 = vld [vmem:[%s15 + $0x20] sm:$0xff]
    %v4302 = vld [vmem:[%s15 + $0x28] sm:$0xff]
    %v4303 = vld [vmem:[%s15 + $0x30] sm:$0xff]
    %v4304 = vld [vmem:[%s15 + $0x38] sm:$0xff]
    %v4305 = vld [vmem:[%s15 + $0x40] sm:$0xff]
    %v4306 = vld [vmem:[%s15 + $0x48] sm:$0xff]
    %v4307 = vld [vmem:[%s15 + $0x50] sm:$0xff]
    %v4308 = vld [vmem:[%s15 + $0x58] sm:$0xff]
    %v4309 = vld [vmem:[%s15 + $0x60] sm:$0xff]
    %v4310 = vld [vmem:[%s15 + $0x68] sm:$0xff]
    %v4311 = vld [vmem:[%s15 + $0x70] sm:$0xff]
    %v4312 = vld [vmem:[%s15 + $0x78] sm:$0xff]
    %v4313 = vld [vmem:[#allocation20] sm:$0x1]
    %v4315 = vlaneseq
    %v4316 = vshrl.u32 %v4315, 7
    %v4317 = vsub.s32 0, %v4316
    %v4318 = vrot.slane %v4313, %v4317
    %4320 = vmatprep.subr.mxu0 0.0
    %4321 = vmatpush1.msra.mxu0 %v4297
    %4322 = vmatprep.subr.mxu0 0.0
    %4323 = vmatpush1.msra.mxu0 %v4298
    %4324 = vmatprep.subr.mxu0 0.0
    %4325 = vmatpush1.msra.mxu0 %v4299
    %4326 = vmatprep.subr.mxu0 0.0
    %4327 = vmatpush1.msra.mxu0 %v4300
    %4328 = vmatprep.subr.mxu0 0.0
    %4329 = vmatpush1.msra.mxu0 %v4301
    %4330 = vmatprep.subr.mxu0 0.0
    %4331 = vmatpush1.msra.mxu0 %v4302
    %4332 = vmatprep.subr.mxu0 0.0
    %4333 = vmatpush1.msra.mxu0 %v4303
    %4334 = vmatprep.subr.mxu0 0.0
    %4335 = vmatpush1.msra.mxu0 %v4304
    %4336 = vmatprep.subr.mxu0 0.0
    %4337 = vmatpush1.msra.mxu0 %v4305
    %4338 = vmatprep.subr.mxu0 0.0
    %4339 = vmatpush1.msra.mxu0 %v4306
    %4340 = vmatprep.subr.mxu0 0.0
    %4341 = vmatpush1.msra.mxu0 %v4307
    %4342 = vmatprep.subr.mxu0 0.0
    %4343 = vmatpush1.msra.mxu0 %v4308
    %4344 = vmatprep.subr.mxu0 0.0
    %4345 = vmatpush1.msra.mxu0 %v4309
    %4346 = vmatprep.subr.mxu0 0.0
    %4347 = vmatpush1.msra.mxu0 %v4310
    %4348 = vmatprep.subr.mxu0 0.0
    %4349 = vmatpush1.msra.mxu0 %v4311
    %4350 = vmatprep.subr.mxu0 0.0
    %4351 = vmatpush1.msra.mxu0 %v4312
    %4352 = vmatprep.subr.mxu0 0.0
    %4353 = vmatpush1.msra.mxu0 0.0
    %4354 = vmatprep.subr.mxu0 0.0
    %4355 = vmatpush1.msra.mxu0 0.0
    %4356 = vmatprep.subr.mxu0 0.0
    %4357 = vmatpush1.msra.mxu0 0.0
    %4358 = vmatprep.subr.mxu0 0.0
    %4359 = vmatpush1.msra.mxu0 0.0
    %4360 = vmatprep.subr.mxu0 0.0
    %4361 = vmatpush1.msra.mxu0 0.0
    %4362 = vmatprep.subr.mxu0 0.0
    %4363 = vmatpush1.msra.mxu0 0.0
    %4364 = vmatprep.subr.mxu0 0.0
    %4365 = vmatpush1.msra.mxu0 0.0
    %4366 = vmatprep.subr.mxu0 0.0
    %4367 = vmatpush1.msra.mxu0 0.0
    %4368 = vmatprep.subr.mxu0 0.0
    %4369 = vmatpush1.msra.mxu0 0.0
    %4370 = vmatprep.subr.mxu0 0.0
    %4371 = vmatpush1.msra.mxu0 0.0
    %4372 = vmatprep.subr.mxu0 0.0
    %4373 = vmatpush1.msra.mxu0 0.0
    %4374 = vmatprep.subr.mxu0 0.0
    %4375 = vmatpush1.msra.mxu0 0.0
    %4376 = vmatprep.subr.mxu0 0.0
    %4377 = vmatpush1.msra.mxu0 0.0
    %4378 = vmatprep.subr.mxu0 0.0
    %4379 = vmatpush1.msra.mxu0 0.0
    %4380 = vmatprep.subr.mxu0 0.0
    %4381 = vmatpush1.msra.mxu0 0.0
    %4382 = vmatprep.subr.mxu0 0.0
    %4383 = vmatpush1.msra.mxu0 0.0
    %4384 = vmatprep.mubr.f32.mxu0 0.0
    %4385 = vmatmul.mubr.f32.gmra.mrb[0].mxu0 %v4296
    %v4386 = vpop.f32.mrb[0].mxu0
    %v4387 = vadd.f32 %v4318, %v4386
    %v4388 = vpop.f32.mrb[0].mxu0
    %4389 = vdwg.mxu0
    %4390 = vst [vmem:[%s17] sm:$0xff] %v4387
    // Predicated region
    $region110: #{jigsaw_forward.1} parent=1 // pred_check
      _
    $region111: #{jigsaw_forward.1} parent=1 // pred_check_branch
      %4392 = sbr.rel (0) target = $region113
    $region112: #{jigsaw_forward.1} parent=1 // pred_region
      _
    $region113: #{jigsaw_forward.1} parent=1 // pred_fallthru
      _
    // Predicated region
    $region114: #{jigsaw_forward.1} parent=1 // pred_check
      _
    $region115: #{jigsaw_forward.1} parent=1 // pred_check_branch
      %4394 = sbr.rel (0) target = $region117
    $region116: #{jigsaw_forward.1} parent=1 // pred_region
      _
    $region117: #{jigsaw_forward.1} parent=1 // pred_fallthru
      _
    %4395 = vsyncpa [#allocation7], 1
    %4396 = vsyncpa [#allocation9], 1
    %4397 = vsyncpa [#allocation12], 1
    %4398 = vsyncpa [#allocation15], 1
    %4399 = vsyncpa [#allocation18], 1
    %4400 = vsyncpa [#allocation21], 1

</llo_original>
